<compile_context>
chip_gen: v5e
topology: v5e:2x2
jax: 0.10.0
libtpu: 0.0.40
codegen_flags: <defaults>
</compile_context>

<pallas_src>
import math

import jax
import jax.numpy as jnp
from jax import lax
from jax.experimental import pallas as pl
from jax.experimental.pallas import tpu as pltpu


_CHUNK = 8  # timesteps per unrolled scan iteration (sublane-aligned tile)


def _mamba_kernel(x_ref, w_in_x_ref, w_in_z_ref, w_conv_ref, b_conv_ref,
                  w_xproj_ref, w_dt_ref, b_dt_ref, a_t_ref, d_skip_ref,
                  w_out_ref, out_ref,
                  delta_scr, du_scr, bc_scr, cc_scr, skip_scr, gate_scr, y_scr):
    """One grid step = B_BLK batch elements: full Mamba block on (B_BLK*L, d_model)."""
    b_blk, L, d_model = x_ref.shape
    d_conv, d_inner = w_conv_ref.shape
    d_state = a_t_ref.shape[0]
    dt_rank = w_dt_ref.shape[0]
    BL = b_blk * L

    x = x_ref[...].reshape(BL, d_model)                     # leading-dim collapse only
    x_bf = x.astype(jnp.bfloat16)

    # ---- in_proj (bf16 operands, f32 accumulation); gate z kept for after the scan
    xp = jnp.dot(x_bf, w_in_x_ref[...], preferred_element_type=jnp.float32)  # (BL, d_inner)
    z = jnp.dot(x_bf, w_in_z_ref[...], preferred_element_type=jnp.float32)   # (BL, d_inner)
    gate_scr[...] = z * jax.nn.sigmoid(z)                   # SiLU(z)

    # ---- causal depthwise conv1d (kernel d_conv, left pad d_conv-1) + SiLU.
    # pltpu.roll (XLU) + per-tap row mask; mask is per-sequence so batches don't leak.
    w_conv = w_conv_ref[...]                                # (d_conv, d_inner) f32
    row_in_seq = lax.broadcasted_iota(jnp.int32, (b_blk, L, d_inner), 1).reshape(BL, d_inner)
    conv = jnp.broadcast_to(b_conv_ref[...], (BL, d_inner))
    for k in range(d_conv):                                 # static unroll (d_conv taps)
        s = d_conv - 1 - k
        if s == 0:
            tap = xp
        else:
            tap = jnp.where(row_in_seq >= s, pltpu.roll(xp, shift=s, axis=0), 0.0)
        conv = conv + tap * w_conv[k][None, :]
    u = conv * jax.nn.sigmoid(conv)                         # SiLU, (BL, d_inner) f32
    skip_scr[...] = u * d_skip_ref[...]                     # D * u skip, reused after scan

    # ---- fused x_proj: one (d_inner, dt_rank + 2*d_state) matmul, bf16 operands
    dbc = jnp.dot(u.astype(jnp.bfloat16), w_xproj_ref[...],
                  preferred_element_type=jnp.float32)       # (BL, dt_rank+2*d_state)
    dt = dbc[:, 0:dt_rank]
    bc_scr[...] = dbc[:, dt_rank:dt_rank + d_state]         # (BL, d_state)
    cc_scr[...] = dbc[:, dt_rank + d_state:dt_rank + 2 * d_state]

    # ---- dt_proj + softplus; dt_rank is tiny -> VPU broadcast-MACs, stays f32
    w_dt = w_dt_ref[...]                                    # (dt_rank, d_inner)
    delta = jnp.broadcast_to(b_dt_ref[...], (BL, d_inner))
    for r in range(dt_rank):                                # static unroll
        delta = delta + dt[:, r:r + 1] * w_dt[r:r + 1, :]
    delta = jax.nn.softplus(delta)
    delta_scr[...] = delta
    du_scr[...] = delta * u                                 # delta * u, computed once

    # ---- selective scan: state h is (d_state, d_inner) (d_inner on lanes), one
    # independent chain per batch element in the block, interleaved in the same
    # unrolled body so the serial mul+add latency is hidden.  Everything that
    # does not depend on h (exp(dA), delta*u*B, C broadcast) is hoisted and
    # batched per chunk before the unrolled t-loop.
    a_t = a_t_ref[...]                                      # (d_state, d_inner), negative
    n_chunks = L // _CHUNK

    def chunk_body(c, hs):
        new_hs = []
        for b in range(b_blk):                              # static: interleaved chains
            start = pl.multiple_of(b * L + c * _CHUNK, _CHUNK)
            delta_c = delta_scr[pl.ds(start, _CHUNK), :]    # (CHUNK, d_inner)
            du_c = du_scr[pl.ds(start, _CHUNK), :]          # (CHUNK, d_inner)
            bc_c = bc_scr[pl.ds(start, _CHUNK), :]          # (CHUNK, d_state)
            cc_c = cc_scr[pl.ds(start, _CHUNK), :]          # (CHUNK, d_state)
            # hoisted off the recurrence chain (batched EUP exp + VPU multiplies)
            dA_c = jnp.exp(delta_c[:, None, :] * a_t[None, :, :])   # (CHUNK, d_state, d_inner)
            dBu_c = du_c[:, None, :] * bc_c[:, :, None]             # (CHUNK, d_state, d_inner)
            cC_c = cc_c[:, :, None]                                 # (CHUNK, d_state, 1)
            h = hs[b]
            ys = []
            for t in range(_CHUNK):                         # static unroll; chain = mul+add
                h = dA_c[t] * h + dBu_c[t]
                ys.append(jnp.sum(h * cC_c[t], axis=0, keepdims=True))   # (1, d_inner)
            y_scr[pl.ds(start, _CHUNK), :] = jnp.concatenate(ys, axis=0)
            new_hs.append(h)
        return tuple(new_hs)

    hs0 = tuple(jnp.zeros((d_state, d_inner), jnp.float32) for _ in range(b_blk))
    lax.fori_loop(0, n_chunks, chunk_body, hs0)

    # ---- skip connection (D), SiLU(z) gate, out_proj (bf16 operands, f32 acc)
    y = (y_scr[...] + skip_scr[...]) * gate_scr[...]
    out = jnp.dot(y.astype(jnp.bfloat16), w_out_ref[...],
                  preferred_element_type=jnp.float32)       # (BL, d_model)
    out_ref[...] = out.reshape(b_blk, L, d_model).astype(out_ref.dtype)


def mamba_forward(x_seq, params, *, b_blk=2):
    """x_seq: (B, L, d_model) float32 -> (B, L, d_model)."""
    B, L, d_model = x_seq.shape
    (w_in_x, w_in_z, w_conv, b_conv, w_dtin, w_b, w_c,
     w_dt, b_dt, a_t, d_skip, w_out) = params
    d_inner = w_conv.shape[1]
    d_state = a_t.shape[0]

    b_blk = max(1, min(b_blk, B))
    # Pad L to a multiple of the scan chunk and B to a multiple of the batch
    # block (causal ops => trailing zero padding is semantically inert).
    L_pad = pl.cdiv(L, _CHUNK) * _CHUNK
    B_pad = pl.cdiv(B, b_blk) * b_blk
    if (L_pad != L) or (B_pad != B):
        x_seq = jnp.pad(x_seq, ((0, B_pad - B), (0, L_pad - L), (0, 0)))

    # Fused x_proj weight; matmul weights in bf16 (MXU fast path, halves DMA).
    bf = jnp.bfloat16
    w_xproj = jnp.concatenate([w_dtin, w_b, w_c], axis=1)   # (d_inner, dt_rank+2*d_state)
    consts = (w_in_x.astype(bf), w_in_z.astype(bf), w_conv, b_conv,
              w_xproj.astype(bf), w_dt, b_dt, a_t, d_skip, w_out.astype(bf))

    def full_spec(arr):
        nd = arr.ndim
        # Grid-invariant weight windows; pipeline_mode=pl.Buffered(1) is a
        # further VMEM knob at production shapes if needed.
        return pl.BlockSpec(arr.shape, lambda i, _nd=nd: (0,) * _nd)

    out = pl.pallas_call(
        _mamba_kernel,
        out_shape=jax.ShapeDtypeStruct((B_pad, L_pad, d_model), x_seq.dtype),
        grid_spec=pltpu.PrefetchScalarGridSpec(
            num_scalar_prefetch=0,
            grid=(B_pad // b_blk,),
            in_specs=[pl.BlockSpec((b_blk, L_pad, d_model), lambda i: (i, 0, 0))]
            + [full_spec(w) for w in consts],
            out_specs=pl.BlockSpec((b_blk, L_pad, d_model), lambda i: (i, 0, 0)),
            scratch_shapes=[
                pltpu.VMEM((b_blk * L_pad, d_inner), jnp.float32),  # delta
                pltpu.VMEM((b_blk * L_pad, d_inner), jnp.float32),  # delta * u
                pltpu.VMEM((b_blk * L_pad, d_state), jnp.float32),  # B coefficients
                pltpu.VMEM((b_blk * L_pad, d_state), jnp.float32),  # C coefficients
                pltpu.VMEM((b_blk * L_pad, d_inner), jnp.float32),  # D * u skip
                pltpu.VMEM((b_blk * L_pad, d_inner), jnp.float32),  # SiLU(z) gate
                pltpu.VMEM((b_blk * L_pad, d_inner), jnp.float32),  # y
            ],
        ),
        compiler_params=pltpu.CompilerParams(
            # batch blocks are independent -> megacore / v7x 2-TC sharding;
            # for B==1 production cases a d_inner-block axis would be needed.
            dimension_semantics=("parallel",),
            vmem_limit_bytes=32 * 1024 * 1024),
    )(x_seq, *consts)
    return out[:B, :L]


def mamba_layer_forward(x, p, params):
    """MambaLayer.forward: x (B, C, H, W), p (B, Cp, H, W) -> (B, C+Cp, H, W)."""
    B, C, H, W = x.shape
    xcat = jnp.concatenate([x, p], axis=1)                  # (B, chs, H, W)
    chs = xcat.shape[1]
    x_seq = jnp.transpose(xcat, (0, 2, 3, 1)).reshape(B, H * W, chs)
    out_seq = mamba_forward(x_seq, params)                  # (B, L, chs)
    return jnp.transpose(out_seq.reshape(B, H, W, chs), (0, 3, 1, 2))


def mamba_reference(x_seq, params):
    """Pure-JAX f32 reference (mirrors mamba_ssm selective_scan_ref) for validation."""
    (w_in_x, w_in_z, w_conv, b_conv, w_dtin, w_b, w_c,
     w_dt, b_dt, a_t, d_skip, w_out) = params
    d_conv, d_inner = w_conv.shape
    d_state = a_t.shape[0]
    B, L, d_model = x_seq.shape

    xp = jnp.einsum('bld,de->ble', x_seq, w_in_x)
    z = jnp.einsum('bld,de->ble', x_seq, w_in_z)
    x_pad = jnp.pad(xp, ((0, 0), (d_conv - 1, 0), (0, 0)))
    conv = jnp.zeros_like(xp) + b_conv[None]
    for k in range(d_conv):
        conv = conv + x_pad[:, k:k + L, :] * w_conv[k][None, None, :]
    x_conv = conv * jax.nn.sigmoid(conv)
    dt = jnp.einsum('ble,er->blr', x_conv, w_dtin)
    Bc = jnp.einsum('ble,es->bls', x_conv, w_b)
    Cc = jnp.einsum('ble,es->bls', x_conv, w_c)
    delta = jax.nn.softplus(jnp.einsum('blr,re->ble', dt, w_dt) + b_dt[None])
    A = a_t.T                                               # (d_inner, d_state), negative
    dA = jnp.exp(delta[..., None] * A[None, None])
    dBu = delta[..., None] * Bc[:, :, None, :] * x_conv[..., None]

    def step(h, inp):
        dA_l, dBu_l, c_l = inp
        h = dA_l * h + dBu_l
        return h, jnp.sum(h * c_l[:, None, :], axis=-1)

    h0 = jnp.zeros((B, d_inner, d_state), jnp.float32)
    _, ys = lax.scan(step, h0, (jnp.moveaxis(dA, 1, 0),
                                jnp.moveaxis(dBu, 1, 0),
                                jnp.moveaxis(Cc, 1, 0)))
    y = jnp.moveaxis(ys, 0, 1)
    y = y + x_conv * d_skip[None]
    y = y * (z * jax.nn.sigmoid(z))
    return jnp.einsum('ble,ed->bld', y, w_out)


if __name__ == "__main__":
    # Small config consistent with MambaLayer(in_chs=8, dim=3, last_feat_size=16):
    # pool_scales = range(1, 16, 2) -> pool_len = 8, p has dim*pool_len = 24 channels,
    # d_model = in_chs + dim*pool_len = 32.  B=4 so the batch-blocked grid has 2 steps.
    B, C_in, H, W = 4, 8, 8, 8
    dim, pool_len = 3, 8
    Cp = dim * pool_len                        # 24
    d_model = C_in + Cp                        # 32
    d_state, d_conv, expand = 8, 4, 2
    d_inner = expand * d_model                 # 64
    dt_rank = max(1, math.ceil(d_model / 16))  # 2

    key = jax.random.PRNGKey(0)
    (kx, kp, k0a, k0b, k1, k2, k3a, k3b, k3c, k4, k5, k6) = jax.random.split(key, 12)
    x = jax.random.normal(kx, (B, C_in, H, W), jnp.float32) * 0.5
    p = jax.random.normal(kp, (B, Cp, H, W), jnp.float32) * 0.5

    # Deterministic synthetic Mamba parameters (weights stored pre-transposed /
    # pre-split so the kernel does lane-aligned row-major matmuls).
    s = 0.1
    w_in_x = jax.random.normal(k0a, (d_model, d_inner), jnp.float32) * s
    w_in_z = jax.random.normal(k0b, (d_model, d_inner), jnp.float32) * s
    w_conv = jax.random.normal(k1, (d_conv, d_inner), jnp.float32) * s
    b_conv = jax.random.normal(k2, (1, d_inner), jnp.float32) * s
    w_dtin = jax.random.normal(k3a, (d_inner, dt_rank), jnp.float32) * s
    w_b = jax.random.normal(k3b, (d_inner, d_state), jnp.float32) * s
    w_c = jax.random.normal(k3c, (d_inner, d_state), jnp.float32) * s
    w_dt = jax.random.normal(k4, (dt_rank, d_inner), jnp.float32) * s
    b_dt = jax.random.normal(k5, (1, d_inner), jnp.float32) * s
    # A = -exp(A_log), default mamba init: A_log = log(arange(1, d_state+1));
    # stored transposed as (d_state, d_inner) for the lane-dense scan layout.
    a_t = -jnp.broadcast_to(
        jnp.arange(1, d_state + 1, dtype=jnp.float32)[:, None], (d_state, d_inner))
    d_skip = jnp.ones((1, d_inner), jnp.float32)
    w_out = jax.random.normal(k6, (d_inner, d_model), jnp.float32) * s
    params = (w_in_x, w_in_z, w_conv, b_conv, w_dtin, w_b, w_c,
              w_dt, b_dt, a_t, d_skip, w_out)

    out = mamba_layer_forward(x, p, params)
    out = jax.block_until_ready(out)
    assert out.shape == (B, d_model, H, W), out.shape
    assert bool(jnp.isfinite(out).all())

    # Validate against pure-JAX f32 reference (kernel uses bf16 matmul operands).
    xcat = jnp.concatenate([x, p], axis=1)
    x_seq = jnp.transpose(xcat, (0, 2, 3, 1)).reshape(B, H * W, d_model)
    ref_seq = mamba_reference(x_seq, params)
    ref = jnp.transpose(ref_seq.reshape(B, H, W, d_model), (0, 3, 1, 2))
    err = float(jnp.max(jnp.abs(out - ref)))
    assert err < 2e-2, f"max abs err {err}"

    print("KERNEL_OK")
</pallas_src>

<mosaic_0001>
module attributes {stable_mosaic.version = 11 : i64} {
  func.func @_mamba_kernel(%arg0: i32, %arg1: memref<2x64x32xf32, #tpu.memory_space<vmem>>, %arg2: memref<32x64xbf16, #tpu.memory_space<vmem>>, %arg3: memref<32x64xbf16, #tpu.memory_space<vmem>>, %arg4: memref<4x64xf32, #tpu.memory_space<vmem>>, %arg5: memref<1x64xf32, #tpu.memory_space<vmem>>, %arg6: memref<64x18xbf16, #tpu.memory_space<vmem>>, %arg7: memref<2x64xf32, #tpu.memory_space<vmem>>, %arg8: memref<1x64xf32, #tpu.memory_space<vmem>>, %arg9: memref<8x64xf32, #tpu.memory_space<vmem>>, %arg10: memref<1x64xf32, #tpu.memory_space<vmem>>, %arg11: memref<64x32xbf16, #tpu.memory_space<vmem>>, %arg12: memref<2x64x32xf32, #tpu.memory_space<vmem>>, %arg13: memref<128x64xf32, #tpu.memory_space<vmem>>, %arg14: memref<128x64xf32, #tpu.memory_space<vmem>>, %arg15: memref<128x8xf32, #tpu.memory_space<vmem>>, %arg16: memref<128x8xf32, #tpu.memory_space<vmem>>, %arg17: memref<128x64xf32, #tpu.memory_space<vmem>>, %arg18: memref<128x64xf32, #tpu.memory_space<vmem>>, %arg19: memref<128x64xf32, #tpu.memory_space<vmem>>) attributes {dimension_semantics = [#tpu.dimension_semantics<parallel>], iteration_bounds = array<i64: 2>, scalar_prefetch = 0 : i64, scratch_operands = 7 : i64, tpu.core_type = #tpu.core_type<tc>, window_params = [{transform_indices = @transform_0, window_bounds = array<i64: 2, 64, 32>}, {pipeline_mode = #tpu.pipeline_mode<synchronous>, transform_indices = @transform_1, window_bounds = array<i64: 32, 64>}, {pipeline_mode = #tpu.pipeline_mode<synchronous>, transform_indices = @transform_2, window_bounds = array<i64: 32, 64>}, {pipeline_mode = #tpu.pipeline_mode<synchronous>, transform_indices = @transform_3, window_bounds = array<i64: 4, 64>}, {pipeline_mode = #tpu.pipeline_mode<synchronous>, transform_indices = @transform_4, window_bounds = array<i64: 1, 64>}, {pipeline_mode = #tpu.pipeline_mode<synchronous>, transform_indices = @transform_5, window_bounds = array<i64: 64, 18>}, {pipeline_mode = #tpu.pipeline_mode<synchronous>, transform_indices = @transform_6, window_bounds = array<i64: 2, 64>}, {pipeline_mode = #tpu.pipeline_mode<synchronous>, transform_indices = @transform_7, window_bounds = array<i64: 1, 64>}, {pipeline_mode = #tpu.pipeline_mode<synchronous>, transform_indices = @transform_8, window_bounds = array<i64: 8, 64>}, {pipeline_mode = #tpu.pipeline_mode<synchronous>, transform_indices = @transform_9, window_bounds = array<i64: 1, 64>}, {pipeline_mode = #tpu.pipeline_mode<synchronous>, transform_indices = @transform_10, window_bounds = array<i64: 64, 32>}, {transform_indices = @transform_11, window_bounds = array<i64: 2, 64, 32>}]} {
    %c0 = arith.constant 0 : index
    %c0_0 = arith.constant 0 : index
    %c0_1 = arith.constant 0 : index
    %0 = vector.load %arg1[%c0, %c0_0, %c0_1] : memref<2x64x32xf32, #tpu.memory_space<vmem>>, vector<2x64x32xf32>
    %1 = vector.shape_cast %0 : vector<2x64x32xf32> to vector<128x32xf32>
    %2 = arith.truncf %1 : vector<128x32xf32> to vector<128x32xbf16>
    %c0_2 = arith.constant 0 : index
    %c0_3 = arith.constant 0 : index
    %3 = vector.load %arg2[%c0_2, %c0_3] : memref<32x64xbf16, #tpu.memory_space<vmem>>, vector<32x64xbf16>
    %cst = arith.constant dense<0.000000e+00> : vector<128x64xf32>
    %4 = tpu.matmul %2, %3, %cst {dimension_numbers = #tpu.dot_dimension_numbers<[1], [0], [0], [1], [0, 0, 1, 1], [], []>} : vector<128x32xbf16>, vector<32x64xbf16>, vector<128x64xf32> -> vector<128x64xf32>
    %c0_4 = arith.constant 0 : index
    %c0_5 = arith.constant 0 : index
    %5 = vector.load %arg3[%c0_4, %c0_5] : memref<32x64xbf16, #tpu.memory_space<vmem>>, vector<32x64xbf16>
    %cst_6 = arith.constant dense<0.000000e+00> : vector<128x64xf32>
    %6 = tpu.matmul %2, %5, %cst_6 {dimension_numbers = #tpu.dot_dimension_numbers<[1], [0], [0], [1], [0, 0, 1, 1], [], []>} : vector<128x32xbf16>, vector<32x64xbf16>, vector<128x64xf32> -> vector<128x64xf32>
    %7 = arith.negf %6 : vector<128x64xf32>
    %8 = math.exp %7 : vector<128x64xf32>
    %cst_7 = arith.constant 1.000000e+00 : f32
    %9 = vector.broadcast %cst_7 : f32 to vector<128x64xf32>
    %10 = arith.addf %9, %8 : vector<128x64xf32>
    %11 = arith.divf %9, %10 : vector<128x64xf32>
    %12 = arith.mulf %6, %11 : vector<128x64xf32>
    %c0_8 = arith.constant 0 : index
    %c0_9 = arith.constant 0 : index
    %13 = vector.load %arg18[%c0_8, %c0_9] : memref<128x64xf32, #tpu.memory_space<vmem>>, vector<128x64xf32>
    tpu.vector_store %arg18[%c0_8, %c0_9], %12 {strides = array<i32>} : memref<128x64xf32, #tpu.memory_space<vmem>>, vector<128x64xf32>,
    %c0_10 = arith.constant 0 : index
    %c0_11 = arith.constant 0 : index
    %14 = vector.load %arg4[%c0_10, %c0_11] : memref<4x64xf32, #tpu.memory_space<vmem>>, vector<4x64xf32>
    %15 = tpu.iota {dimensions = array<i32: 1>} : vector<2x64x64xi32>
    %16 = vector.shape_cast %15 : vector<2x64x64xi32> to vector<128x64xi32>
    %c0_12 = arith.constant 0 : index
    %c0_13 = arith.constant 0 : index
    %17 = vector.load %arg5[%c0_12, %c0_13] : memref<1x64xf32, #tpu.memory_space<vmem>>, vector<1x64xf32>
    %18 = vector.shape_cast %17 : vector<1x64xf32> to vector<1x64xf32>
    %19 = vector.broadcast %18 : vector<1x64xf32> to vector<128x64xf32>
    %c3_i32 = arith.constant 3 : i32
    %20 = vector.broadcast %c3_i32 : i32 to vector<128x64xi32>
    %21 = arith.cmpi sge, %16, %20 : vector<128x64xi32>
    %c3_i32_14 = arith.constant 3 : i32
    %22 = tpu.dynamic_rotate %4 by %c3_i32_14 dim 0 : vector<128x64xf32>, i32 -> vector<128x64xf32>
    %cst_15 = arith.constant 0.000000e+00 : f32
    %23 = vector.broadcast %cst_15 : f32 to vector<128x64xf32>
    %24 = arith.select %21, %22, %23 : vector<128x64xi1>, vector<128x64xf32>
    %25 = vector.extract_strided_slice %14 {offsets = [0, 0], sizes = [1, 64], strides = [1, 1]} : vector<4x64xf32> to vector<1x64xf32>
    %26 = vector.shape_cast %25 : vector<1x64xf32> to vector<64xf32>
    %27 = vector.shape_cast %26 : vector<64xf32> to vector<1x64xf32>
    %28 = vector.broadcast %27 : vector<1x64xf32> to vector<128x64xf32>
    %29 = arith.mulf %24, %28 : vector<128x64xf32>
    %30 = arith.addf %19, %29 : vector<128x64xf32>
    %c2_i32 = arith.constant 2 : i32
    %31 = vector.broadcast %c2_i32 : i32 to vector<128x64xi32>
    %32 = arith.cmpi sge, %16, %31 : vector<128x64xi32>
    %c2_i32_16 = arith.constant 2 : i32
    %33 = tpu.dynamic_rotate %4 by %c2_i32_16 dim 0 : vector<128x64xf32>, i32 -> vector<128x64xf32>
    %cst_17 = arith.constant 0.000000e+00 : f32
    %34 = vector.broadcast %cst_17 : f32 to vector<128x64xf32>
    %35 = arith.select %32, %33, %34 : vector<128x64xi1>, vector<128x64xf32>
    %36 = vector.extract_strided_slice %14 {offsets = [1, 0], sizes = [1, 64], strides = [1, 1]} : vector<4x64xf32> to vector<1x64xf32>
    %37 = vector.shape_cast %36 : vector<1x64xf32> to vector<64xf32>
    %38 = vector.shape_cast %37 : vector<64xf32> to vector<1x64xf32>
    %39 = vector.broadcast %38 : vector<1x64xf32> to vector<128x64xf32>
    %40 = arith.mulf %35, %39 : vector<128x64xf32>
    %41 = arith.addf %30, %40 : vector<128x64xf32>
    %c1_i32 = arith.constant 1 : i32
    %42 = vector.broadcast %c1_i32 : i32 to vector<128x64xi32>
    %43 = arith.cmpi sge, %16, %42 : vector<128x64xi32>
    %c1_i32_18 = arith.constant 1 : i32
    %44 = tpu.dynamic_rotate %4 by %c1_i32_18 dim 0 : vector<128x64xf32>, i32 -> vector<128x64xf32>
    %cst_19 = arith.constant 0.000000e+00 : f32
    %45 = vector.broadcast %cst_19 : f32 to vector<128x64xf32>
    %46 = arith.select %43, %44, %45 : vector<128x64xi1>, vector<128x64xf32>
    %47 = vector.extract_strided_slice %14 {offsets = [2, 0], sizes = [1, 64], strides = [1, 1]} : vector<4x64xf32> to vector<1x64xf32>
    %48 = vector.shape_cast %47 : vector<1x64xf32> to vector<64xf32>
    %49 = vector.shape_cast %48 : vector<64xf32> to vector<1x64xf32>
    %50 = vector.broadcast %49 : vector<1x64xf32> to vector<128x64xf32>
    %51 = arith.mulf %46, %50 : vector<128x64xf32>
    %52 = arith.addf %41, %51 : vector<128x64xf32>
    %53 = vector.extract_strided_slice %14 {offsets = [3, 0], sizes = [1, 64], strides = [1, 1]} : vector<4x64xf32> to vector<1x64xf32>
    %54 = vector.shape_cast %53 : vector<1x64xf32> to vector<64xf32>
    %55 = vector.shape_cast %54 : vector<64xf32> to vector<1x64xf32>
    %56 = vector.broadcast %55 : vector<1x64xf32> to vector<128x64xf32>
    %57 = arith.mulf %4, %56 : vector<128x64xf32>
    %58 = arith.addf %52, %57 : vector<128x64xf32>
    %59 = arith.negf %58 : vector<128x64xf32>
    %60 = math.exp %59 : vector<128x64xf32>
    %cst_20 = arith.constant 1.000000e+00 : f32
    %61 = vector.broadcast %cst_20 : f32 to vector<128x64xf32>
    %62 = arith.addf %61, %60 : vector<128x64xf32>
    %63 = arith.divf %61, %62 : vector<128x64xf32>
    %64 = arith.mulf %58, %63 : vector<128x64xf32>
    %c0_21 = arith.constant 0 : index
    %c0_22 = arith.constant 0 : index
    %65 = vector.load %arg10[%c0_21, %c0_22] : memref<1x64xf32, #tpu.memory_space<vmem>>, vector<1x64xf32>
    %66 = vector.broadcast %65 : vector<1x64xf32> to vector<128x64xf32>
    %67 = arith.mulf %64, %66 : vector<128x64xf32>
    %c0_23 = arith.constant 0 : index
    %c0_24 = arith.constant 0 : index
    %68 = vector.load %arg17[%c0_23, %c0_24] : memref<128x64xf32, #tpu.memory_space<vmem>>, vector<128x64xf32>
    tpu.vector_store %arg17[%c0_23, %c0_24], %67 {strides = array<i32>} : memref<128x64xf32, #tpu.memory_space<vmem>>, vector<128x64xf32>,
    %69 = arith.truncf %64 : vector<128x64xf32> to vector<128x64xbf16>
    %c0_25 = arith.constant 0 : index
    %c0_26 = arith.constant 0 : index
    %70 = vector.load %arg6[%c0_25, %c0_26] : memref<64x18xbf16, #tpu.memory_space<vmem>>, vector<64x18xbf16>
    %cst_27 = arith.constant dense<0.000000e+00> : vector<128x18xf32>
    %71 = tpu.matmul %69, %70, %cst_27 {dimension_numbers = #tpu.dot_dimension_numbers<[1], [0], [0], [1], [0, 0, 1, 1], [], []>} : vector<128x64xbf16>, vector<64x18xbf16>, vector<128x18xf32> -> vector<128x18xf32>
    %72 = vector.extract_strided_slice %71 {offsets = [0, 0], sizes = [128, 2], strides = [1, 1]} : vector<128x18xf32> to vector<128x2xf32>
    %73 = vector.extract_strided_slice %71 {offsets = [0, 2], sizes = [128, 8], strides = [1, 1]} : vector<128x18xf32> to vector<128x8xf32>
    %c0_28 = arith.constant 0 : index
    %c0_29 = arith.constant 0 : index
    %74 = vector.load %arg15[%c0_28, %c0_29] : memref<128x8xf32, #tpu.memory_space<vmem>>, vector<128x8xf32>
    tpu.vector_store %arg15[%c0_28, %c0_29], %73 {strides = array<i32>} : memref<128x8xf32, #tpu.memory_space<vmem>>, vector<128x8xf32>,
    %75 = vector.extract_strided_slice %71 {offsets = [0, 10], sizes = [128, 8], strides = [1, 1]} : vector<128x18xf32> to vector<128x8xf32>
    %c0_30 = arith.constant 0 : index
    %c0_31 = arith.constant 0 : index
    %76 = vector.load %arg16[%c0_30, %c0_31] : memref<128x8xf32, #tpu.memory_space<vmem>>, vector<128x8xf32>
    tpu.vector_store %arg16[%c0_30, %c0_31], %75 {strides = array<i32>} : memref<128x8xf32, #tpu.memory_space<vmem>>, vector<128x8xf32>,
    %c0_32 = arith.constant 0 : index
    %c0_33 = arith.constant 0 : index
    %77 = vector.load %arg7[%c0_32, %c0_33] : memref<2x64xf32, #tpu.memory_space<vmem>>, vector<2x64xf32>
    %c0_34 = arith.constant 0 : index
    %c0_35 = arith.constant 0 : index
    %78 = vector.load %arg8[%c0_34, %c0_35] : memref<1x64xf32, #tpu.memory_space<vmem>>, vector<1x64xf32>
    %79 = vector.shape_cast %78 : vector<1x64xf32> to vector<1x64xf32>
    %80 = vector.broadcast %79 : vector<1x64xf32> to vector<128x64xf32>
    %81 = vector.extract_strided_slice %72 {offsets = [0, 0], sizes = [128, 1], strides = [1, 1]} : vector<128x2xf32> to vector<128x1xf32>
    %82 = vector.extract_strided_slice %77 {offsets = [0, 0], sizes = [1, 64], strides = [1, 1]} : vector<2x64xf32> to vector<1x64xf32>
    %83 = vector.broadcast %81 : vector<128x1xf32> to vector<128x64xf32>
    %84 = vector.broadcast %82 : vector<1x64xf32> to vector<128x64xf32>
    %85 = arith.mulf %83, %84 : vector<128x64xf32>
    %86 = arith.addf %80, %85 : vector<128x64xf32>
    %87 = vector.extract_strided_slice %72 {offsets = [0, 1], sizes = [128, 1], strides = [1, 1]} : vector<128x2xf32> to vector<128x1xf32>
    %88 = vector.extract_strided_slice %77 {offsets = [1, 0], sizes = [1, 64], strides = [1, 1]} : vector<2x64xf32> to vector<1x64xf32>
    %89 = vector.broadcast %87 : vector<128x1xf32> to vector<128x64xf32>
    %90 = vector.broadcast %88 : vector<1x64xf32> to vector<128x64xf32>
    %91 = arith.mulf %89, %90 : vector<128x64xf32>
    %92 = arith.addf %86, %91 : vector<128x64xf32>
    %cst_36 = arith.constant 0.000000e+00 : f32
    %93 = vector.broadcast %cst_36 : f32 to vector<128x64xf32>
    %94 = arith.maximumf %92, %93 : vector<128x64xf32>
    %95 = vector.broadcast %cst_36 : f32 to vector<128x64xf32>
    %96 = arith.subf %92, %95 : vector<128x64xf32>
    %97 = arith.cmpf one, %96, %96 : vector<128x64xf32>
    %98 = vector.broadcast %cst_36 : f32 to vector<128x64xf32>
    %99 = arith.addf %92, %98 : vector<128x64xf32>
    %100 = math.absf %96 : vector<128x64xf32>
    %cst_37 = arith.constant 0.000000e+00 : f32
    %101 = vector.broadcast %cst_37 : f32 to vector<128x64xf32>
    %102 = arith.subf %101, %100 : vector<128x64xf32>
    %103 = math.exp %102 : vector<128x64xf32>
    %104 = math.log1p %103 : vector<128x64xf32>
    %105 = arith.addf %94, %104 : vector<128x64xf32>
    %106 = arith.select %97, %99, %105 : vector<128x64xi1>, vector<128x64xf32>
    %c0_38 = arith.constant 0 : index
    %c0_39 = arith.constant 0 : index
    %107 = vector.load %arg13[%c0_38, %c0_39] : memref<128x64xf32, #tpu.memory_space<vmem>>, vector<128x64xf32>
    tpu.vector_store %arg13[%c0_38, %c0_39], %106 {strides = array<i32>} : memref<128x64xf32, #tpu.memory_space<vmem>>, vector<128x64xf32>,
    %108 = arith.mulf %106, %64 : vector<128x64xf32>
    %c0_40 = arith.constant 0 : index
    %c0_41 = arith.constant 0 : index
    %109 = vector.load %arg14[%c0_40, %c0_41] : memref<128x64xf32, #tpu.memory_space<vmem>>, vector<128x64xf32>
    tpu.vector_store %arg14[%c0_40, %c0_41], %108 {strides = array<i32>} : memref<128x64xf32, #tpu.memory_space<vmem>>, vector<128x64xf32>,
    %c0_42 = arith.constant 0 : index
    %c0_43 = arith.constant 0 : index
    %110 = vector.load %arg9[%c0_42, %c0_43] : memref<8x64xf32, #tpu.memory_space<vmem>>, vector<8x64xf32>
    %cst_44 = arith.constant 0.000000e+00 : f32
    %111 = vector.broadcast %cst_44 : f32 to vector<8x64xf32>
    %cst_45 = arith.constant 0.000000e+00 : f32
    %112 = vector.broadcast %cst_45 : f32 to vector<8x64xf32>
    %c0_i32 = arith.constant 0 : i32
    %c8_i32 = arith.constant 8 : i32
    %113 = arith.addi %c0_i32, %c8_i32 : i32
    %c1_i32_46 = arith.constant 1 : i32
    %114:2 = scf.for %arg20 = %c0_i32 to %113 step %c1_i32_46 iter_args(%arg21 = %111, %arg22 = %112) -> (vector<8x64xf32>, vector<8x64xf32>)  : i32 {
      %c8_i32_60 = arith.constant 8 : i32
      %125 = arith.muli %arg20, %c8_i32_60 : i32
      %c0_i32_61 = arith.constant 0 : i32
      %126 = arith.addi %c0_i32_61, %125 : i32
      %127 = tpu.assume_multiple %126, 8 : i32
      %128 = arith.index_cast %127 : i32 to index
      %c0_62 = arith.constant 0 : index
      %129 = vector.load %arg13[%128, %c0_62] : memref<128x64xf32, #tpu.memory_space<vmem>>, vector<8x64xf32>
      %130 = arith.index_cast %127 : i32 to index
      %c0_63 = arith.constant 0 : index
      %131 = vector.load %arg14[%130, %c0_63] : memref<128x64xf32, #tpu.memory_space<vmem>>, vector<8x64xf32>
      %132 = arith.index_cast %127 : i32 to index
      %c0_64 = arith.constant 0 : index
      %133 = vector.load %arg15[%132, %c0_64] : memref<128x8xf32, #tpu.memory_space<vmem>>, vector<8x8xf32>
      %134 = arith.index_cast %127 : i32 to index
      %c0_65 = arith.constant 0 : index
      %135 = vector.load %arg16[%134, %c0_65] : memref<128x8xf32, #tpu.memory_space<vmem>>, vector<8x8xf32>
      %136 = vector.shape_cast %129 : vector<8x64xf32> to vector<8x1x64xf32>
      %137 = vector.shape_cast %110 : vector<8x64xf32> to vector<1x8x64xf32>
      %138 = vector.broadcast %136 : vector<8x1x64xf32> to vector<8x8x64xf32>
      %139 = vector.broadcast %137 : vector<1x8x64xf32> to vector<8x8x64xf32>
      %140 = arith.mulf %138, %139 : vector<8x8x64xf32>
      %141 = math.exp %140 : vector<8x8x64xf32>
      %142 = vector.shape_cast %131 : vector<8x64xf32> to vector<8x1x64xf32>
      %143 = vector.shape_cast %133 : vector<8x8xf32> to vector<8x8x1xf32>
      %144 = vector.broadcast %142 : vector<8x1x64xf32> to vector<8x8x64xf32>
      %145 = vector.broadcast %143 : vector<8x8x1xf32> to vector<8x8x64xf32>
      %146 = arith.mulf %144, %145 : vector<8x8x64xf32>
      %147 = vector.shape_cast %135 : vector<8x8xf32> to vector<8x8x1xf32>
      %148 = vector.extract_strided_slice %141 {offsets = [0, 0, 0], sizes = [1, 8, 64], strides = [1, 1, 1]} : vector<8x8x64xf32> to vector<1x8x64xf32>
      %149 = vector.shape_cast %148 : vector<1x8x64xf32> to vector<8x64xf32>
      %150 = arith.mulf %149, %arg21 : vector<8x64xf32>
      %151 = vector.extract_strided_slice %146 {offsets = [0, 0, 0], sizes = [1, 8, 64], strides = [1, 1, 1]} : vector<8x8x64xf32> to vector<1x8x64xf32>
      %152 = vector.shape_cast %151 : vector<1x8x64xf32> to vector<8x64xf32>
      %153 = arith.addf %150, %152 : vector<8x64xf32>
      %154 = vector.extract_strided_slice %147 {offsets = [0, 0, 0], sizes = [1, 8, 1], strides = [1, 1, 1]} : vector<8x8x1xf32> to vector<1x8x1xf32>
      %155 = vector.shape_cast %154 : vector<1x8x1xf32> to vector<8x1xf32>
      %156 = vector.broadcast %155 : vector<8x1xf32> to vector<8x64xf32>
      %157 = arith.mulf %153, %156 : vector<8x64xf32>
      %cst_66 = arith.constant dense<0.000000e+00> : vector<64xf32>
      %158 = vector.multi_reduction <add>, %157, %cst_66 [0] : vector<8x64xf32> to vector<64xf32>
      %159 = vector.shape_cast %158 : vector<64xf32> to vector<1x64xf32>
      %160 = vector.extract_strided_slice %141 {offsets = [1, 0, 0], sizes = [1, 8, 64], strides = [1, 1, 1]} : vector<8x8x64xf32> to vector<1x8x64xf32>
      %161 = vector.shape_cast %160 : vector<1x8x64xf32> to vector<8x64xf32>
      %162 = arith.mulf %161, %153 : vector<8x64xf32>
      %163 = vector.extract_strided_slice %146 {offsets = [1, 0, 0], sizes = [1, 8, 64], strides = [1, 1, 1]} : vector<8x8x64xf32> to vector<1x8x64xf32>
      %164 = vector.shape_cast %163 : vector<1x8x64xf32> to vector<8x64xf32>
      %165 = arith.addf %162, %164 : vector<8x64xf32>
      %166 = vector.extract_strided_slice %147 {offsets = [1, 0, 0], sizes = [1, 8, 1], strides = [1, 1, 1]} : vector<8x8x1xf32> to vector<1x8x1xf32>
      %167 = vector.shape_cast %166 : vector<1x8x1xf32> to vector<8x1xf32>
      %168 = vector.broadcast %167 : vector<8x1xf32> to vector<8x64xf32>
      %169 = arith.mulf %165, %168 : vector<8x64xf32>
      %cst_67 = arith.constant dense<0.000000e+00> : vector<64xf32>
      %170 = vector.multi_reduction <add>, %169, %cst_67 [0] : vector<8x64xf32> to vector<64xf32>
      %171 = vector.shape_cast %170 : vector<64xf32> to vector<1x64xf32>
      %172 = vector.extract_strided_slice %141 {offsets = [2, 0, 0], sizes = [1, 8, 64], strides = [1, 1, 1]} : vector<8x8x64xf32> to vector<1x8x64xf32>
      %173 = vector.shape_cast %172 : vector<1x8x64xf32> to vector<8x64xf32>
      %174 = arith.mulf %173, %165 : vector<8x64xf32>
      %175 = vector.extract_strided_slice %146 {offsets = [2, 0, 0], sizes = [1, 8, 64], strides = [1, 1, 1]} : vector<8x8x64xf32> to vector<1x8x64xf32>
      %176 = vector.shape_cast %175 : vector<1x8x64xf32> to vector<8x64xf32>
      %177 = arith.addf %174, %176 : vector<8x64xf32>
      %178 = vector.extract_strided_slice %147 {offsets = [2, 0, 0], sizes = [1, 8, 1], strides = [1, 1, 1]} : vector<8x8x1xf32> to vector<1x8x1xf32>
      %179 = vector.shape_cast %178 : vector<1x8x1xf32> to vector<8x1xf32>
      %180 = vector.broadcast %179 : vector<8x1xf32> to vector<8x64xf32>
      %181 = arith.mulf %177, %180 : vector<8x64xf32>
      %cst_68 = arith.constant dense<0.000000e+00> : vector<64xf32>
      %182 = vector.multi_reduction <add>, %181, %cst_68 [0] : vector<8x64xf32> to vector<64xf32>
      %183 = vector.shape_cast %182 : vector<64xf32> to vector<1x64xf32>
      %184 = vector.extract_strided_slice %141 {offsets = [3, 0, 0], sizes = [1, 8, 64], strides = [1, 1, 1]} : vector<8x8x64xf32> to vector<1x8x64xf32>
      %185 = vector.shape_cast %184 : vector<1x8x64xf32> to vector<8x64xf32>
      %186 = arith.mulf %185, %177 : vector<8x64xf32>
      %187 = vector.extract_strided_slice %146 {offsets = [3, 0, 0], sizes = [1, 8, 64], strides = [1, 1, 1]} : vector<8x8x64xf32> to vector<1x8x64xf32>
      %188 = vector.shape_cast %187 : vector<1x8x64xf32> to vector<8x64xf32>
      %189 = arith.addf %186, %188 : vector<8x64xf32>
      %190 = vector.extract_strided_slice %147 {offsets = [3, 0, 0], sizes = [1, 8, 1], strides = [1, 1, 1]} : vector<8x8x1xf32> to vector<1x8x1xf32>
      %191 = vector.shape_cast %190 : vector<1x8x1xf32> to vector<8x1xf32>
      %192 = vector.broadcast %191 : vector<8x1xf32> to vector<8x64xf32>
      %193 = arith.mulf %189, %192 : vector<8x64xf32>
      %cst_69 = arith.constant dense<0.000000e+00> : vector<64xf32>
      %194 = vector.multi_reduction <add>, %193, %cst_69 [0] : vector<8x64xf32> to vector<64xf32>
      %195 = vector.shape_cast %194 : vector<64xf32> to vector<1x64xf32>
      %196 = vector.extract_strided_slice %141 {offsets = [4, 0, 0], sizes = [1, 8, 64], strides = [1, 1, 1]} : vector<8x8x64xf32> to vector<1x8x64xf32>
      %197 = vector.shape_cast %196 : vector<1x8x64xf32> to vector<8x64xf32>
      %198 = arith.mulf %197, %189 : vector<8x64xf32>
      %199 = vector.extract_strided_slice %146 {offsets = [4, 0, 0], sizes = [1, 8, 64], strides = [1, 1, 1]} : vector<8x8x64xf32> to vector<1x8x64xf32>
      %200 = vector.shape_cast %199 : vector<1x8x64xf32> to vector<8x64xf32>
      %201 = arith.addf %198, %200 : vector<8x64xf32>
      %202 = vector.extract_strided_slice %147 {offsets = [4, 0, 0], sizes = [1, 8, 1], strides = [1, 1, 1]} : vector<8x8x1xf32> to vector<1x8x1xf32>
      %203 = vector.shape_cast %202 : vector<1x8x1xf32> to vector<8x1xf32>
      %204 = vector.broadcast %203 : vector<8x1xf32> to vector<8x64xf32>
      %205 = arith.mulf %201, %204 : vector<8x64xf32>
      %cst_70 = arith.constant dense<0.000000e+00> : vector<64xf32>
      %206 = vector.multi_reduction <add>, %205, %cst_70 [0] : vector<8x64xf32> to vector<64xf32>
      %207 = vector.shape_cast %206 : vector<64xf32> to vector<1x64xf32>
      %208 = vector.extract_strided_slice %141 {offsets = [5, 0, 0], sizes = [1, 8, 64], strides = [1, 1, 1]} : vector<8x8x64xf32> to vector<1x8x64xf32>
      %209 = vector.shape_cast %208 : vector<1x8x64xf32> to vector<8x64xf32>
      %210 = arith.mulf %209, %201 : vector<8x64xf32>
      %211 = vector.extract_strided_slice %146 {offsets = [5, 0, 0], sizes = [1, 8, 64], strides = [1, 1, 1]} : vector<8x8x64xf32> to vector<1x8x64xf32>
      %212 = vector.shape_cast %211 : vector<1x8x64xf32> to vector<8x64xf32>
      %213 = arith.addf %210, %212 : vector<8x64xf32>
      %214 = vector.extract_strided_slice %147 {offsets = [5, 0, 0], sizes = [1, 8, 1], strides = [1, 1, 1]} : vector<8x8x1xf32> to vector<1x8x1xf32>
      %215 = vector.shape_cast %214 : vector<1x8x1xf32> to vector<8x1xf32>
      %216 = vector.broadcast %215 : vector<8x1xf32> to vector<8x64xf32>
      %217 = arith.mulf %213, %216 : vector<8x64xf32>
      %cst_71 = arith.constant dense<0.000000e+00> : vector<64xf32>
      %218 = vector.multi_reduction <add>, %217, %cst_71 [0] : vector<8x64xf32> to vector<64xf32>
      %219 = vector.shape_cast %218 : vector<64xf32> to vector<1x64xf32>
      %220 = vector.extract_strided_slice %141 {offsets = [6, 0, 0], sizes = [1, 8, 64], strides = [1, 1, 1]} : vector<8x8x64xf32> to vector<1x8x64xf32>
      %221 = vector.shape_cast %220 : vector<1x8x64xf32> to vector<8x64xf32>
      %222 = arith.mulf %221, %213 : vector<8x64xf32>
      %223 = vector.extract_strided_slice %146 {offsets = [6, 0, 0], sizes = [1, 8, 64], strides = [1, 1, 1]} : vector<8x8x64xf32> to vector<1x8x64xf32>
      %224 = vector.shape_cast %223 : vector<1x8x64xf32> to vector<8x64xf32>
      %225 = arith.addf %222, %224 : vector<8x64xf32>
      %226 = vector.extract_strided_slice %147 {offsets = [6, 0, 0], sizes = [1, 8, 1], strides = [1, 1, 1]} : vector<8x8x1xf32> to vector<1x8x1xf32>
      %227 = vector.shape_cast %226 : vector<1x8x1xf32> to vector<8x1xf32>
      %228 = vector.broadcast %227 : vector<8x1xf32> to vector<8x64xf32>
      %229 = arith.mulf %225, %228 : vector<8x64xf32>
      %cst_72 = arith.constant dense<0.000000e+00> : vector<64xf32>
      %230 = vector.multi_reduction <add>, %229, %cst_72 [0] : vector<8x64xf32> to vector<64xf32>
      %231 = vector.shape_cast %230 : vector<64xf32> to vector<1x64xf32>
      %232 = vector.extract_strided_slice %141 {offsets = [7, 0, 0], sizes = [1, 8, 64], strides = [1, 1, 1]} : vector<8x8x64xf32> to vector<1x8x64xf32>
      %233 = vector.shape_cast %232 : vector<1x8x64xf32> to vector<8x64xf32>
      %234 = arith.mulf %233, %225 : vector<8x64xf32>
      %235 = vector.extract_strided_slice %146 {offsets = [7, 0, 0], sizes = [1, 8, 64], strides = [1, 1, 1]} : vector<8x8x64xf32> to vector<1x8x64xf32>
      %236 = vector.shape_cast %235 : vector<1x8x64xf32> to vector<8x64xf32>
      %237 = arith.addf %234, %236 : vector<8x64xf32>
      %238 = vector.extract_strided_slice %147 {offsets = [7, 0, 0], sizes = [1, 8, 1], strides = [1, 1, 1]} : vector<8x8x1xf32> to vector<1x8x1xf32>
      %239 = vector.shape_cast %238 : vector<1x8x1xf32> to vector<8x1xf32>
      %240 = vector.broadcast %239 : vector<8x1xf32> to vector<8x64xf32>
      %241 = arith.mulf %237, %240 : vector<8x64xf32>
      %cst_73 = arith.constant dense<0.000000e+00> : vector<64xf32>
      %242 = vector.multi_reduction <add>, %241, %cst_73 [0] : vector<8x64xf32> to vector<64xf32>
      %243 = vector.shape_cast %242 : vector<64xf32> to vector<1x64xf32>
      %244 = tpu.concatenate %159, %171, %183, %195, %207, %219, %231, %243 in 0 : vector<1x64xf32>, vector<1x64xf32>, vector<1x64xf32>, vector<1x64xf32>, vector<1x64xf32>, vector<1x64xf32>, vector<1x64xf32>, vector<1x64xf32> -> vector<8x64xf32>
      %245 = arith.index_cast %127 : i32 to index
      %c0_74 = arith.constant 0 : index
      %246 = vector.load %arg19[%245, %c0_74] : memref<128x64xf32, #tpu.memory_space<vmem>>, vector<8x64xf32>
      tpu.vector_store %arg19[%245, %c0_74], %244 {strides = array<i32>} : memref<128x64xf32, #tpu.memory_space<vmem>>, vector<8x64xf32>,
      %c8_i32_75 = arith.constant 8 : i32
      %247 = arith.muli %arg20, %c8_i32_75 : i32
      %c64_i32 = arith.constant 64 : i32
      %248 = arith.addi %c64_i32, %247 : i32
      %249 = tpu.assume_multiple %248, 8 : i32
      %250 = arith.index_cast %249 : i32 to index
      %c0_76 = arith.constant 0 : index
      %251 = vector.load %arg13[%250, %c0_76] : memref<128x64xf32, #tpu.memory_space<vmem>>, vector<8x64xf32>
      %252 = arith.index_cast %249 : i32 to index
      %c0_77 = arith.constant 0 : index
      %253 = vector.load %arg14[%252, %c0_77] : memref<128x64xf32, #tpu.memory_space<vmem>>, vector<8x64xf32>
      %254 = arith.index_cast %249 : i32 to index
      %c0_78 = arith.constant 0 : index
      %255 = vector.load %arg15[%254, %c0_78] : memref<128x8xf32, #tpu.memory_space<vmem>>, vector<8x8xf32>
      %256 = arith.index_cast %249 : i32 to index
      %c0_79 = arith.constant 0 : index
      %257 = vector.load %arg16[%256, %c0_79] : memref<128x8xf32, #tpu.memory_space<vmem>>, vector<8x8xf32>
      %258 = vector.shape_cast %251 : vector<8x64xf32> to vector<8x1x64xf32>
      %259 = vector.shape_cast %110 : vector<8x64xf32> to vector<1x8x64xf32>
      %260 = vector.broadcast %258 : vector<8x1x64xf32> to vector<8x8x64xf32>
      %261 = vector.broadcast %259 : vector<1x8x64xf32> to vector<8x8x64xf32>
      %262 = arith.mulf %260, %261 : vector<8x8x64xf32>
      %263 = math.exp %262 : vector<8x8x64xf32>
      %264 = vector.shape_cast %253 : vector<8x64xf32> to vector<8x1x64xf32>
      %265 = vector.shape_cast %255 : vector<8x8xf32> to vector<8x8x1xf32>
      %266 = vector.broadcast %264 : vector<8x1x64xf32> to vector<8x8x64xf32>
      %267 = vector.broadcast %265 : vector<8x8x1xf32> to vector<8x8x64xf32>
      %268 = arith.mulf %266, %267 : vector<8x8x64xf32>
      %269 = vector.shape_cast %257 : vector<8x8xf32> to vector<8x8x1xf32>
      %270 = vector.extract_strided_slice %263 {offsets = [0, 0, 0], sizes = [1, 8, 64], strides = [1, 1, 1]} : vector<8x8x64xf32> to vector<1x8x64xf32>
      %271 = vector.shape_cast %270 : vector<1x8x64xf32> to vector<8x64xf32>
      %272 = arith.mulf %271, %arg22 : vector<8x64xf32>
      %273 = vector.extract_strided_slice %268 {offsets = [0, 0, 0], sizes = [1, 8, 64], strides = [1, 1, 1]} : vector<8x8x64xf32> to vector<1x8x64xf32>
      %274 = vector.shape_cast %273 : vector<1x8x64xf32> to vector<8x64xf32>
      %275 = arith.addf %272, %274 : vector<8x64xf32>
      %276 = vector.extract_strided_slice %269 {offsets = [0, 0, 0], sizes = [1, 8, 1], strides = [1, 1, 1]} : vector<8x8x1xf32> to vector<1x8x1xf32>
      %277 = vector.shape_cast %276 : vector<1x8x1xf32> to vector<8x1xf32>
      %278 = vector.broadcast %277 : vector<8x1xf32> to vector<8x64xf32>
      %279 = arith.mulf %275, %278 : vector<8x64xf32>
      %cst_80 = arith.constant dense<0.000000e+00> : vector<64xf32>
      %280 = vector.multi_reduction <add>, %279, %cst_80 [0] : vector<8x64xf32> to vector<64xf32>
      %281 = vector.shape_cast %280 : vector<64xf32> to vector<1x64xf32>
      %282 = vector.extract_strided_slice %263 {offsets = [1, 0, 0], sizes = [1, 8, 64], strides = [1, 1, 1]} : vector<8x8x64xf32> to vector<1x8x64xf32>
      %283 = vector.shape_cast %282 : vector<1x8x64xf32> to vector<8x64xf32>
      %284 = arith.mulf %283, %275 : vector<8x64xf32>
      %285 = vector.extract_strided_slice %268 {offsets = [1, 0, 0], sizes = [1, 8, 64], strides = [1, 1, 1]} : vector<8x8x64xf32> to vector<1x8x64xf32>
      %286 = vector.shape_cast %285 : vector<1x8x64xf32> to vector<8x64xf32>
      %287 = arith.addf %284, %286 : vector<8x64xf32>
      %288 = vector.extract_strided_slice %269 {offsets = [1, 0, 0], sizes = [1, 8, 1], strides = [1, 1, 1]} : vector<8x8x1xf32> to vector<1x8x1xf32>
      %289 = vector.shape_cast %288 : vector<1x8x1xf32> to vector<8x1xf32>
      %290 = vector.broadcast %289 : vector<8x1xf32> to vector<8x64xf32>
      %291 = arith.mulf %287, %290 : vector<8x64xf32>
      %cst_81 = arith.constant dense<0.000000e+00> : vector<64xf32>
      %292 = vector.multi_reduction <add>, %291, %cst_81 [0] : vector<8x64xf32> to vector<64xf32>
      %293 = vector.shape_cast %292 : vector<64xf32> to vector<1x64xf32>
      %294 = vector.extract_strided_slice %263 {offsets = [2, 0, 0], sizes = [1, 8, 64], strides = [1, 1, 1]} : vector<8x8x64xf32> to vector<1x8x64xf32>
      %295 = vector.shape_cast %294 : vector<1x8x64xf32> to vector<8x64xf32>
      %296 = arith.mulf %295, %287 : vector<8x64xf32>
      %297 = vector.extract_strided_slice %268 {offsets = [2, 0, 0], sizes = [1, 8, 64], strides = [1, 1, 1]} : vector<8x8x64xf32> to vector<1x8x64xf32>
      %298 = vector.shape_cast %297 : vector<1x8x64xf32> to vector<8x64xf32>
      %299 = arith.addf %296, %298 : vector<8x64xf32>
      %300 = vector.extract_strided_slice %269 {offsets = [2, 0, 0], sizes = [1, 8, 1], strides = [1, 1, 1]} : vector<8x8x1xf32> to vector<1x8x1xf32>
      %301 = vector.shape_cast %300 : vector<1x8x1xf32> to vector<8x1xf32>
      %302 = vector.broadcast %301 : vector<8x1xf32> to vector<8x64xf32>
      %303 = arith.mulf %299, %302 : vector<8x64xf32>
      %cst_82 = arith.constant dense<0.000000e+00> : vector<64xf32>
      %304 = vector.multi_reduction <add>, %303, %cst_82 [0] : vector<8x64xf32> to vector<64xf32>
      %305 = vector.shape_cast %304 : vector<64xf32> to vector<1x64xf32>
      %306 = vector.extract_strided_slice %263 {offsets = [3, 0, 0], sizes = [1, 8, 64], strides = [1, 1, 1]} : vector<8x8x64xf32> to vector<1x8x64xf32>
      %307 = vector.shape_cast %306 : vector<1x8x64xf32> to vector<8x64xf32>
      %308 = arith.mulf %307, %299 : vector<8x64xf32>
      %309 = vector.extract_strided_slice %268 {offsets = [3, 0, 0], sizes = [1, 8, 64], strides = [1, 1, 1]} : vector<8x8x64xf32> to vector<1x8x64xf32>
      %310 = vector.shape_cast %309 : vector<1x8x64xf32> to vector<8x64xf32>
      %311 = arith.addf %308, %310 : vector<8x64xf32>
      %312 = vector.extract_strided_slice %269 {offsets = [3, 0, 0], sizes = [1, 8, 1], strides = [1, 1, 1]} : vector<8x8x1xf32> to vector<1x8x1xf32>
      %313 = vector.shape_cast %312 : vector<1x8x1xf32> to vector<8x1xf32>
      %314 = vector.broadcast %313 : vector<8x1xf32> to vector<8x64xf32>
      %315 = arith.mulf %311, %314 : vector<8x64xf32>
      %cst_83 = arith.constant dense<0.000000e+00> : vector<64xf32>
      %316 = vector.multi_reduction <add>, %315, %cst_83 [0] : vector<8x64xf32> to vector<64xf32>
      %317 = vector.shape_cast %316 : vector<64xf32> to vector<1x64xf32>
      %318 = vector.extract_strided_slice %263 {offsets = [4, 0, 0], sizes = [1, 8, 64], strides = [1, 1, 1]} : vector<8x8x64xf32> to vector<1x8x64xf32>
      %319 = vector.shape_cast %318 : vector<1x8x64xf32> to vector<8x64xf32>
      %320 = arith.mulf %319, %311 : vector<8x64xf32>
      %321 = vector.extract_strided_slice %268 {offsets = [4, 0, 0], sizes = [1, 8, 64], strides = [1, 1, 1]} : vector<8x8x64xf32> to vector<1x8x64xf32>
      %322 = vector.shape_cast %321 : vector<1x8x64xf32> to vector<8x64xf32>
      %323 = arith.addf %320, %322 : vector<8x64xf32>
      %324 = vector.extract_strided_slice %269 {offsets = [4, 0, 0], sizes = [1, 8, 1], strides = [1, 1, 1]} : vector<8x8x1xf32> to vector<1x8x1xf32>
      %325 = vector.shape_cast %324 : vector<1x8x1xf32> to vector<8x1xf32>
      %326 = vector.broadcast %325 : vector<8x1xf32> to vector<8x64xf32>
      %327 = arith.mulf %323, %326 : vector<8x64xf32>
      %cst_84 = arith.constant dense<0.000000e+00> : vector<64xf32>
      %328 = vector.multi_reduction <add>, %327, %cst_84 [0] : vector<8x64xf32> to vector<64xf32>
      %329 = vector.shape_cast %328 : vector<64xf32> to vector<1x64xf32>
      %330 = vector.extract_strided_slice %263 {offsets = [5, 0, 0], sizes = [1, 8, 64], strides = [1, 1, 1]} : vector<8x8x64xf32> to vector<1x8x64xf32>
      %331 = vector.shape_cast %330 : vector<1x8x64xf32> to vector<8x64xf32>
      %332 = arith.mulf %331, %323 : vector<8x64xf32>
      %333 = vector.extract_strided_slice %268 {offsets = [5, 0, 0], sizes = [1, 8, 64], strides = [1, 1, 1]} : vector<8x8x64xf32> to vector<1x8x64xf32>
      %334 = vector.shape_cast %333 : vector<1x8x64xf32> to vector<8x64xf32>
      %335 = arith.addf %332, %334 : vector<8x64xf32>
      %336 = vector.extract_strided_slice %269 {offsets = [5, 0, 0], sizes = [1, 8, 1], strides = [1, 1, 1]} : vector<8x8x1xf32> to vector<1x8x1xf32>
      %337 = vector.shape_cast %336 : vector<1x8x1xf32> to vector<8x1xf32>
      %338 = vector.broadcast %337 : vector<8x1xf32> to vector<8x64xf32>
      %339 = arith.mulf %335, %338 : vector<8x64xf32>
      %cst_85 = arith.constant dense<0.000000e+00> : vector<64xf32>
      %340 = vector.multi_reduction <add>, %339, %cst_85 [0] : vector<8x64xf32> to vector<64xf32>
      %341 = vector.shape_cast %340 : vector<64xf32> to vector<1x64xf32>
      %342 = vector.extract_strided_slice %263 {offsets = [6, 0, 0], sizes = [1, 8, 64], strides = [1, 1, 1]} : vector<8x8x64xf32> to vector<1x8x64xf32>
      %343 = vector.shape_cast %342 : vector<1x8x64xf32> to vector<8x64xf32>
      %344 = arith.mulf %343, %335 : vector<8x64xf32>
      %345 = vector.extract_strided_slice %268 {offsets = [6, 0, 0], sizes = [1, 8, 64], strides = [1, 1, 1]} : vector<8x8x64xf32> to vector<1x8x64xf32>
      %346 = vector.shape_cast %345 : vector<1x8x64xf32> to vector<8x64xf32>
      %347 = arith.addf %344, %346 : vector<8x64xf32>
      %348 = vector.extract_strided_slice %269 {offsets = [6, 0, 0], sizes = [1, 8, 1], strides = [1, 1, 1]} : vector<8x8x1xf32> to vector<1x8x1xf32>
      %349 = vector.shape_cast %348 : vector<1x8x1xf32> to vector<8x1xf32>
      %350 = vector.broadcast %349 : vector<8x1xf32> to vector<8x64xf32>
      %351 = arith.mulf %347, %350 : vector<8x64xf32>
      %cst_86 = arith.constant dense<0.000000e+00> : vector<64xf32>
      %352 = vector.multi_reduction <add>, %351, %cst_86 [0] : vector<8x64xf32> to vector<64xf32>
      %353 = vector.shape_cast %352 : vector<64xf32> to vector<1x64xf32>
      %354 = vector.extract_strided_slice %263 {offsets = [7, 0, 0], sizes = [1, 8, 64], strides = [1, 1, 1]} : vector<8x8x64xf32> to vector<1x8x64xf32>
      %355 = vector.shape_cast %354 : vector<1x8x64xf32> to vector<8x64xf32>
      %356 = arith.mulf %355, %347 : vector<8x64xf32>
      %357 = vector.extract_strided_slice %268 {offsets = [7, 0, 0], sizes = [1, 8, 64], strides = [1, 1, 1]} : vector<8x8x64xf32> to vector<1x8x64xf32>
      %358 = vector.shape_cast %357 : vector<1x8x64xf32> to vector<8x64xf32>
      %359 = arith.addf %356, %358 : vector<8x64xf32>
      %360 = vector.extract_strided_slice %269 {offsets = [7, 0, 0], sizes = [1, 8, 1], strides = [1, 1, 1]} : vector<8x8x1xf32> to vector<1x8x1xf32>
      %361 = vector.shape_cast %360 : vector<1x8x1xf32> to vector<8x1xf32>
      %362 = vector.broadcast %361 : vector<8x1xf32> to vector<8x64xf32>
      %363 = arith.mulf %359, %362 : vector<8x64xf32>
      %cst_87 = arith.constant dense<0.000000e+00> : vector<64xf32>
      %364 = vector.multi_reduction <add>, %363, %cst_87 [0] : vector<8x64xf32> to vector<64xf32>
      %365 = vector.shape_cast %364 : vector<64xf32> to vector<1x64xf32>
      %366 = tpu.concatenate %281, %293, %305, %317, %329, %341, %353, %365 in 0 : vector<1x64xf32>, vector<1x64xf32>, vector<1x64xf32>, vector<1x64xf32>, vector<1x64xf32>, vector<1x64xf32>, vector<1x64xf32>, vector<1x64xf32> -> vector<8x64xf32>
      %367 = arith.index_cast %249 : i32 to index
      %c0_88 = arith.constant 0 : index
      %368 = vector.load %arg19[%367, %c0_88] : memref<128x64xf32, #tpu.memory_space<vmem>>, vector<8x64xf32>
      tpu.vector_store %arg19[%367, %c0_88], %366 {strides = array<i32>} : memref<128x64xf32, #tpu.memory_space<vmem>>, vector<8x64xf32>,
      scf.yield %237, %359 : vector<8x64xf32>, vector<8x64xf32>
    }
    %c8_i32_47 = arith.constant 8 : i32
    %c0_48 = arith.constant 0 : index
    %c0_49 = arith.constant 0 : index
    %115 = vector.load %arg19[%c0_48, %c0_49] : memref<128x64xf32, #tpu.memory_space<vmem>>, vector<128x64xf32>
    %c0_50 = arith.constant 0 : index
    %c0_51 = arith.constant 0 : index
    %116 = vector.load %arg17[%c0_50, %c0_51] : memref<128x64xf32, #tpu.memory_space<vmem>>, vector<128x64xf32>
    %117 = arith.addf %115, %116 : vector<128x64xf32>
    %c0_52 = arith.constant 0 : index
    %c0_53 = arith.constant 0 : index
    %118 = vector.load %arg18[%c0_52, %c0_53] : memref<128x64xf32, #tpu.memory_space<vmem>>, vector<128x64xf32>
    %119 = arith.mulf %117, %118 : vector<128x64xf32>
    %120 = arith.truncf %119 : vector<128x64xf32> to vector<128x64xbf16>
    %c0_54 = arith.constant 0 : index
    %c0_55 = arith.constant 0 : index
    %121 = vector.load %arg11[%c0_54, %c0_55] : memref<64x32xbf16, #tpu.memory_space<vmem>>, vector<64x32xbf16>
    %cst_56 = arith.constant dense<0.000000e+00> : vector<128x32xf32>
    %122 = tpu.matmul %120, %121, %cst_56 {dimension_numbers = #tpu.dot_dimension_numbers<[1], [0], [0], [1], [0, 0, 1, 1], [], []>} : vector<128x64xbf16>, vector<64x32xbf16>, vector<128x32xf32> -> vector<128x32xf32>
    %123 = vector.shape_cast %122 : vector<128x32xf32> to vector<2x64x32xf32>
    %c0_57 = arith.constant 0 : index
    %c0_58 = arith.constant 0 : index
    %c0_59 = arith.constant 0 : index
    %124 = vector.load %arg12[%c0_57, %c0_58, %c0_59] : memref<2x64x32xf32, #tpu.memory_space<vmem>>, vector<2x64x32xf32>
    tpu.vector_store %arg12[%c0_57, %c0_58, %c0_59], %123 {strides = array<i32>} : memref<2x64x32xf32, #tpu.memory_space<vmem>>, vector<2x64x32xf32>,
    return
  }
  func.func @transform_0(%arg0: i32) -> (i32, i32, i32) {
    %c0_i32 = arith.constant 0 : i32
    %c0_i32_0 = arith.constant 0 : i32
    %c0_i32_1 = arith.constant 0 : i32
    return %arg0, %c0_i32, %c0_i32_0 : i32, i32, i32
  }
  func.func @transform_1(%arg0: i32) -> (i32, i32) {
    %c0_i32 = arith.constant 0 : i32
    %c0_i32_0 = arith.constant 0 : i32
    %c0_i32_1 = arith.constant 0 : i32
    return %c0_i32, %c0_i32_0 : i32, i32
  }
  func.func @transform_2(%arg0: i32) -> (i32, i32) {
    %c0_i32 = arith.constant 0 : i32
    %c0_i32_0 = arith.constant 0 : i32
    %c0_i32_1 = arith.constant 0 : i32
    return %c0_i32, %c0_i32_0 : i32, i32
  }
  func.func @transform_3(%arg0: i32) -> (i32, i32) {
    %c0_i32 = arith.constant 0 : i32
    %c0_i32_0 = arith.constant 0 : i32
    %c0_i32_1 = arith.constant 0 : i32
    return %c0_i32, %c0_i32_0 : i32, i32
  }
  func.func @transform_4(%arg0: i32) -> (i32, i32) {
    %c0_i32 = arith.constant 0 : i32
    %c0_i32_0 = arith.constant 0 : i32
    %c0_i32_1 = arith.constant 0 : i32
    return %c0_i32, %c0_i32_0 : i32, i32
  }
  func.func @transform_5(%arg0: i32) -> (i32, i32) {
    %c0_i32 = arith.constant 0 : i32
    %c0_i32_0 = arith.constant 0 : i32
    %c0_i32_1 = arith.constant 0 : i32
    return %c0_i32, %c0_i32_0 : i32, i32
  }
  func.func @transform_6(%arg0: i32) -> (i32, i32) {
    %c0_i32 = arith.constant 0 : i32
    %c0_i32_0 = arith.constant 0 : i32
    %c0_i32_1 = arith.constant 0 : i32
    return %c0_i32, %c0_i32_0 : i32, i32
  }
  func.func @transform_7(%arg0: i32) -> (i32, i32) {
    %c0_i32 = arith.constant 0 : i32
    %c0_i32_0 = arith.constant 0 : i32
    %c0_i32_1 = arith.constant 0 : i32
    return %c0_i32, %c0_i32_0 : i32, i32
  }
  func.func @transform_8(%arg0: i32) -> (i32, i32) {
    %c0_i32 = arith.constant 0 : i32
    %c0_i32_0 = arith.constant 0 : i32
    %c0_i32_1 = arith.constant 0 : i32
    return %c0_i32, %c0_i32_0 : i32, i32
  }
  func.func @transform_9(%arg0: i32) -> (i32, i32) {
    %c0_i32 = arith.constant 0 : i32
    %c0_i32_0 = arith.constant 0 : i32
    %c0_i32_1 = arith.constant 0 : i32
    return %c0_i32, %c0_i32_0 : i32, i32
  }
  func.func @transform_10(%arg0: i32) -> (i32, i32) {
    %c0_i32 = arith.constant 0 : i32
    %c0_i32_0 = arith.constant 0 : i32
    %c0_i32_1 = arith.constant 0 : i32
    return %c0_i32, %c0_i32_0 : i32, i32
  }
  func.func @transform_11(%arg0: i32) -> (i32, i32, i32) {
    %c0_i32 = arith.constant 0 : i32
    %c0_i32_0 = arith.constant 0 : i32
    %c0_i32_1 = arith.constant 0 : i32
    return %arg0, %c0_i32, %c0_i32_0 : i32, i32, i32
  }
}

</mosaic_0001>

<llo_original>
// kernel: tpu_custom_call.1
$region0: #{tpu_custom_call.1}
  #allocation0 [shape = 'u32[]', space=smem, size = 0x4, offset = 0x4, fixed_abs, tag = 'smem constant byte address 0x4 - core index']
  #allocation1 [shape = 'u32[72,128]{1,0:T(1,128)}', space=vmem, size = 0x9000, scoped, tag = 'internal scratch']
  #allocation2 [shape = 'f32[128,64]{1,0:T(8,128)}', space=vmem, size = 0x10000, scoped, tag = 'scratch operand']
  #allocation3 [shape = 'f32[128,64]{1,0:T(8,128)}', space=vmem, size = 0x10000, scoped, tag = 'scratch operand']
  #allocation4 [shape = 'f32[128,8]{1,0:T(8,128)}', space=vmem, size = 0x10000, scoped, tag = 'scratch operand']
  #allocation5 [shape = 'f32[128,8]{1,0:T(8,128)}', space=vmem, size = 0x10000, scoped, tag = 'scratch operand']
  #allocation6 [shape = 'f32[128,64]{1,0:T(8,128)}', space=vmem, size = 0x10000, scoped, tag = 'scratch operand']
  #allocation7 [shape = 'f32[128,64]{1,0:T(8,128)}', space=vmem, size = 0x10000, scoped, tag = 'scratch operand']
  #allocation8 [shape = 'f32[128,64]{1,0:T(8,128)}', space=vmem, size = 0x10000, scoped, tag = 'scratch operand']
  %s0 = inlined_call_operand.vmem [shape: f32[4,64,32], index: 0, kind: input, shape index: {}]
  %s1 = inlined_call_operand.vmem [shape: bf16[32,64], index: 1, kind: input, shape index: {}]
  %s2 = inlined_call_operand.vmem [shape: bf16[32,64], index: 2, kind: input, shape index: {}]
  %s3 = inlined_call_operand.vmem [shape: f32[4,64], index: 3, kind: input, shape index: {}]
  %s4 = inlined_call_operand.vmem [shape: f32[1,64], index: 4, kind: input, shape index: {}]
  %s5 = inlined_call_operand.vmem [shape: bf16[64,18], index: 5, kind: input, shape index: {}]
  %s6 = inlined_call_operand.vmem [shape: f32[2,64], index: 6, kind: input, shape index: {}]
  %s7 = inlined_call_operand.vmem [shape: f32[1,64], index: 7, kind: input, shape index: {}]
  %s8 = inlined_call_operand.vmem [shape: f32[8,64], index: 8, kind: input, shape index: {}]
  %s9 = inlined_call_operand.vmem [shape: f32[1,64], index: 9, kind: input, shape index: {}]
  %s10 = inlined_call_operand.vmem [shape: bf16[64,32], index: 10, kind: input, shape index: {}]
  %s11 = inlined_call_operand.vmem [shape: f32[4,64,32], index: 11, kind: output, shape index: {}]
  %s12 = sld [smem:[#allocation0]]
  $region84: #{tpu_custom_call.1} parent=0
    _
  %s14 = ssub.s32 1, %s12
  %s15 = scalar_select 0, %s14, %s12
  loop: start=0, step=1, limit=4
  $region2: #{tpu_custom_call.1} parent=0 // loop_pre_header
    _
  $region3: #{tpu_custom_call.1} parent=0 // loop_header
    %s17 = sphi 0, %s21
    %p18 = scmp.ge.s32.totalorder %s17, 4
    %s27 = sphi 0, %s29
    %s30 = sphi 0, %s27
    %s31 = sphi 0, %s30
    %s47 = sphi 0, %s31
    %s51 = sphi 0, %s51
    %s53 = sphi 0, %s51
    %s54 = sphi 0, %s53
    %s68 = sphi 0, %s54
    %s72 = sphi 0, %s72
    %s74 = sphi 0, %s72
    %s75 = sphi 0, %s74
    %s89 = sphi 0, %s75
    %s93 = sphi 0, %s93
    %s95 = sphi 0, %s93
    %s96 = sphi 0, %s95
    %s110 = sphi 0, %s96
    %s114 = sphi 0, %s114
    %s116 = sphi 0, %s114
    %s117 = sphi 0, %s116
    %s131 = sphi 0, %s117
    %s135 = sphi 0, %s135
    %s137 = sphi 0, %s135
    %s138 = sphi 0, %s137
    %s152 = sphi 0, %s138
    %s156 = sphi 0, %s156
    %s158 = sphi 0, %s156
    %s159 = sphi 0, %s158
    %s173 = sphi 0, %s159
    %s177 = sphi 0, %s177
    %s179 = sphi 0, %s177
    %s180 = sphi 0, %s179
    %s194 = sphi 0, %s180
    %s198 = sphi 0, %s198
    %s200 = sphi 0, %s198
    %s201 = sphi 0, %s200
    %s215 = sphi 0, %s201
    %s219 = sphi 0, %s219
    %s221 = sphi 0, %s219
    %s222 = sphi 0, %s221
    %s236 = sphi 0, %s222
    %s240 = sphi 0, %s240
    %s242 = sphi 0, %s240
    %s243 = sphi 0, %s242
    %s257 = sphi 0, %s243
    %s263 = sphi 0, %s265
    %s266 = sphi 0, %s263
    %s267 = sphi 0, %s266
    %s283 = sphi 0, %s267
  $region4: #{tpu_custom_call.1} parent=0 // loop_header_branch
    %20 = sbr.rel (%p18) target = $region8
  $region5: #{tpu_custom_call.1} parent=0 // loop_body
    %s22 = ssub.s32 %s17, 1
    %s23 = ssub.s32 %s17, 2
    %s24 = sadd.s32 %s17, 1
    %s25 = ssub.s32 %s17, %s24
    %p26 = scmp.eq.s32.totalorder %s25, 0
    %s28 = sadd.s32 %s27, 1
    %s29 = scalar_select %p26, %s27, %s28
    %p32 = pneg %p26
    %p33 = scmp.eq.s32.totalorder %s17, 1
    %p34 = por %p32, %p33
    %p35 = scmp.ne.s32.totalorder %s27, %s30
    %p36 = scmp.eq.s32.totalorder %s17, 0
    %p37 = por %p35, %p36
    %p38 = scmp.ne.s32.totalorder %s27, %s30
    %p39 = scmp.eq.s32.totalorder %s22, 1
    %p40 = por %p38, %p39
    %p41 = scmp.ne.s32.totalorder %s30, %s31
    %p42 = scmp.eq.s32.totalorder %s22, 0
    %p43 = por %p41, %p42
    %p44 = scmp.ne.s32.totalorder %s30, %s31
    %p45 = scmp.eq.s32.totalorder %s23, 1
    %p46 = por %p44, %p45
    %p48 = scmp.ne.s32.totalorder %s31, %s47
    %p49 = scmp.eq.s32.totalorder %s23, 0
    %p50 = por %p48, %p49
    %s52 = sadd.s32 %s51, 1
    %p55 = scmp.eq.s32.totalorder %s17, 1
    %p56 = scmp.ne.s32.totalorder %s51, %s53
    %p57 = scmp.eq.s32.totalorder %s17, 0
    %p58 = por %p56, %p57
    %p59 = scmp.ne.s32.totalorder %s51, %s53
    %p60 = scmp.eq.s32.totalorder %s22, 1
    %p61 = por %p59, %p60
    %p62 = scmp.ne.s32.totalorder %s53, %s54
    %p63 = scmp.eq.s32.totalorder %s22, 0
    %p64 = por %p62, %p63
    %p65 = scmp.ne.s32.totalorder %s53, %s54
    %p66 = scmp.eq.s32.totalorder %s23, 1
    %p67 = por %p65, %p66
    %p69 = scmp.ne.s32.totalorder %s54, %s68
    %p70 = scmp.eq.s32.totalorder %s23, 0
    %p71 = por %p69, %p70
    %s73 = sadd.s32 %s72, 1
    %p76 = scmp.eq.s32.totalorder %s17, 1
    %p77 = scmp.ne.s32.totalorder %s72, %s74
    %p78 = scmp.eq.s32.totalorder %s17, 0
    %p79 = por %p77, %p78
    %p80 = scmp.ne.s32.totalorder %s72, %s74
    %p81 = scmp.eq.s32.totalorder %s22, 1
    %p82 = por %p80, %p81
    %p83 = scmp.ne.s32.totalorder %s74, %s75
    %p84 = scmp.eq.s32.totalorder %s22, 0
    %p85 = por %p83, %p84
    %p86 = scmp.ne.s32.totalorder %s74, %s75
    %p87 = scmp.eq.s32.totalorder %s23, 1
    %p88 = por %p86, %p87
    %p90 = scmp.ne.s32.totalorder %s75, %s89
    %p91 = scmp.eq.s32.totalorder %s23, 0
    %p92 = por %p90, %p91
    %s94 = sadd.s32 %s93, 1
    %p97 = scmp.eq.s32.totalorder %s17, 1
    %p98 = scmp.ne.s32.totalorder %s93, %s95
    %p99 = scmp.eq.s32.totalorder %s17, 0
    %p100 = por %p98, %p99
    %p101 = scmp.ne.s32.totalorder %s93, %s95
    %p102 = scmp.eq.s32.totalorder %s22, 1
    %p103 = por %p101, %p102
    %p104 = scmp.ne.s32.totalorder %s95, %s96
    %p105 = scmp.eq.s32.totalorder %s22, 0
    %p106 = por %p104, %p105
    %p107 = scmp.ne.s32.totalorder %s95, %s96
    %p108 = scmp.eq.s32.totalorder %s23, 1
    %p109 = por %p107, %p108
    %p111 = scmp.ne.s32.totalorder %s96, %s110
    %p112 = scmp.eq.s32.totalorder %s23, 0
    %p113 = por %p111, %p112
    %s115 = sadd.s32 %s114, 1
    %p118 = scmp.eq.s32.totalorder %s17, 1
    %p119 = scmp.ne.s32.totalorder %s114, %s116
    %p120 = scmp.eq.s32.totalorder %s17, 0
    %p121 = por %p119, %p120
    %p122 = scmp.ne.s32.totalorder %s114, %s116
    %p123 = scmp.eq.s32.totalorder %s22, 1
    %p124 = por %p122, %p123
    %p125 = scmp.ne.s32.totalorder %s116, %s117
    %p126 = scmp.eq.s32.totalorder %s22, 0
    %p127 = por %p125, %p126
    %p128 = scmp.ne.s32.totalorder %s116, %s117
    %p129 = scmp.eq.s32.totalorder %s23, 1
    %p130 = por %p128, %p129
    %p132 = scmp.ne.s32.totalorder %s117, %s131
    %p133 = scmp.eq.s32.totalorder %s23, 0
    %p134 = por %p132, %p133
    %s136 = sadd.s32 %s135, 1
    %p139 = scmp.eq.s32.totalorder %s17, 1
    %p140 = scmp.ne.s32.totalorder %s135, %s137
    %p141 = scmp.eq.s32.totalorder %s17, 0
    %p142 = por %p140, %p141
    %p143 = scmp.ne.s32.totalorder %s135, %s137
    %p144 = scmp.eq.s32.totalorder %s22, 1
    %p145 = por %p143, %p144
    %p146 = scmp.ne.s32.totalorder %s137, %s138
    %p147 = scmp.eq.s32.totalorder %s22, 0
    %p148 = por %p146, %p147
    %p149 = scmp.ne.s32.totalorder %s137, %s138
    %p150 = scmp.eq.s32.totalorder %s23, 1
    %p151 = por %p149, %p150
    %p153 = scmp.ne.s32.totalorder %s138, %s152
    %p154 = scmp.eq.s32.totalorder %s23, 0
    %p155 = por %p153, %p154
    %s157 = sadd.s32 %s156, 1
    %p160 = scmp.eq.s32.totalorder %s17, 1
    %p161 = scmp.ne.s32.totalorder %s156, %s158
    %p162 = scmp.eq.s32.totalorder %s17, 0
    %p163 = por %p161, %p162
    %p164 = scmp.ne.s32.totalorder %s156, %s158
    %p165 = scmp.eq.s32.totalorder %s22, 1
    %p166 = por %p164, %p165
    %p167 = scmp.ne.s32.totalorder %s158, %s159
    %p168 = scmp.eq.s32.totalorder %s22, 0
    %p169 = por %p167, %p168
    %p170 = scmp.ne.s32.totalorder %s158, %s159
    %p171 = scmp.eq.s32.totalorder %s23, 1
    %p172 = por %p170, %p171
    %p174 = scmp.ne.s32.totalorder %s159, %s173
    %p175 = scmp.eq.s32.totalorder %s23, 0
    %p176 = por %p174, %p175
    %s178 = sadd.s32 %s177, 1
    %p181 = scmp.eq.s32.totalorder %s17, 1
    %p182 = scmp.ne.s32.totalorder %s177, %s179
    %p183 = scmp.eq.s32.totalorder %s17, 0
    %p184 = por %p182, %p183
    %p185 = scmp.ne.s32.totalorder %s177, %s179
    %p186 = scmp.eq.s32.totalorder %s22, 1
    %p187 = por %p185, %p186
    %p188 = scmp.ne.s32.totalorder %s179, %s180
    %p189 = scmp.eq.s32.totalorder %s22, 0
    %p190 = por %p188, %p189
    %p191 = scmp.ne.s32.totalorder %s179, %s180
    %p192 = scmp.eq.s32.totalorder %s23, 1
    %p193 = por %p191, %p192
    %p195 = scmp.ne.s32.totalorder %s180, %s194
    %p196 = scmp.eq.s32.totalorder %s23, 0
    %p197 = por %p195, %p196
    %s199 = sadd.s32 %s198, 1
    %p202 = scmp.eq.s32.totalorder %s17, 1
    %p203 = scmp.ne.s32.totalorder %s198, %s200
    %p204 = scmp.eq.s32.totalorder %s17, 0
    %p205 = por %p203, %p204
    %p206 = scmp.ne.s32.totalorder %s198, %s200
    %p207 = scmp.eq.s32.totalorder %s22, 1
    %p208 = por %p206, %p207
    %p209 = scmp.ne.s32.totalorder %s200, %s201
    %p210 = scmp.eq.s32.totalorder %s22, 0
    %p211 = por %p209, %p210
    %p212 = scmp.ne.s32.totalorder %s200, %s201
    %p213 = scmp.eq.s32.totalorder %s23, 1
    %p214 = por %p212, %p213
    %p216 = scmp.ne.s32.totalorder %s201, %s215
    %p217 = scmp.eq.s32.totalorder %s23, 0
    %p218 = por %p216, %p217
    %s220 = sadd.s32 %s219, 1
    %p223 = scmp.eq.s32.totalorder %s17, 1
    %p224 = scmp.ne.s32.totalorder %s219, %s221
    %p225 = scmp.eq.s32.totalorder %s17, 0
    %p226 = por %p224, %p225
    %p227 = scmp.ne.s32.totalorder %s219, %s221
    %p228 = scmp.eq.s32.totalorder %s22, 1
    %p229 = por %p227, %p228
    %p230 = scmp.ne.s32.totalorder %s221, %s222
    %p231 = scmp.eq.s32.totalorder %s22, 0
    %p232 = por %p230, %p231
    %p233 = scmp.ne.s32.totalorder %s221, %s222
    %p234 = scmp.eq.s32.totalorder %s23, 1
    %p235 = por %p233, %p234
    %p237 = scmp.ne.s32.totalorder %s222, %s236
    %p238 = scmp.eq.s32.totalorder %s23, 0
    %p239 = por %p237, %p238
    %s241 = sadd.s32 %s240, 1
    %p244 = scmp.eq.s32.totalorder %s17, 1
    %p245 = scmp.ne.s32.totalorder %s240, %s242
    %p246 = scmp.eq.s32.totalorder %s17, 0
    %p247 = por %p245, %p246
    %p248 = scmp.ne.s32.totalorder %s240, %s242
    %p249 = scmp.eq.s32.totalorder %s22, 1
    %p250 = por %p248, %p249
    %p251 = scmp.ne.s32.totalorder %s242, %s243
    %p252 = scmp.eq.s32.totalorder %s22, 0
    %p253 = por %p251, %p252
    %p254 = scmp.ne.s32.totalorder %s242, %s243
    %p255 = scmp.eq.s32.totalorder %s23, 1
    %p256 = por %p254, %p255
    %p258 = scmp.ne.s32.totalorder %s243, %s257
    %p259 = scmp.eq.s32.totalorder %s23, 0
    %p260 = por %p258, %p259
    %s261 = ssub.s32 %s17, %s24
    %p262 = scmp.eq.s32.totalorder %s261, 0
    %s264 = sadd.s32 %s263, 1
    %s265 = scalar_select %p262, %s263, %s264
    %p268 = pneg %p262
    %p269 = scmp.eq.s32.totalorder %s17, 1
    %p270 = por %p268, %p269
    %p271 = scmp.ne.s32.totalorder %s263, %s266
    %p272 = scmp.eq.s32.totalorder %s17, 0
    %p273 = por %p271, %p272
    %p274 = scmp.ne.s32.totalorder %s263, %s266
    %p275 = scmp.eq.s32.totalorder %s22, 1
    %p276 = por %p274, %p275
    %p277 = scmp.ne.s32.totalorder %s266, %s267
    %p278 = scmp.eq.s32.totalorder %s22, 0
    %p279 = por %p277, %p278
    %p280 = scmp.ne.s32.totalorder %s266, %s267
    %p281 = scmp.eq.s32.totalorder %s23, 1
    %p282 = por %p280, %p281
    %p284 = scmp.ne.s32.totalorder %s267, %s283
    %p285 = scmp.eq.s32.totalorder %s23, 0
    %p286 = por %p284, %p285
    %p287 = scmp.le.s32.totalorder 1, %s17
    %p288 = scmp.lt.s32.totalorder %s17, 3
    %p289 = pnand %p287, %p288
    %p290 = pneg %p289
    // Predicated region
    $region9: #{tpu_custom_call.1} parent=5 // pred_check
      _
    $region10: #{tpu_custom_call.1} parent=5 // pred_check_branch
      %292 = sbr.rel (%p289) target = $region12
    $region11: #{tpu_custom_call.1} parent=5 // pred_region
      %s293 = ssub.s32 %s17, 1
      // Predicated region
      $region13: #{tpu_custom_call.1} parent=11 // pred_check
        %p294 = pneg %p64
      $region14: #{tpu_custom_call.1} parent=11 // pred_check_branch
        %296 = sbr.rel (%p294) target = $region16
      $region15: #{tpu_custom_call.1} parent=11 // pred_region
        _
      $region16: #{tpu_custom_call.1} parent=11 // pred_fallthru
        _
      // Predicated region
      $region17: #{tpu_custom_call.1} parent=11 // pred_check
        %p297 = pneg %p85
      $region18: #{tpu_custom_call.1} parent=11 // pred_check_branch
        %299 = sbr.rel (%p297) target = $region20
      $region19: #{tpu_custom_call.1} parent=11 // pred_region
        _
      $region20: #{tpu_custom_call.1} parent=11 // pred_fallthru
        _
      // Predicated region
      $region21: #{tpu_custom_call.1} parent=11 // pred_check
        %p300 = pneg %p106
      $region22: #{tpu_custom_call.1} parent=11 // pred_check_branch
        %302 = sbr.rel (%p300) target = $region24
      $region23: #{tpu_custom_call.1} parent=11 // pred_region
        _
      $region24: #{tpu_custom_call.1} parent=11 // pred_fallthru
        _
      // Predicated region
      $region25: #{tpu_custom_call.1} parent=11 // pred_check
        %p303 = pneg %p127
      $region26: #{tpu_custom_call.1} parent=11 // pred_check_branch
        %305 = sbr.rel (%p303) target = $region28
      $region27: #{tpu_custom_call.1} parent=11 // pred_region
        _
      $region28: #{tpu_custom_call.1} parent=11 // pred_fallthru
        _
      // Predicated region
      $region29: #{tpu_custom_call.1} parent=11 // pred_check
        %p306 = pneg %p148
      $region30: #{tpu_custom_call.1} parent=11 // pred_check_branch
        %308 = sbr.rel (%p306) target = $region32
      $region31: #{tpu_custom_call.1} parent=11 // pred_region
        _
      $region32: #{tpu_custom_call.1} parent=11 // pred_fallthru
        _
      // Predicated region
      $region33: #{tpu_custom_call.1} parent=11 // pred_check
        %p309 = pneg %p169
      $region34: #{tpu_custom_call.1} parent=11 // pred_check_branch
        %311 = sbr.rel (%p309) target = $region36
      $region35: #{tpu_custom_call.1} parent=11 // pred_region
        _
      $region36: #{tpu_custom_call.1} parent=11 // pred_fallthru
        _
      // Predicated region
      $region37: #{tpu_custom_call.1} parent=11 // pred_check
        %p312 = pneg %p190
      $region38: #{tpu_custom_call.1} parent=11 // pred_check_branch
        %314 = sbr.rel (%p312) target = $region40
      $region39: #{tpu_custom_call.1} parent=11 // pred_region
        _
      $region40: #{tpu_custom_call.1} parent=11 // pred_fallthru
        _
      // Predicated region
      $region41: #{tpu_custom_call.1} parent=11 // pred_check
        %p315 = pneg %p211
      $region42: #{tpu_custom_call.1} parent=11 // pred_check_branch
        %317 = sbr.rel (%p315) target = $region44
      $region43: #{tpu_custom_call.1} parent=11 // pred_region
        _
      $region44: #{tpu_custom_call.1} parent=11 // pred_fallthru
        _
      // Predicated region
      $region45: #{tpu_custom_call.1} parent=11 // pred_check
        %p318 = pneg %p232
      $region46: #{tpu_custom_call.1} parent=11 // pred_check_branch
        %320 = sbr.rel (%p318) target = $region48
      $region47: #{tpu_custom_call.1} parent=11 // pred_region
        _
      $region48: #{tpu_custom_call.1} parent=11 // pred_fallthru
        _
      // Predicated region
      $region49: #{tpu_custom_call.1} parent=11 // pred_check
        %p321 = pneg %p253
      $region50: #{tpu_custom_call.1} parent=11 // pred_check_branch
        %323 = sbr.rel (%p321) target = $region52
      $region51: #{tpu_custom_call.1} parent=11 // pred_region
        _
      $region52: #{tpu_custom_call.1} parent=11 // pred_fallthru
        _
    $region12: #{tpu_custom_call.1} parent=5 // pred_fallthru
      _
    %p324 = scmp.lt.s32.totalorder %s17, 2
    // Predicated region
    $region53: #{tpu_custom_call.1} parent=5 // pred_check
      %p325 = pneg %p324
    $region54: #{tpu_custom_call.1} parent=5 // pred_check_branch
      %327 = sbr.rel (%p325) target = $region56
    $region55: #{tpu_custom_call.1} parent=5 // pred_region
      // Predicated region
      $region57: #{tpu_custom_call.1} parent=55 // pred_check
        %p328 = pneg %p37
      $region58: #{tpu_custom_call.1} parent=55 // pred_check_branch
        %330 = sbr.rel (%p328) target = $region60
      $region59: #{tpu_custom_call.1} parent=55 // pred_region
        %s331 = smul.u32 2, %s17
        %p332 = scmp.lt.s32.totalorder %s331, 3
        %s333 = scalar_select %p332, %s331, 3
        %s334 = smul.addr %s333, 8
        %s335 = smul.addr %s334, 8
        %s336 = scalar_lea.vmem %s0, %s335
        %s337 = smul.u32 2, %s17
      $region60: #{tpu_custom_call.1} parent=55 // pred_fallthru
        _
    $region56: #{tpu_custom_call.1} parent=5 // pred_fallthru
      _
    %p338 = scmp.le.s32.totalorder 1, %s17
    %p339 = scmp.lt.s32.totalorder %s17, 3
    %p340 = pnand %p338, %p339
    %p341 = pneg %p340
    // Predicated region
    $region61: #{tpu_custom_call.1} parent=5 // pred_check
      _
    $region62: #{tpu_custom_call.1} parent=5 // pred_check_branch
      %343 = sbr.rel (%p340) target = $region64
    $region63: #{tpu_custom_call.1} parent=5 // pred_region
      %s344 = ssub.s32 %s17, 1
      %s345 = smul.u32 2, %s22
      %p346 = scmp.lt.s32.totalorder %s345, 3
      %s347 = scalar_select %p346, %s345, 3
      %s348 = smul.addr %s347, 8
      %s349 = smul.addr %s348, 8
      %s350 = scalar_lea.vmem %s0, %s349
      %p351 = pneg %p43
      %p352 = pneg %p40
      %p353 = pneg %p64
      %p354 = pneg %p61
      %p355 = pneg %p85
      %p356 = pneg %p82
      %p357 = pneg %p106
      %p358 = pneg %p103
      %p359 = pneg %p127
      %p360 = pneg %p124
      %p361 = pneg %p148
      %p362 = pneg %p145
      %p363 = pneg %p169
      %p364 = pneg %p166
      %p365 = pneg %p190
      %p366 = pneg %p187
      %p367 = pneg %p211
      %p368 = pneg %p208
      %p369 = pneg %p232
      %p370 = pneg %p229
      %p371 = pneg %p253
      %p372 = pneg %p250
      %p373 = pneg %p279
      %p374 = pneg %p276
      %s375 = smul.u32 2, %s22
      %p376 = scmp.lt.s32.totalorder %s375, 3
      %s377 = scalar_select %p376, %s375, 3
      %s378 = smul.addr %s377, 8
      %s379 = smul.addr %s378, 8
      %s380 = scalar_lea.vmem %s11, %s379
      %s381 = smul.u32 2, %s22
      %p382 = scmp.lt.s32.totalorder %s381, 3
      %s383 = scalar_select %p382, %s381, 3
      %s384 = smul.addr %s383, 8
      %s385 = smul.addr %s384, 8
      %s386 = scalar_lea.vmem %s0, %s385
      %s387 = smul.u32 2, %s22
      %s388 = smul.u32 2, %s22
      %p389 = scmp.lt.s32.totalorder %s388, 3
      %s390 = scalar_select %p389, %s388, 3
      %s391 = smul.addr %s390, 8
      %s392 = smul.addr %s391, 8
      %s393 = scalar_lea.vmem %s11, %s392
      %s394 = smul.u32 2, %s22
      %v396 = vld [vmem:[%s386] sm:$0xff]
      %v397 = vld [vmem:[%s386 + $0x8] sm:$0xff]
      %v398 = vld [vmem:[%s386 + $0x10] sm:$0xff]
      %v399 = vld [vmem:[%s386 + $0x18] sm:$0xff]
      %v400 = vld [vmem:[%s386 + $0x20] sm:$0xff]
      %v401 = vld [vmem:[%s386 + $0x28] sm:$0xff]
      %v402 = vld [vmem:[%s386 + $0x30] sm:$0xff]
      %v403 = vld [vmem:[%s386 + $0x38] sm:$0xff]
      %v404 = vld [vmem:[%s386 + $0x40] sm:$0xff]
      %v405 = vld [vmem:[%s386 + $0x48] sm:$0xff]
      %v406 = vld [vmem:[%s386 + $0x50] sm:$0xff]
      %v407 = vld [vmem:[%s386 + $0x58] sm:$0xff]
      %v408 = vld [vmem:[%s386 + $0x60] sm:$0xff]
      %v409 = vld [vmem:[%s386 + $0x68] sm:$0xff]
      %v410 = vld [vmem:[%s386 + $0x70] sm:$0xff]
      %v411 = vld [vmem:[%s386 + $0x78] sm:$0xff]
      %v412 = vpack.c.bf16 %v397, %v396
      %v413 = vpack.c.bf16 %v399, %v398
      %v414 = vpack.c.bf16 %v401, %v400
      %v415 = vpack.c.bf16 %v403, %v402
      %v416 = vpack.c.bf16 %v405, %v404
      %v417 = vpack.c.bf16 %v407, %v406
      %v418 = vpack.c.bf16 %v409, %v408
      %v419 = vpack.c.bf16 %v411, %v410
      %v420 = vld [vmem:[%s1] sm:$0xf]
      %v421 = vld [vmem:[%s1 + $0x4] sm:$0xf]
      %v422 = vld [vmem:[%s1 + $0x8] sm:$0xf]
      %v423 = vld [vmem:[%s1 + $0xc] sm:$0xf]
      %v428 = vunpack.c.l.b16 %v420
      %v429 = vunpack.c.l.b16 %v421
      %v430 = vunpack.c.l.b16 %v422
      %v431 = vunpack.c.l.b16 %v423
      %v432 = vpack.c.b16 %v429, %v428
      %v433 = vpack.c.b16 %v431, %v430
      %vm436 = vcmask 261120
      %v438 = vsel %vm436, %v412, 0
      %v441 = vsel %vm436, %v413, 0
      %v444 = vsel %vm436, %v414, 0
      %v447 = vsel %vm436, %v415, 0
      %v450 = vsel %vm436, %v416, 0
      %v453 = vsel %vm436, %v417, 0
      %v456 = vsel %vm436, %v418, 0
      %v459 = vsel %vm436, %v419, 0
      %461 = vmatpush.bf16.msra.mxu0 0
      %462 = vmatpush.bf16.msra.mxu0 0
      %463 = vmatpush.bf16.msra.mxu0 0
      %464 = vmatpush.bf16.msra.mxu0 0
      %465 = vmatpush.bf16.msra.mxu0 0
      %466 = vmatpush.bf16.msra.mxu0 0
      %467 = vmatpush.bf16.msra.mxu0 %v433
      %468 = vmatpush.bf16.msra.mxu0 %v432
      %469 = vmatmul.bf16.gmra.mxu0 %v438
      %v470 = vpop.f32.mrf.mxu0
      %v471 = vadd.f32 0.0, %v470
      %v472 = vpop.f32.mrf.mxu0
      %v473 = vadd.f32 0.0, %v472
      %474 = vmatmul.bf16.gmra.mxu0 %v441
      %v475 = vpop.f32.mrf.mxu0
      %v476 = vadd.f32 0.0, %v475
      %v477 = vpop.f32.mrf.mxu0
      %v478 = vadd.f32 0.0, %v477
      %479 = vmatmul.bf16.gmra.mxu0 %v444
      %v480 = vpop.f32.mrf.mxu0
      %v481 = vadd.f32 0.0, %v480
      %v482 = vpop.f32.mrf.mxu0
      %v483 = vadd.f32 0.0, %v482
      %484 = vmatmul.bf16.gmra.mxu0 %v447
      %v485 = vpop.f32.mrf.mxu0
      %v486 = vadd.f32 0.0, %v485
      %v487 = vpop.f32.mrf.mxu0
      %v488 = vadd.f32 0.0, %v487
      %489 = vmatmul.bf16.gmra.mxu0 %v450
      %v490 = vpop.f32.mrf.mxu0
      %v491 = vadd.f32 0.0, %v490
      %v492 = vpop.f32.mrf.mxu0
      %v493 = vadd.f32 0.0, %v492
      %494 = vmatmul.bf16.gmra.mxu0 %v453
      %v495 = vpop.f32.mrf.mxu0
      %v496 = vadd.f32 0.0, %v495
      %v497 = vpop.f32.mrf.mxu0
      %v498 = vadd.f32 0.0, %v497
      %499 = vmatmul.bf16.gmra.mxu0 %v456
      %v500 = vpop.f32.mrf.mxu0
      %v501 = vadd.f32 0.0, %v500
      %v502 = vpop.f32.mrf.mxu0
      %v503 = vadd.f32 0.0, %v502
      %504 = vmatmul.bf16.gmra.mxu0 %v459
      %v505 = vpop.f32.mrf.mxu0
      %v506 = vadd.f32 0.0, %v505
      %v507 = vpop.f32.mrf.mxu0
      %v508 = vadd.f32 0.0, %v507
      %509 = vdwg.mxu0
      %v510 = vld [vmem:[%s2] sm:$0xf]
      %v511 = vld [vmem:[%s2 + $0x4] sm:$0xf]
      %v512 = vld [vmem:[%s2 + $0x8] sm:$0xf]
      %v513 = vld [vmem:[%s2 + $0xc] sm:$0xf]
      %v518 = vunpack.c.l.b16 %v510
      %v519 = vunpack.c.l.b16 %v511
      %v520 = vunpack.c.l.b16 %v512
      %v521 = vunpack.c.l.b16 %v513
      %v522 = vpack.c.b16 %v519, %v518
      %v523 = vpack.c.b16 %v521, %v520
      %526 = vmatpush.bf16.msra.mxu0 0
      %527 = vmatpush.bf16.msra.mxu0 0
      %528 = vmatpush.bf16.msra.mxu0 0
      %529 = vmatpush.bf16.msra.mxu0 0
      %530 = vmatpush.bf16.msra.mxu0 0
      %531 = vmatpush.bf16.msra.mxu0 0
      %532 = vmatpush.bf16.msra.mxu0 %v523
      %533 = vmatpush.bf16.msra.mxu0 %v522
      %534 = vmatmul.bf16.gmra.mxu0 %v438
      %v535 = vpop.f32.mrf.mxu0
      %v536 = vadd.f32 0.0, %v535
      %v537 = vpop.f32.mrf.mxu0
      %v538 = vadd.f32 0.0, %v537
      %539 = vmatmul.bf16.gmra.mxu0 %v441
      %v540 = vpop.f32.mrf.mxu0
      %v541 = vadd.f32 0.0, %v540
      %v542 = vpop.f32.mrf.mxu0
      %v543 = vadd.f32 0.0, %v542
      %544 = vmatmul.bf16.gmra.mxu0 %v444
      %v545 = vpop.f32.mrf.mxu0
      %v546 = vadd.f32 0.0, %v545
      %v547 = vpop.f32.mrf.mxu0
      %v548 = vadd.f32 0.0, %v547
      %549 = vmatmul.bf16.gmra.mxu0 %v447
      %v550 = vpop.f32.mrf.mxu0
      %v551 = vadd.f32 0.0, %v550
      %v552 = vpop.f32.mrf.mxu0
      %v553 = vadd.f32 0.0, %v552
      %554 = vmatmul.bf16.gmra.mxu0 %v450
      %v555 = vpop.f32.mrf.mxu0
      %v556 = vadd.f32 0.0, %v555
      %v557 = vpop.f32.mrf.mxu0
      %v558 = vadd.f32 0.0, %v557
      %559 = vmatmul.bf16.gmra.mxu0 %v453
      %v560 = vpop.f32.mrf.mxu0
      %v561 = vadd.f32 0.0, %v560
      %v562 = vpop.f32.mrf.mxu0
      %v563 = vadd.f32 0.0, %v562
      %564 = vmatmul.bf16.gmra.mxu0 %v456
      %v565 = vpop.f32.mrf.mxu0
      %v566 = vadd.f32 0.0, %v565
      %v567 = vpop.f32.mrf.mxu0
      %v568 = vadd.f32 0.0, %v567
      %569 = vmatmul.bf16.gmra.mxu0 %v459
      %v570 = vpop.f32.mrf.mxu0
      %v571 = vadd.f32 0.0, %v570
      %v572 = vpop.f32.mrf.mxu0
      %v573 = vadd.f32 0.0, %v572
      %574 = vdwg.mxu0
      %v575 = vxor.u32 %v536, 2147483648
      %v576 = vxor.u32 %v538, 2147483648
      %v577 = vxor.u32 %v541, 2147483648
      %v578 = vxor.u32 %v543, 2147483648
      %v579 = vxor.u32 %v546, 2147483648
      %v580 = vxor.u32 %v548, 2147483648
      %v581 = vxor.u32 %v551, 2147483648
      %v582 = vxor.u32 %v553, 2147483648
      %v583 = vxor.u32 %v556, 2147483648
      %v584 = vxor.u32 %v558, 2147483648
      %v585 = vxor.u32 %v561, 2147483648
      %v586 = vxor.u32 %v563, 2147483648
      %v587 = vxor.u32 %v566, 2147483648
      %v588 = vxor.u32 %v568, 2147483648
      %v589 = vxor.u32 %v571, 2147483648
      %v590 = vxor.u32 %v573, 2147483648
      %v591 = vmul.f32 %v575, 1.442695
      %v592 = vpow.pop %v591
      %v593 = vmul.f32 %v576, 1.442695
      %v594 = vpow.pop %v593
      %v595 = vmul.f32 %v577, 1.442695
      %v596 = vpow.pop %v595
      %v597 = vmul.f32 %v578, 1.442695
      %v598 = vpow.pop %v597
      %v599 = vmul.f32 %v579, 1.442695
      %v600 = vpow.pop %v599
      %v601 = vmul.f32 %v580, 1.442695
      %v602 = vpow.pop %v601
      %v603 = vmul.f32 %v581, 1.442695
      %v604 = vpow.pop %v603
      %v605 = vmul.f32 %v582, 1.442695
      %v606 = vpow.pop %v605
      %v607 = vmul.f32 %v583, 1.442695
      %v608 = vpow.pop %v607
      %v609 = vmul.f32 %v584, 1.442695
      %v610 = vpow.pop %v609
      %v611 = vmul.f32 %v585, 1.442695
      %v612 = vpow.pop %v611
      %v613 = vmul.f32 %v586, 1.442695
      %v614 = vpow.pop %v613
      %v615 = vmul.f32 %v587, 1.442695
      %v616 = vpow.pop %v615
      %v617 = vmul.f32 %v588, 1.442695
      %v618 = vpow.pop %v617
      %v619 = vmul.f32 %v589, 1.442695
      %v620 = vpow.pop %v619
      %v621 = vmul.f32 %v590, 1.442695
      %v622 = vpow.pop %v621
      %v623 = vadd.f32 %v592, 1.0
      %v624 = vadd.f32 %v594, 1.0
      %v625 = vadd.f32 %v596, 1.0
      %v626 = vadd.f32 %v598, 1.0
      %v627 = vadd.f32 %v600, 1.0
      %v628 = vadd.f32 %v602, 1.0
      %v629 = vadd.f32 %v604, 1.0
      %v630 = vadd.f32 %v606, 1.0
      %v631 = vadd.f32 %v608, 1.0
      %v632 = vadd.f32 %v610, 1.0
      %v633 = vadd.f32 %v612, 1.0
      %v634 = vadd.f32 %v614, 1.0
      %v635 = vadd.f32 %v616, 1.0
      %v636 = vadd.f32 %v618, 1.0
      %v637 = vadd.f32 %v620, 1.0
      %v638 = vadd.f32 %v622, 1.0
      %v639 = vrcp.pop %v623
      %v640 = vmul.f32 %v623, %v639
      %v641 = vsub.f32 1.0, %v640
      %v642 = vmul.f32 %v639, %v641
      %v643 = vadd.f32 %v639, %v642
      %vm644 = vweird.f32 %v623
      %vm645 = vweird.f32 %v639
      %vm646 = vmor %vm644, %vm645
      %v647 = vsel %vm646, %v639, %v643
      %v648 = vand.u32 2147483647, %v623
      %vm649 = vcmp.eq.f32.partialorder %v648, 8.507059e+37
      %v650 = vand.u32 %v623, 2147483648
      %v651 = vor.u32 1.1754944e-38, %v650
      %v652 = vsel %vm649, %v651, %v647
      %v653 = vmul.f32 1.0, %v652
      %v654 = vrcp.pop %v624
      %v655 = vmul.f32 %v624, %v654
      %v656 = vsub.f32 1.0, %v655
      %v657 = vmul.f32 %v654, %v656
      %v658 = vadd.f32 %v654, %v657
      %vm659 = vweird.f32 %v624
      %vm660 = vweird.f32 %v654
      %vm661 = vmor %vm659, %vm660
      %v662 = vsel %vm661, %v654, %v658
      %v663 = vand.u32 2147483647, %v624
      %vm664 = vcmp.eq.f32.partialorder %v663, 8.507059e+37
      %v665 = vand.u32 %v624, 2147483648
      %v666 = vor.u32 1.1754944e-38, %v665
      %v667 = vsel %vm664, %v666, %v662
      %v668 = vmul.f32 1.0, %v667
      %v669 = vrcp.pop %v625
      %v670 = vmul.f32 %v625, %v669
      %v671 = vsub.f32 1.0, %v670
      %v672 = vmul.f32 %v669, %v671
      %v673 = vadd.f32 %v669, %v672
      %vm674 = vweird.f32 %v625
      %vm675 = vweird.f32 %v669
      %vm676 = vmor %vm674, %vm675
      %v677 = vsel %vm676, %v669, %v673
      %v678 = vand.u32 2147483647, %v625
      %vm679 = vcmp.eq.f32.partialorder %v678, 8.507059e+37
      %v680 = vand.u32 %v625, 2147483648
      %v681 = vor.u32 1.1754944e-38, %v680
      %v682 = vsel %vm679, %v681, %v677
      %v683 = vmul.f32 1.0, %v682
      %v684 = vrcp.pop %v626
      %v685 = vmul.f32 %v626, %v684
      %v686 = vsub.f32 1.0, %v685
      %v687 = vmul.f32 %v684, %v686
      %v688 = vadd.f32 %v684, %v687
      %vm689 = vweird.f32 %v626
      %vm690 = vweird.f32 %v684
      %vm691 = vmor %vm689, %vm690
      %v692 = vsel %vm691, %v684, %v688
      %v693 = vand.u32 2147483647, %v626
      %vm694 = vcmp.eq.f32.partialorder %v693, 8.507059e+37
      %v695 = vand.u32 %v626, 2147483648
      %v696 = vor.u32 1.1754944e-38, %v695
      %v697 = vsel %vm694, %v696, %v692
      %v698 = vmul.f32 1.0, %v697
      %v699 = vrcp.pop %v627
      %v700 = vmul.f32 %v627, %v699
      %v701 = vsub.f32 1.0, %v700
      %v702 = vmul.f32 %v699, %v701
      %v703 = vadd.f32 %v699, %v702
      %vm704 = vweird.f32 %v627
      %vm705 = vweird.f32 %v699
      %vm706 = vmor %vm704, %vm705
      %v707 = vsel %vm706, %v699, %v703
      %v708 = vand.u32 2147483647, %v627
      %vm709 = vcmp.eq.f32.partialorder %v708, 8.507059e+37
      %v710 = vand.u32 %v627, 2147483648
      %v711 = vor.u32 1.1754944e-38, %v710
      %v712 = vsel %vm709, %v711, %v707
      %v713 = vmul.f32 1.0, %v712
      %v714 = vrcp.pop %v628
      %v715 = vmul.f32 %v628, %v714
      %v716 = vsub.f32 1.0, %v715
      %v717 = vmul.f32 %v714, %v716
      %v718 = vadd.f32 %v714, %v717
      %vm719 = vweird.f32 %v628
      %vm720 = vweird.f32 %v714
      %vm721 = vmor %vm719, %vm720
      %v722 = vsel %vm721, %v714, %v718
      %v723 = vand.u32 2147483647, %v628
      %vm724 = vcmp.eq.f32.partialorder %v723, 8.507059e+37
      %v725 = vand.u32 %v628, 2147483648
      %v726 = vor.u32 1.1754944e-38, %v725
      %v727 = vsel %vm724, %v726, %v722
      %v728 = vmul.f32 1.0, %v727
      %v729 = vrcp.pop %v629
      %v730 = vmul.f32 %v629, %v729
      %v731 = vsub.f32 1.0, %v730
      %v732 = vmul.f32 %v729, %v731
      %v733 = vadd.f32 %v729, %v732
      %vm734 = vweird.f32 %v629
      %vm735 = vweird.f32 %v729
      %vm736 = vmor %vm734, %vm735
      %v737 = vsel %vm736, %v729, %v733
      %v738 = vand.u32 2147483647, %v629
      %vm739 = vcmp.eq.f32.partialorder %v738, 8.507059e+37
      %v740 = vand.u32 %v629, 2147483648
      %v741 = vor.u32 1.1754944e-38, %v740
      %v742 = vsel %vm739, %v741, %v737
      %v743 = vmul.f32 1.0, %v742
      %v744 = vrcp.pop %v630
      %v745 = vmul.f32 %v630, %v744
      %v746 = vsub.f32 1.0, %v745
      %v747 = vmul.f32 %v744, %v746
      %v748 = vadd.f32 %v744, %v747
      %vm749 = vweird.f32 %v630
      %vm750 = vweird.f32 %v744
      %vm751 = vmor %vm749, %vm750
      %v752 = vsel %vm751, %v744, %v748
      %v753 = vand.u32 2147483647, %v630
      %vm754 = vcmp.eq.f32.partialorder %v753, 8.507059e+37
      %v755 = vand.u32 %v630, 2147483648
      %v756 = vor.u32 1.1754944e-38, %v755
      %v757 = vsel %vm754, %v756, %v752
      %v758 = vmul.f32 1.0, %v757
      %v759 = vrcp.pop %v631
      %v760 = vmul.f32 %v631, %v759
      %v761 = vsub.f32 1.0, %v760
      %v762 = vmul.f32 %v759, %v761
      %v763 = vadd.f32 %v759, %v762
      %vm764 = vweird.f32 %v631
      %vm765 = vweird.f32 %v759
      %vm766 = vmor %vm764, %vm765
      %v767 = vsel %vm766, %v759, %v763
      %v768 = vand.u32 2147483647, %v631
      %vm769 = vcmp.eq.f32.partialorder %v768, 8.507059e+37
      %v770 = vand.u32 %v631, 2147483648
      %v771 = vor.u32 1.1754944e-38, %v770
      %v772 = vsel %vm769, %v771, %v767
      %v773 = vmul.f32 1.0, %v772
      %v774 = vrcp.pop %v632
      %v775 = vmul.f32 %v632, %v774
      %v776 = vsub.f32 1.0, %v775
      %v777 = vmul.f32 %v774, %v776
      %v778 = vadd.f32 %v774, %v777
      %vm779 = vweird.f32 %v632
      %vm780 = vweird.f32 %v774
      %vm781 = vmor %vm779, %vm780
      %v782 = vsel %vm781, %v774, %v778
      %v783 = vand.u32 2147483647, %v632
      %vm784 = vcmp.eq.f32.partialorder %v783, 8.507059e+37
      %v785 = vand.u32 %v632, 2147483648
      %v786 = vor.u32 1.1754944e-38, %v785
      %v787 = vsel %vm784, %v786, %v782
      %v788 = vmul.f32 1.0, %v787
      %v789 = vrcp.pop %v633
      %v790 = vmul.f32 %v633, %v789
      %v791 = vsub.f32 1.0, %v790
      %v792 = vmul.f32 %v789, %v791
      %v793 = vadd.f32 %v789, %v792
      %vm794 = vweird.f32 %v633
      %vm795 = vweird.f32 %v789
      %vm796 = vmor %vm794, %vm795
      %v797 = vsel %vm796, %v789, %v793
      %v798 = vand.u32 2147483647, %v633
      %vm799 = vcmp.eq.f32.partialorder %v798, 8.507059e+37
      %v800 = vand.u32 %v633, 2147483648
      %v801 = vor.u32 1.1754944e-38, %v800
      %v802 = vsel %vm799, %v801, %v797
      %v803 = vmul.f32 1.0, %v802
      %v804 = vrcp.pop %v634
      %v805 = vmul.f32 %v634, %v804
      %v806 = vsub.f32 1.0, %v805
      %v807 = vmul.f32 %v804, %v806
      %v808 = vadd.f32 %v804, %v807
      %vm809 = vweird.f32 %v634
      %vm810 = vweird.f32 %v804
      %vm811 = vmor %vm809, %vm810
      %v812 = vsel %vm811, %v804, %v808
      %v813 = vand.u32 2147483647, %v634
      %vm814 = vcmp.eq.f32.partialorder %v813, 8.507059e+37
      %v815 = vand.u32 %v634, 2147483648
      %v816 = vor.u32 1.1754944e-38, %v815
      %v817 = vsel %vm814, %v816, %v812
      %v818 = vmul.f32 1.0, %v817
      %v819 = vrcp.pop %v635
      %v820 = vmul.f32 %v635, %v819
      %v821 = vsub.f32 1.0, %v820
      %v822 = vmul.f32 %v819, %v821
      %v823 = vadd.f32 %v819, %v822
      %vm824 = vweird.f32 %v635
      %vm825 = vweird.f32 %v819
      %vm826 = vmor %vm824, %vm825
      %v827 = vsel %vm826, %v819, %v823
      %v828 = vand.u32 2147483647, %v635
      %vm829 = vcmp.eq.f32.partialorder %v828, 8.507059e+37
      %v830 = vand.u32 %v635, 2147483648
      %v831 = vor.u32 1.1754944e-38, %v830
      %v832 = vsel %vm829, %v831, %v827
      %v833 = vmul.f32 1.0, %v832
      %v834 = vrcp.pop %v636
      %v835 = vmul.f32 %v636, %v834
      %v836 = vsub.f32 1.0, %v835
      %v837 = vmul.f32 %v834, %v836
      %v838 = vadd.f32 %v834, %v837
      %vm839 = vweird.f32 %v636
      %vm840 = vweird.f32 %v834
      %vm841 = vmor %vm839, %vm840
      %v842 = vsel %vm841, %v834, %v838
      %v843 = vand.u32 2147483647, %v636
      %vm844 = vcmp.eq.f32.partialorder %v843, 8.507059e+37
      %v845 = vand.u32 %v636, 2147483648
      %v846 = vor.u32 1.1754944e-38, %v845
      %v847 = vsel %vm844, %v846, %v842
      %v848 = vmul.f32 1.0, %v847
      %v849 = vrcp.pop %v637
      %v850 = vmul.f32 %v637, %v849
      %v851 = vsub.f32 1.0, %v850
      %v852 = vmul.f32 %v849, %v851
      %v853 = vadd.f32 %v849, %v852
      %vm854 = vweird.f32 %v637
      %vm855 = vweird.f32 %v849
      %vm856 = vmor %vm854, %vm855
      %v857 = vsel %vm856, %v849, %v853
      %v858 = vand.u32 2147483647, %v637
      %vm859 = vcmp.eq.f32.partialorder %v858, 8.507059e+37
      %v860 = vand.u32 %v637, 2147483648
      %v861 = vor.u32 1.1754944e-38, %v860
      %v862 = vsel %vm859, %v861, %v857
      %v863 = vmul.f32 1.0, %v862
      %v864 = vrcp.pop %v638
      %v865 = vmul.f32 %v638, %v864
      %v866 = vsub.f32 1.0, %v865
      %v867 = vmul.f32 %v864, %v866
      %v868 = vadd.f32 %v864, %v867
      %vm869 = vweird.f32 %v638
      %vm870 = vweird.f32 %v864
      %vm871 = vmor %vm869, %vm870
      %v872 = vsel %vm871, %v864, %v868
      %v873 = vand.u32 2147483647, %v638
      %vm874 = vcmp.eq.f32.partialorder %v873, 8.507059e+37
      %v875 = vand.u32 %v638, 2147483648
      %v876 = vor.u32 1.1754944e-38, %v875
      %v877 = vsel %vm874, %v876, %v872
      %v878 = vmul.f32 1.0, %v877
      %v879 = vmul.f32 %v536, %v653
      %v880 = vmul.f32 %v538, %v668
      %v881 = vmul.f32 %v541, %v683
      %v882 = vmul.f32 %v543, %v698
      %v883 = vmul.f32 %v546, %v713
      %v884 = vmul.f32 %v548, %v728
      %v885 = vmul.f32 %v551, %v743
      %v886 = vmul.f32 %v553, %v758
      %v887 = vmul.f32 %v556, %v773
      %v888 = vmul.f32 %v558, %v788
      %v889 = vmul.f32 %v561, %v803
      %v890 = vmul.f32 %v563, %v818
      %v891 = vmul.f32 %v566, %v833
      %v892 = vmul.f32 %v568, %v848
      %v893 = vmul.f32 %v571, %v863
      %v894 = vmul.f32 %v573, %v878
      %vm895 = vcmask 523264
      %896 = vst.msk [vmem:[#allocation7] sm:$0xff] %vm895, %v879
      %897 = vst.msk [vmem:[#allocation7 + $0x8] sm:$0xff] %vm895, %v880
      %898 = vst.msk [vmem:[#allocation7 + $0x10] sm:$0xff] %vm895, %v881
      %899 = vst.msk [vmem:[#allocation7 + $0x18] sm:$0xff] %vm895, %v882
      %900 = vst.msk [vmem:[#allocation7 + $0x20] sm:$0xff] %vm895, %v883
      %901 = vst.msk [vmem:[#allocation7 + $0x28] sm:$0xff] %vm895, %v884
      %902 = vst.msk [vmem:[#allocation7 + $0x30] sm:$0xff] %vm895, %v885
      %903 = vst.msk [vmem:[#allocation7 + $0x38] sm:$0xff] %vm895, %v886
      %904 = vst.msk [vmem:[#allocation7 + $0x40] sm:$0xff] %vm895, %v887
      %905 = vst.msk [vmem:[#allocation7 + $0x48] sm:$0xff] %vm895, %v888
      %906 = vst.msk [vmem:[#allocation7 + $0x50] sm:$0xff] %vm895, %v889
      %907 = vst.msk [vmem:[#allocation7 + $0x58] sm:$0xff] %vm895, %v890
      %908 = vst.msk [vmem:[#allocation7 + $0x60] sm:$0xff] %vm895, %v891
      %909 = vst.msk [vmem:[#allocation7 + $0x68] sm:$0xff] %vm895, %v892
      %910 = vst.msk [vmem:[#allocation7 + $0x70] sm:$0xff] %vm895, %v893
      %911 = vst.msk [vmem:[#allocation7 + $0x78] sm:$0xff] %vm895, %v894
      %v912 = vld [vmem:[%s3] sm:$0xf]
      %v913 = vlaneseq
      %v914 = vshrl.u32 %v913, 7
      %v915 = vadd.s32 %v914, 8
      %v916 = vadd.s32 %v914, 16
      %v917 = vadd.s32 %v914, 24
      %v918 = vadd.s32 %v914, 32
      %v919 = vadd.s32 %v914, 40
      %v920 = vadd.s32 %v914, 48
      %v921 = vadd.s32 %v914, 56
      %v922 = vld [vmem:[%s4] sm:$0x1]
      %v924 = vperm.slane %v922, 0
      %vm926 = vcmp.ge.s32.totalorder %v914, 3
      %vm927 = vcmp.ge.s32.totalorder %v915, 3
      %vm928 = vcmp.ge.s32.totalorder %v916, 3
      %vm929 = vcmp.ge.s32.totalorder %v917, 3
      %vm930 = vcmp.ge.s32.totalorder %v918, 3
      %vm931 = vcmp.ge.s32.totalorder %v919, 3
      %vm932 = vcmp.ge.s32.totalorder %v920, 3
      %vm933 = vcmp.ge.s32.totalorder %v921, 3
      %v934 = vrot.slane %v471, 5
      %v935 = vrot.slane %v473, 5
      %v936 = vrot.slane %v476, 5
      %v937 = vrot.slane %v478, 5
      %v938 = vrot.slane %v481, 5
      %v939 = vrot.slane %v483, 5
      %v940 = vrot.slane %v486, 5
      %v941 = vrot.slane %v488, 5
      %v942 = vrot.slane %v491, 5
      %v943 = vrot.slane %v493, 5
      %v944 = vrot.slane %v496, 5
      %v945 = vrot.slane %v498, 5
      %v946 = vrot.slane %v501, 5
      %v947 = vrot.slane %v503, 5
      %v948 = vrot.slane %v506, 5
      %v949 = vrot.slane %v508, 5
      %vm950 = vcmp.lt.s32.totalorder %v914, 3
      %v951 = vsel %vm950, %v948, %v949
      %v952 = vsel %vm950, %v947, %v948
      %v953 = vsel %vm950, %v946, %v947
      %v954 = vsel %vm950, %v945, %v946
      %v955 = vsel %vm950, %v944, %v945
      %v956 = vsel %vm950, %v943, %v944
      %v957 = vsel %vm950, %v942, %v943
      %v958 = vsel %vm950, %v941, %v942
      %v959 = vsel %vm950, %v940, %v941
      %v960 = vsel %vm950, %v939, %v940
      %v961 = vsel %vm950, %v938, %v939
      %v962 = vsel %vm950, %v937, %v938
      %v963 = vsel %vm950, %v936, %v937
      %v964 = vsel %vm950, %v935, %v936
      %v965 = vsel %vm950, %v934, %v935
      %v966 = vsel %vm950, %v949, %v934
      %v967 = vsel %vm926, %v966, 0.0
      %v968 = vsel %vm927, %v965, 0.0
      %v969 = vsel %vm928, %v964, 0.0
      %v970 = vsel %vm929, %v963, 0.0
      %v971 = vsel %vm930, %v962, 0.0
      %v972 = vsel %vm931, %v961, 0.0
      %v973 = vsel %vm932, %v960, 0.0
      %v974 = vsel %vm933, %v959, 0.0
      %v975 = vsel %vm926, %v958, 0.0
      %v976 = vsel %vm927, %v957, 0.0
      %v977 = vsel %vm928, %v956, 0.0
      %v978 = vsel %vm929, %v955, 0.0
      %v979 = vsel %vm930, %v954, 0.0
      %v980 = vsel %vm931, %v953, 0.0
      %v981 = vsel %vm932, %v952, 0.0
      %v982 = vsel %vm933, %v951, 0.0
      %v983 = vperm.slane %v912, 0
      %v984 = vmul.f32 %v967, %v983
      %v985 = vmul.f32 %v968, %v983
      %v986 = vmul.f32 %v969, %v983
      %v987 = vmul.f32 %v970, %v983
      %v988 = vmul.f32 %v971, %v983
      %v989 = vmul.f32 %v972, %v983
      %v990 = vmul.f32 %v973, %v983
      %v991 = vmul.f32 %v974, %v983
      %v992 = vmul.f32 %v975, %v983
      %v993 = vmul.f32 %v976, %v983
      %v994 = vmul.f32 %v977, %v983
      %v995 = vmul.f32 %v978, %v983
      %v996 = vmul.f32 %v979, %v983
      %v997 = vmul.f32 %v980, %v983
      %v998 = vmul.f32 %v981, %v983
      %v999 = vmul.f32 %v982, %v983
      %v1000 = vadd.f32 %v924, %v984
      %v1001 = vadd.f32 %v924, %v985
      %v1002 = vadd.f32 %v924, %v986
      %v1003 = vadd.f32 %v924, %v987
      %v1004 = vadd.f32 %v924, %v988
      %v1005 = vadd.f32 %v924, %v989
      %v1006 = vadd.f32 %v924, %v990
      %v1007 = vadd.f32 %v924, %v991
      %v1008 = vadd.f32 %v924, %v992
      %v1009 = vadd.f32 %v924, %v993
      %v1010 = vadd.f32 %v924, %v994
      %v1011 = vadd.f32 %v924, %v995
      %v1012 = vadd.f32 %v924, %v996
      %v1013 = vadd.f32 %v924, %v997
      %v1014 = vadd.f32 %v924, %v998
      %v1015 = vadd.f32 %v924, %v999
      %vm1016 = vcmp.ge.s32.totalorder %v914, 2
      %vm1017 = vcmp.ge.s32.totalorder %v915, 2
      %vm1018 = vcmp.ge.s32.totalorder %v916, 2
      %vm1019 = vcmp.ge.s32.totalorder %v917, 2
      %vm1020 = vcmp.ge.s32.totalorder %v918, 2
      %vm1021 = vcmp.ge.s32.totalorder %v919, 2
      %vm1022 = vcmp.ge.s32.totalorder %v920, 2
      %vm1023 = vcmp.ge.s32.totalorder %v921, 2
      %v1024 = vrot.slane %v471, 6
      %v1025 = vrot.slane %v473, 6
      %v1026 = vrot.slane %v476, 6
      %v1027 = vrot.slane %v478, 6
      %v1028 = vrot.slane %v481, 6
      %v1029 = vrot.slane %v483, 6
      %v1030 = vrot.slane %v486, 6
      %v1031 = vrot.slane %v488, 6
      %v1032 = vrot.slane %v491, 6
      %v1033 = vrot.slane %v493, 6
      %v1034 = vrot.slane %v496, 6
      %v1035 = vrot.slane %v498, 6
      %v1036 = vrot.slane %v501, 6
      %v1037 = vrot.slane %v503, 6
      %v1038 = vrot.slane %v506, 6
      %v1039 = vrot.slane %v508, 6
      %vm1040 = vcmp.lt.s32.totalorder %v914, 2
      %v1041 = vsel %vm1040, %v1038, %v1039
      %v1042 = vsel %vm1040, %v1037, %v1038
      %v1043 = vsel %vm1040, %v1036, %v1037
      %v1044 = vsel %vm1040, %v1035, %v1036
      %v1045 = vsel %vm1040, %v1034, %v1035
      %v1046 = vsel %vm1040, %v1033, %v1034
      %v1047 = vsel %vm1040, %v1032, %v1033
      %v1048 = vsel %vm1040, %v1031, %v1032
      %v1049 = vsel %vm1040, %v1030, %v1031
      %v1050 = vsel %vm1040, %v1029, %v1030
      %v1051 = vsel %vm1040, %v1028, %v1029
      %v1052 = vsel %vm1040, %v1027, %v1028
      %v1053 = vsel %vm1040, %v1026, %v1027
      %v1054 = vsel %vm1040, %v1025, %v1026
      %v1055 = vsel %vm1040, %v1024, %v1025
      %v1056 = vsel %vm1040, %v1039, %v1024
      %v1057 = vsel %vm1016, %v1056, 0.0
      %v1058 = vsel %vm1017, %v1055, 0.0
      %v1059 = vsel %vm1018, %v1054, 0.0
      %v1060 = vsel %vm1019, %v1053, 0.0
      %v1061 = vsel %vm1020, %v1052, 0.0
      %v1062 = vsel %vm1021, %v1051, 0.0
      %v1063 = vsel %vm1022, %v1050, 0.0
      %v1064 = vsel %vm1023, %v1049, 0.0
      %v1065 = vsel %vm1016, %v1048, 0.0
      %v1066 = vsel %vm1017, %v1047, 0.0
      %v1067 = vsel %vm1018, %v1046, 0.0
      %v1068 = vsel %vm1019, %v1045, 0.0
      %v1069 = vsel %vm1020, %v1044, 0.0
      %v1070 = vsel %vm1021, %v1043, 0.0
      %v1071 = vsel %vm1022, %v1042, 0.0
      %v1072 = vsel %vm1023, %v1041, 0.0
      %v1073 = vperm.slane %v912, 1
      %v1074 = vmul.f32 %v1057, %v1073
      %v1075 = vmul.f32 %v1058, %v1073
      %v1076 = vmul.f32 %v1059, %v1073
      %v1077 = vmul.f32 %v1060, %v1073
      %v1078 = vmul.f32 %v1061, %v1073
      %v1079 = vmul.f32 %v1062, %v1073
      %v1080 = vmul.f32 %v1063, %v1073
      %v1081 = vmul.f32 %v1064, %v1073
      %v1082 = vmul.f32 %v1065, %v1073
      %v1083 = vmul.f32 %v1066, %v1073
      %v1084 = vmul.f32 %v1067, %v1073
      %v1085 = vmul.f32 %v1068, %v1073
      %v1086 = vmul.f32 %v1069, %v1073
      %v1087 = vmul.f32 %v1070, %v1073
      %v1088 = vmul.f32 %v1071, %v1073
      %v1089 = vmul.f32 %v1072, %v1073
      %v1090 = vadd.f32 %v1000, %v1074
      %v1091 = vadd.f32 %v1001, %v1075
      %v1092 = vadd.f32 %v1002, %v1076
      %v1093 = vadd.f32 %v1003, %v1077
      %v1094 = vadd.f32 %v1004, %v1078
      %v1095 = vadd.f32 %v1005, %v1079
      %v1096 = vadd.f32 %v1006, %v1080
      %v1097 = vadd.f32 %v1007, %v1081
      %v1098 = vadd.f32 %v1008, %v1082
      %v1099 = vadd.f32 %v1009, %v1083
      %v1100 = vadd.f32 %v1010, %v1084
      %v1101 = vadd.f32 %v1011, %v1085
      %v1102 = vadd.f32 %v1012, %v1086
      %v1103 = vadd.f32 %v1013, %v1087
      %v1104 = vadd.f32 %v1014, %v1088
      %v1105 = vadd.f32 %v1015, %v1089
      %vm1106 = vcmp.ge.s32.totalorder %v914, 1
      %vm1107 = vcmp.ge.s32.totalorder %v915, 1
      %vm1108 = vcmp.ge.s32.totalorder %v916, 1
      %vm1109 = vcmp.ge.s32.totalorder %v917, 1
      %vm1110 = vcmp.ge.s32.totalorder %v918, 1
      %vm1111 = vcmp.ge.s32.totalorder %v919, 1
      %vm1112 = vcmp.ge.s32.totalorder %v920, 1
      %vm1113 = vcmp.ge.s32.totalorder %v921, 1
      %v1114 = vrot.slane %v471, 7
      %v1115 = vrot.slane %v473, 7
      %v1116 = vrot.slane %v476, 7
      %v1117 = vrot.slane %v478, 7
      %v1118 = vrot.slane %v481, 7
      %v1119 = vrot.slane %v483, 7
      %v1120 = vrot.slane %v486, 7
      %v1121 = vrot.slane %v488, 7
      %v1122 = vrot.slane %v491, 7
      %v1123 = vrot.slane %v493, 7
      %v1124 = vrot.slane %v496, 7
      %v1125 = vrot.slane %v498, 7
      %v1126 = vrot.slane %v501, 7
      %v1127 = vrot.slane %v503, 7
      %v1128 = vrot.slane %v506, 7
      %v1129 = vrot.slane %v508, 7
      %vm1130 = vcmp.lt.s32.totalorder %v914, 1
      %v1131 = vsel %vm1130, %v1128, %v1129
      %v1132 = vsel %vm1130, %v1127, %v1128
      %v1133 = vsel %vm1130, %v1126, %v1127
      %v1134 = vsel %vm1130, %v1125, %v1126
      %v1135 = vsel %vm1130, %v1124, %v1125
      %v1136 = vsel %vm1130, %v1123, %v1124
      %v1137 = vsel %vm1130, %v1122, %v1123
      %v1138 = vsel %vm1130, %v1121, %v1122
      %v1139 = vsel %vm1130, %v1120, %v1121
      %v1140 = vsel %vm1130, %v1119, %v1120
      %v1141 = vsel %vm1130, %v1118, %v1119
      %v1142 = vsel %vm1130, %v1117, %v1118
      %v1143 = vsel %vm1130, %v1116, %v1117
      %v1144 = vsel %vm1130, %v1115, %v1116
      %v1145 = vsel %vm1130, %v1114, %v1115
      %v1146 = vsel %vm1130, %v1129, %v1114
      %v1147 = vsel %vm1106, %v1146, 0.0
      %v1148 = vsel %vm1107, %v1145, 0.0
      %v1149 = vsel %vm1108, %v1144, 0.0
      %v1150 = vsel %vm1109, %v1143, 0.0
      %v1151 = vsel %vm1110, %v1142, 0.0
      %v1152 = vsel %vm1111, %v1141, 0.0
      %v1153 = vsel %vm1112, %v1140, 0.0
      %v1154 = vsel %vm1113, %v1139, 0.0
      %v1155 = vsel %vm1106, %v1138, 0.0
      %v1156 = vsel %vm1107, %v1137, 0.0
      %v1157 = vsel %vm1108, %v1136, 0.0
      %v1158 = vsel %vm1109, %v1135, 0.0
      %v1159 = vsel %vm1110, %v1134, 0.0
      %v1160 = vsel %vm1111, %v1133, 0.0
      %v1161 = vsel %vm1112, %v1132, 0.0
      %v1162 = vsel %vm1113, %v1131, 0.0
      %v1163 = vperm.slane %v912, 2
      %v1164 = vmul.f32 %v1147, %v1163
      %v1165 = vmul.f32 %v1148, %v1163
      %v1166 = vmul.f32 %v1149, %v1163
      %v1167 = vmul.f32 %v1150, %v1163
      %v1168 = vmul.f32 %v1151, %v1163
      %v1169 = vmul.f32 %v1152, %v1163
      %v1170 = vmul.f32 %v1153, %v1163
      %v1171 = vmul.f32 %v1154, %v1163
      %v1172 = vmul.f32 %v1155, %v1163
      %v1173 = vmul.f32 %v1156, %v1163
      %v1174 = vmul.f32 %v1157, %v1163
      %v1175 = vmul.f32 %v1158, %v1163
      %v1176 = vmul.f32 %v1159, %v1163
      %v1177 = vmul.f32 %v1160, %v1163
      %v1178 = vmul.f32 %v1161, %v1163
      %v1179 = vmul.f32 %v1162, %v1163
      %v1180 = vadd.f32 %v1090, %v1164
      %v1181 = vadd.f32 %v1091, %v1165
      %v1182 = vadd.f32 %v1092, %v1166
      %v1183 = vadd.f32 %v1093, %v1167
      %v1184 = vadd.f32 %v1094, %v1168
      %v1185 = vadd.f32 %v1095, %v1169
      %v1186 = vadd.f32 %v1096, %v1170
      %v1187 = vadd.f32 %v1097, %v1171
      %v1188 = vadd.f32 %v1098, %v1172
      %v1189 = vadd.f32 %v1099, %v1173
      %v1190 = vadd.f32 %v1100, %v1174
      %v1191 = vadd.f32 %v1101, %v1175
      %v1192 = vadd.f32 %v1102, %v1176
      %v1193 = vadd.f32 %v1103, %v1177
      %v1194 = vadd.f32 %v1104, %v1178
      %v1195 = vadd.f32 %v1105, %v1179
      %v1196 = vperm.slane %v912, 3
      %v1197 = vmul.f32 %v471, %v1196
      %v1198 = vmul.f32 %v473, %v1196
      %v1199 = vmul.f32 %v476, %v1196
      %v1200 = vmul.f32 %v478, %v1196
      %v1201 = vmul.f32 %v481, %v1196
      %v1202 = vmul.f32 %v483, %v1196
      %v1203 = vmul.f32 %v486, %v1196
      %v1204 = vmul.f32 %v488, %v1196
      %v1205 = vmul.f32 %v491, %v1196
      %v1206 = vmul.f32 %v493, %v1196
      %v1207 = vmul.f32 %v496, %v1196
      %v1208 = vmul.f32 %v498, %v1196
      %v1209 = vmul.f32 %v501, %v1196
      %v1210 = vmul.f32 %v503, %v1196
      %v1211 = vmul.f32 %v506, %v1196
      %v1212 = vmul.f32 %v508, %v1196
      %v1213 = vadd.f32 %v1180, %v1197
      %v1214 = vadd.f32 %v1181, %v1198
      %v1215 = vadd.f32 %v1182, %v1199
      %v1216 = vadd.f32 %v1183, %v1200
      %v1217 = vadd.f32 %v1184, %v1201
      %v1218 = vadd.f32 %v1185, %v1202
      %v1219 = vadd.f32 %v1186, %v1203
      %v1220 = vadd.f32 %v1187, %v1204
      %v1221 = vadd.f32 %v1188, %v1205
      %v1222 = vadd.f32 %v1189, %v1206
      %v1223 = vadd.f32 %v1190, %v1207
      %v1224 = vadd.f32 %v1191, %v1208
      %v1225 = vadd.f32 %v1192, %v1209
      %v1226 = vadd.f32 %v1193, %v1210
      %v1227 = vadd.f32 %v1194, %v1211
      %v1228 = vadd.f32 %v1195, %v1212
      %v1229 = vxor.u32 %v1213, 2147483648
      %v1230 = vxor.u32 %v1214, 2147483648
      %v1231 = vxor.u32 %v1215, 2147483648
      %v1232 = vxor.u32 %v1216, 2147483648
      %v1233 = vxor.u32 %v1217, 2147483648
      %v1234 = vxor.u32 %v1218, 2147483648
      %v1235 = vxor.u32 %v1219, 2147483648
      %v1236 = vxor.u32 %v1220, 2147483648
      %v1237 = vxor.u32 %v1221, 2147483648
      %v1238 = vxor.u32 %v1222, 2147483648
      %v1239 = vxor.u32 %v1223, 2147483648
      %v1240 = vxor.u32 %v1224, 2147483648
      %v1241 = vxor.u32 %v1225, 2147483648
      %v1242 = vxor.u32 %v1226, 2147483648
      %v1243 = vxor.u32 %v1227, 2147483648
      %v1244 = vxor.u32 %v1228, 2147483648
      %v1245 = vmul.f32 %v1229, 1.442695
      %v1246 = vpow.pop %v1245
      %v1247 = vmul.f32 %v1230, 1.442695
      %v1248 = vpow.pop %v1247
      %v1249 = vmul.f32 %v1231, 1.442695
      %v1250 = vpow.pop %v1249
      %v1251 = vmul.f32 %v1232, 1.442695
      %v1252 = vpow.pop %v1251
      %v1253 = vmul.f32 %v1233, 1.442695
      %v1254 = vpow.pop %v1253
      %v1255 = vmul.f32 %v1234, 1.442695
      %v1256 = vpow.pop %v1255
      %v1257 = vmul.f32 %v1235, 1.442695
      %v1258 = vpow.pop %v1257
      %v1259 = vmul.f32 %v1236, 1.442695
      %v1260 = vpow.pop %v1259
      %v1261 = vmul.f32 %v1237, 1.442695
      %v1262 = vpow.pop %v1261
      %v1263 = vmul.f32 %v1238, 1.442695
      %v1264 = vpow.pop %v1263
      %v1265 = vmul.f32 %v1239, 1.442695
      %v1266 = vpow.pop %v1265
      %v1267 = vmul.f32 %v1240, 1.442695
      %v1268 = vpow.pop %v1267
      %v1269 = vmul.f32 %v1241, 1.442695
      %v1270 = vpow.pop %v1269
      %v1271 = vmul.f32 %v1242, 1.442695
      %v1272 = vpow.pop %v1271
      %v1273 = vmul.f32 %v1243, 1.442695
      %v1274 = vpow.pop %v1273
      %v1275 = vmul.f32 %v1244, 1.442695
      %v1276 = vpow.pop %v1275
      %v1277 = vadd.f32 %v1246, 1.0
      %v1278 = vadd.f32 %v1248, 1.0
      %v1279 = vadd.f32 %v1250, 1.0
      %v1280 = vadd.f32 %v1252, 1.0
      %v1281 = vadd.f32 %v1254, 1.0
      %v1282 = vadd.f32 %v1256, 1.0
      %v1283 = vadd.f32 %v1258, 1.0
      %v1284 = vadd.f32 %v1260, 1.0
      %v1285 = vadd.f32 %v1262, 1.0
      %v1286 = vadd.f32 %v1264, 1.0
      %v1287 = vadd.f32 %v1266, 1.0
      %v1288 = vadd.f32 %v1268, 1.0
      %v1289 = vadd.f32 %v1270, 1.0
      %v1290 = vadd.f32 %v1272, 1.0
      %v1291 = vadd.f32 %v1274, 1.0
      %v1292 = vadd.f32 %v1276, 1.0
      %v1293 = vrcp.pop %v1277
      %v1294 = vmul.f32 %v1277, %v1293
      %v1295 = vsub.f32 1.0, %v1294
      %v1296 = vmul.f32 %v1293, %v1295
      %v1297 = vadd.f32 %v1293, %v1296
      %vm1298 = vweird.f32 %v1277
      %vm1299 = vweird.f32 %v1293
      %vm1300 = vmor %vm1298, %vm1299
      %v1301 = vsel %vm1300, %v1293, %v1297
      %v1302 = vand.u32 2147483647, %v1277
      %vm1303 = vcmp.eq.f32.partialorder %v1302, 8.507059e+37
      %v1304 = vand.u32 %v1277, 2147483648
      %v1305 = vor.u32 1.1754944e-38, %v1304
      %v1306 = vsel %vm1303, %v1305, %v1301
      %v1307 = vmul.f32 1.0, %v1306
      %v1308 = vrcp.pop %v1278
      %v1309 = vmul.f32 %v1278, %v1308
      %v1310 = vsub.f32 1.0, %v1309
      %v1311 = vmul.f32 %v1308, %v1310
      %v1312 = vadd.f32 %v1308, %v1311
      %vm1313 = vweird.f32 %v1278
      %vm1314 = vweird.f32 %v1308
      %vm1315 = vmor %vm1313, %vm1314
      %v1316 = vsel %vm1315, %v1308, %v1312
      %v1317 = vand.u32 2147483647, %v1278
      %vm1318 = vcmp.eq.f32.partialorder %v1317, 8.507059e+37
      %v1319 = vand.u32 %v1278, 2147483648
      %v1320 = vor.u32 1.1754944e-38, %v1319
      %v1321 = vsel %vm1318, %v1320, %v1316
      %v1322 = vmul.f32 1.0, %v1321
      %v1323 = vrcp.pop %v1279
      %v1324 = vmul.f32 %v1279, %v1323
      %v1325 = vsub.f32 1.0, %v1324
      %v1326 = vmul.f32 %v1323, %v1325
      %v1327 = vadd.f32 %v1323, %v1326
      %vm1328 = vweird.f32 %v1279
      %vm1329 = vweird.f32 %v1323
      %vm1330 = vmor %vm1328, %vm1329
      %v1331 = vsel %vm1330, %v1323, %v1327
      %v1332 = vand.u32 2147483647, %v1279
      %vm1333 = vcmp.eq.f32.partialorder %v1332, 8.507059e+37
      %v1334 = vand.u32 %v1279, 2147483648
      %v1335 = vor.u32 1.1754944e-38, %v1334
      %v1336 = vsel %vm1333, %v1335, %v1331
      %v1337 = vmul.f32 1.0, %v1336
      %v1338 = vrcp.pop %v1280
      %v1339 = vmul.f32 %v1280, %v1338
      %v1340 = vsub.f32 1.0, %v1339
      %v1341 = vmul.f32 %v1338, %v1340
      %v1342 = vadd.f32 %v1338, %v1341
      %vm1343 = vweird.f32 %v1280
      %vm1344 = vweird.f32 %v1338
      %vm1345 = vmor %vm1343, %vm1344
      %v1346 = vsel %vm1345, %v1338, %v1342
      %v1347 = vand.u32 2147483647, %v1280
      %vm1348 = vcmp.eq.f32.partialorder %v1347, 8.507059e+37
      %v1349 = vand.u32 %v1280, 2147483648
      %v1350 = vor.u32 1.1754944e-38, %v1349
      %v1351 = vsel %vm1348, %v1350, %v1346
      %v1352 = vmul.f32 1.0, %v1351
      %v1353 = vrcp.pop %v1281
      %v1354 = vmul.f32 %v1281, %v1353
      %v1355 = vsub.f32 1.0, %v1354
      %v1356 = vmul.f32 %v1353, %v1355
      %v1357 = vadd.f32 %v1353, %v1356
      %vm1358 = vweird.f32 %v1281
      %vm1359 = vweird.f32 %v1353
      %vm1360 = vmor %vm1358, %vm1359
      %v1361 = vsel %vm1360, %v1353, %v1357
      %v1362 = vand.u32 2147483647, %v1281
      %vm1363 = vcmp.eq.f32.partialorder %v1362, 8.507059e+37
      %v1364 = vand.u32 %v1281, 2147483648
      %v1365 = vor.u32 1.1754944e-38, %v1364
      %v1366 = vsel %vm1363, %v1365, %v1361
      %v1367 = vmul.f32 1.0, %v1366
      %v1368 = vrcp.pop %v1282
      %v1369 = vmul.f32 %v1282, %v1368
      %v1370 = vsub.f32 1.0, %v1369
      %v1371 = vmul.f32 %v1368, %v1370
      %v1372 = vadd.f32 %v1368, %v1371
      %vm1373 = vweird.f32 %v1282
      %vm1374 = vweird.f32 %v1368
      %vm1375 = vmor %vm1373, %vm1374
      %v1376 = vsel %vm1375, %v1368, %v1372
      %v1377 = vand.u32 2147483647, %v1282
      %vm1378 = vcmp.eq.f32.partialorder %v1377, 8.507059e+37
      %v1379 = vand.u32 %v1282, 2147483648
      %v1380 = vor.u32 1.1754944e-38, %v1379
      %v1381 = vsel %vm1378, %v1380, %v1376
      %v1382 = vmul.f32 1.0, %v1381
      %v1383 = vrcp.pop %v1283
      %v1384 = vmul.f32 %v1283, %v1383
      %v1385 = vsub.f32 1.0, %v1384
      %v1386 = vmul.f32 %v1383, %v1385
      %v1387 = vadd.f32 %v1383, %v1386
      %vm1388 = vweird.f32 %v1283
      %vm1389 = vweird.f32 %v1383
      %vm1390 = vmor %vm1388, %vm1389
      %v1391 = vsel %vm1390, %v1383, %v1387
      %v1392 = vand.u32 2147483647, %v1283
      %vm1393 = vcmp.eq.f32.partialorder %v1392, 8.507059e+37
      %v1394 = vand.u32 %v1283, 2147483648
      %v1395 = vor.u32 1.1754944e-38, %v1394
      %v1396 = vsel %vm1393, %v1395, %v1391
      %v1397 = vmul.f32 1.0, %v1396
      %v1398 = vrcp.pop %v1284
      %v1399 = vmul.f32 %v1284, %v1398
      %v1400 = vsub.f32 1.0, %v1399
      %v1401 = vmul.f32 %v1398, %v1400
      %v1402 = vadd.f32 %v1398, %v1401
      %vm1403 = vweird.f32 %v1284
      %vm1404 = vweird.f32 %v1398
      %vm1405 = vmor %vm1403, %vm1404
      %v1406 = vsel %vm1405, %v1398, %v1402
      %v1407 = vand.u32 2147483647, %v1284
      %vm1408 = vcmp.eq.f32.partialorder %v1407, 8.507059e+37
      %v1409 = vand.u32 %v1284, 2147483648
      %v1410 = vor.u32 1.1754944e-38, %v1409
      %v1411 = vsel %vm1408, %v1410, %v1406
      %v1412 = vmul.f32 1.0, %v1411
      %v1413 = vrcp.pop %v1285
      %v1414 = vmul.f32 %v1285, %v1413
      %v1415 = vsub.f32 1.0, %v1414
      %v1416 = vmul.f32 %v1413, %v1415
      %v1417 = vadd.f32 %v1413, %v1416
      %vm1418 = vweird.f32 %v1285
      %vm1419 = vweird.f32 %v1413
      %vm1420 = vmor %vm1418, %vm1419
      %v1421 = vsel %vm1420, %v1413, %v1417
      %v1422 = vand.u32 2147483647, %v1285
      %vm1423 = vcmp.eq.f32.partialorder %v1422, 8.507059e+37
      %v1424 = vand.u32 %v1285, 2147483648
      %v1425 = vor.u32 1.1754944e-38, %v1424
      %v1426 = vsel %vm1423, %v1425, %v1421
      %v1427 = vmul.f32 1.0, %v1426
      %v1428 = vrcp.pop %v1286
      %v1429 = vmul.f32 %v1286, %v1428
      %v1430 = vsub.f32 1.0, %v1429
      %v1431 = vmul.f32 %v1428, %v1430
      %v1432 = vadd.f32 %v1428, %v1431
      %vm1433 = vweird.f32 %v1286
      %vm1434 = vweird.f32 %v1428
      %vm1435 = vmor %vm1433, %vm1434
      %v1436 = vsel %vm1435, %v1428, %v1432
      %v1437 = vand.u32 2147483647, %v1286
      %vm1438 = vcmp.eq.f32.partialorder %v1437, 8.507059e+37
      %v1439 = vand.u32 %v1286, 2147483648
      %v1440 = vor.u32 1.1754944e-38, %v1439
      %v1441 = vsel %vm1438, %v1440, %v1436
      %v1442 = vmul.f32 1.0, %v1441
      %v1443 = vrcp.pop %v1287
      %v1444 = vmul.f32 %v1287, %v1443
      %v1445 = vsub.f32 1.0, %v1444
      %v1446 = vmul.f32 %v1443, %v1445
      %v1447 = vadd.f32 %v1443, %v1446
      %vm1448 = vweird.f32 %v1287
      %vm1449 = vweird.f32 %v1443
      %vm1450 = vmor %vm1448, %vm1449
      %v1451 = vsel %vm1450, %v1443, %v1447
      %v1452 = vand.u32 2147483647, %v1287
      %vm1453 = vcmp.eq.f32.partialorder %v1452, 8.507059e+37
      %v1454 = vand.u32 %v1287, 2147483648
      %v1455 = vor.u32 1.1754944e-38, %v1454
      %v1456 = vsel %vm1453, %v1455, %v1451
      %v1457 = vmul.f32 1.0, %v1456
      %v1458 = vrcp.pop %v1288
      %v1459 = vmul.f32 %v1288, %v1458
      %v1460 = vsub.f32 1.0, %v1459
      %v1461 = vmul.f32 %v1458, %v1460
      %v1462 = vadd.f32 %v1458, %v1461
      %vm1463 = vweird.f32 %v1288
      %vm1464 = vweird.f32 %v1458
      %vm1465 = vmor %vm1463, %vm1464
      %v1466 = vsel %vm1465, %v1458, %v1462
      %v1467 = vand.u32 2147483647, %v1288
      %vm1468 = vcmp.eq.f32.partialorder %v1467, 8.507059e+37
      %v1469 = vand.u32 %v1288, 2147483648
      %v1470 = vor.u32 1.1754944e-38, %v1469
      %v1471 = vsel %vm1468, %v1470, %v1466
      %v1472 = vmul.f32 1.0, %v1471
      %v1473 = vrcp.pop %v1289
      %v1474 = vmul.f32 %v1289, %v1473
      %v1475 = vsub.f32 1.0, %v1474
      %v1476 = vmul.f32 %v1473, %v1475
      %v1477 = vadd.f32 %v1473, %v1476
      %vm1478 = vweird.f32 %v1289
      %vm1479 = vweird.f32 %v1473
      %vm1480 = vmor %vm1478, %vm1479
      %v1481 = vsel %vm1480, %v1473, %v1477
      %v1482 = vand.u32 2147483647, %v1289
      %vm1483 = vcmp.eq.f32.partialorder %v1482, 8.507059e+37
      %v1484 = vand.u32 %v1289, 2147483648
      %v1485 = vor.u32 1.1754944e-38, %v1484
      %v1486 = vsel %vm1483, %v1485, %v1481
      %v1487 = vmul.f32 1.0, %v1486
      %v1488 = vrcp.pop %v1290
      %v1489 = vmul.f32 %v1290, %v1488
      %v1490 = vsub.f32 1.0, %v1489
      %v1491 = vmul.f32 %v1488, %v1490
      %v1492 = vadd.f32 %v1488, %v1491
      %vm1493 = vweird.f32 %v1290
      %vm1494 = vweird.f32 %v1488
      %vm1495 = vmor %vm1493, %vm1494
      %v1496 = vsel %vm1495, %v1488, %v1492
      %v1497 = vand.u32 2147483647, %v1290
      %vm1498 = vcmp.eq.f32.partialorder %v1497, 8.507059e+37
      %v1499 = vand.u32 %v1290, 2147483648
      %v1500 = vor.u32 1.1754944e-38, %v1499
      %v1501 = vsel %vm1498, %v1500, %v1496
      %v1502 = vmul.f32 1.0, %v1501
      %v1503 = vrcp.pop %v1291
      %v1504 = vmul.f32 %v1291, %v1503
      %v1505 = vsub.f32 1.0, %v1504
      %v1506 = vmul.f32 %v1503, %v1505
      %v1507 = vadd.f32 %v1503, %v1506
      %vm1508 = vweird.f32 %v1291
      %vm1509 = vweird.f32 %v1503
      %vm1510 = vmor %vm1508, %vm1509
      %v1511 = vsel %vm1510, %v1503, %v1507
      %v1512 = vand.u32 2147483647, %v1291
      %vm1513 = vcmp.eq.f32.partialorder %v1512, 8.507059e+37
      %v1514 = vand.u32 %v1291, 2147483648
      %v1515 = vor.u32 1.1754944e-38, %v1514
      %v1516 = vsel %vm1513, %v1515, %v1511
      %v1517 = vmul.f32 1.0, %v1516
      %v1518 = vrcp.pop %v1292
      %v1519 = vmul.f32 %v1292, %v1518
      %v1520 = vsub.f32 1.0, %v1519
      %v1521 = vmul.f32 %v1518, %v1520
      %v1522 = vadd.f32 %v1518, %v1521
      %vm1523 = vweird.f32 %v1292
      %vm1524 = vweird.f32 %v1518
      %vm1525 = vmor %vm1523, %vm1524
      %v1526 = vsel %vm1525, %v1518, %v1522
      %v1527 = vand.u32 2147483647, %v1292
      %vm1528 = vcmp.eq.f32.partialorder %v1527, 8.507059e+37
      %v1529 = vand.u32 %v1292, 2147483648
      %v1530 = vor.u32 1.1754944e-38, %v1529
      %v1531 = vsel %vm1528, %v1530, %v1526
      %v1532 = vmul.f32 1.0, %v1531
      %v1533 = vmul.f32 %v1213, %v1307
      %v1534 = vmul.f32 %v1214, %v1322
      %v1535 = vmul.f32 %v1215, %v1337
      %v1536 = vmul.f32 %v1216, %v1352
      %v1537 = vmul.f32 %v1217, %v1367
      %v1538 = vmul.f32 %v1218, %v1382
      %v1539 = vmul.f32 %v1219, %v1397
      %v1540 = vmul.f32 %v1220, %v1412
      %v1541 = vmul.f32 %v1221, %v1427
      %v1542 = vmul.f32 %v1222, %v1442
      %v1543 = vmul.f32 %v1223, %v1457
      %v1544 = vmul.f32 %v1224, %v1472
      %v1545 = vmul.f32 %v1225, %v1487
      %v1546 = vmul.f32 %v1226, %v1502
      %v1547 = vmul.f32 %v1227, %v1517
      %v1548 = vmul.f32 %v1228, %v1532
      %v1549 = vld [vmem:[%s9] sm:$0x1]
      %v1551 = vperm.slane %v1549, 0
      %v1553 = vmul.f32 %v1533, %v1551
      %v1554 = vmul.f32 %v1534, %v1551
      %v1555 = vmul.f32 %v1535, %v1551
      %v1556 = vmul.f32 %v1536, %v1551
      %v1557 = vmul.f32 %v1537, %v1551
      %v1558 = vmul.f32 %v1538, %v1551
      %v1559 = vmul.f32 %v1539, %v1551
      %v1560 = vmul.f32 %v1540, %v1551
      %v1561 = vmul.f32 %v1541, %v1551
      %v1562 = vmul.f32 %v1542, %v1551
      %v1563 = vmul.f32 %v1543, %v1551
      %v1564 = vmul.f32 %v1544, %v1551
      %v1565 = vmul.f32 %v1545, %v1551
      %v1566 = vmul.f32 %v1546, %v1551
      %v1567 = vmul.f32 %v1547, %v1551
      %v1568 = vmul.f32 %v1548, %v1551
      %1569 = vst.msk [vmem:[#allocation6] sm:$0xff] %vm895, %v1553
      %1570 = vst.msk [vmem:[#allocation6 + $0x8] sm:$0xff] %vm895, %v1554
      %1571 = vst.msk [vmem:[#allocation6 + $0x10] sm:$0xff] %vm895, %v1555
      %1572 = vst.msk [vmem:[#allocation6 + $0x18] sm:$0xff] %vm895, %v1556
      %1573 = vst.msk [vmem:[#allocation6 + $0x20] sm:$0xff] %vm895, %v1557
      %1574 = vst.msk [vmem:[#allocation6 + $0x28] sm:$0xff] %vm895, %v1558
      %1575 = vst.msk [vmem:[#allocation6 + $0x30] sm:$0xff] %vm895, %v1559
      %1576 = vst.msk [vmem:[#allocation6 + $0x38] sm:$0xff] %vm895, %v1560
      %1577 = vst.msk [vmem:[#allocation6 + $0x40] sm:$0xff] %vm895, %v1561
      %1578 = vst.msk [vmem:[#allocation6 + $0x48] sm:$0xff] %vm895, %v1562
      %1579 = vst.msk [vmem:[#allocation6 + $0x50] sm:$0xff] %vm895, %v1563
      %1580 = vst.msk [vmem:[#allocation6 + $0x58] sm:$0xff] %vm895, %v1564
      %1581 = vst.msk [vmem:[#allocation6 + $0x60] sm:$0xff] %vm895, %v1565
      %1582 = vst.msk [vmem:[#allocation6 + $0x68] sm:$0xff] %vm895, %v1566
      %1583 = vst.msk [vmem:[#allocation6 + $0x70] sm:$0xff] %vm895, %v1567
      %1584 = vst.msk [vmem:[#allocation6 + $0x78] sm:$0xff] %vm895, %v1568
      %v1585 = vpack.c.bf16 %v1534, %v1533
      %v1586 = vpack.c.bf16 %v1536, %v1535
      %v1587 = vpack.c.bf16 %v1538, %v1537
      %v1588 = vpack.c.bf16 %v1540, %v1539
      %v1589 = vpack.c.bf16 %v1542, %v1541
      %v1590 = vpack.c.bf16 %v1544, %v1543
      %v1591 = vpack.c.bf16 %v1546, %v1545
      %v1592 = vpack.c.bf16 %v1548, %v1547
      %v1593 = vld [vmem:[%s5] sm:$0xf]
      %v1594 = vld [vmem:[%s5 + $0x4] sm:$0xf]
      %v1595 = vld [vmem:[%s5 + $0x8] sm:$0xf]
      %v1596 = vld [vmem:[%s5 + $0xc] sm:$0xf]
      %v1597 = vld [vmem:[%s5 + $0x10] sm:$0xf]
      %v1598 = vld [vmem:[%s5 + $0x14] sm:$0xf]
      %v1599 = vld [vmem:[%s5 + $0x18] sm:$0xf]
      %v1600 = vld [vmem:[%s5 + $0x1c] sm:$0xf]
      %v1609 = vunpack.c.l.b16 %v1593
      %v1610 = vunpack.c.l.b16 %v1594
      %v1611 = vunpack.c.l.b16 %v1595
      %v1612 = vunpack.c.l.b16 %v1596
      %v1613 = vunpack.c.l.b16 %v1597
      %v1614 = vunpack.c.l.b16 %v1598
      %v1615 = vunpack.c.l.b16 %v1599
      %v1616 = vunpack.c.l.b16 %v1600
      %v1617 = vpack.c.b16 %v1610, %v1609
      %v1618 = vpack.c.b16 %v1612, %v1611
      %v1619 = vpack.c.b16 %v1614, %v1613
      %v1620 = vpack.c.b16 %v1616, %v1615
      %v1626 = vsel %vm895, %v1585, 0
      %v1629 = vsel %vm895, %v1586, 0
      %v1632 = vsel %vm895, %v1587, 0
      %v1635 = vsel %vm895, %v1588, 0
      %v1638 = vsel %vm895, %v1589, 0
      %v1641 = vsel %vm895, %v1590, 0
      %v1644 = vsel %vm895, %v1591, 0
      %v1647 = vsel %vm895, %v1592, 0
      %1649 = vmatpush.bf16.msra.mxu0 0
      %1650 = vmatpush.bf16.msra.mxu0 0
      %1651 = vmatpush.bf16.msra.mxu0 0
      %1652 = vmatpush.bf16.msra.mxu0 0
      %1653 = vmatpush.bf16.msra.mxu0 %v1620
      %1654 = vmatpush.bf16.msra.mxu0 %v1619
      %1655 = vmatpush.bf16.msra.mxu0 %v1618
      %1656 = vmatpush.bf16.msra.mxu0 %v1617
      %1657 = vmatmul.bf16.gmra.mxu0 %v1626
      %v1658 = vpop.f32.mrf.mxu0
      %v1659 = vadd.f32 0.0, %v1658
      %v1660 = vpop.f32.mrf.mxu0
      %v1661 = vadd.f32 0.0, %v1660
      %1662 = vmatmul.bf16.gmra.mxu0 %v1629
      %v1663 = vpop.f32.mrf.mxu0
      %v1664 = vadd.f32 0.0, %v1663
      %v1665 = vpop.f32.mrf.mxu0
      %v1666 = vadd.f32 0.0, %v1665
      %1667 = vmatmul.bf16.gmra.mxu0 %v1632
      %v1668 = vpop.f32.mrf.mxu0
      %v1669 = vadd.f32 0.0, %v1668
      %v1670 = vpop.f32.mrf.mxu0
      %v1671 = vadd.f32 0.0, %v1670
      %1672 = vmatmul.bf16.gmra.mxu0 %v1635
      %v1673 = vpop.f32.mrf.mxu0
      %v1674 = vadd.f32 0.0, %v1673
      %v1675 = vpop.f32.mrf.mxu0
      %v1676 = vadd.f32 0.0, %v1675
      %1677 = vmatmul.bf16.gmra.mxu0 %v1638
      %v1678 = vpop.f32.mrf.mxu0
      %v1679 = vadd.f32 0.0, %v1678
      %v1680 = vpop.f32.mrf.mxu0
      %v1681 = vadd.f32 0.0, %v1680
      %1682 = vmatmul.bf16.gmra.mxu0 %v1641
      %v1683 = vpop.f32.mrf.mxu0
      %v1684 = vadd.f32 0.0, %v1683
      %v1685 = vpop.f32.mrf.mxu0
      %v1686 = vadd.f32 0.0, %v1685
      %1687 = vmatmul.bf16.gmra.mxu0 %v1644
      %v1688 = vpop.f32.mrf.mxu0
      %v1689 = vadd.f32 0.0, %v1688
      %v1690 = vpop.f32.mrf.mxu0
      %v1691 = vadd.f32 0.0, %v1690
      %1692 = vmatmul.bf16.gmra.mxu0 %v1647
      %v1693 = vpop.f32.mrf.mxu0
      %v1694 = vadd.f32 0.0, %v1693
      %v1695 = vpop.f32.mrf.mxu0
      %v1696 = vadd.f32 0.0, %v1695
      %1697 = vdwg.mxu0
      %1714 = vrot.lane.b32.xlu0 %v1659, 126
      %v1715 = vpop.permute.xlu0 %1714
      %1716 = vrot.lane.b32.xlu0 %v1661, 126
      %v1717 = vpop.permute.xlu0 %1716
      %1718 = vrot.lane.b32.xlu0 %v1664, 126
      %v1719 = vpop.permute.xlu0 %1718
      %1720 = vrot.lane.b32.xlu0 %v1666, 126
      %v1721 = vpop.permute.xlu0 %1720
      %1722 = vrot.lane.b32.xlu0 %v1669, 126
      %v1723 = vpop.permute.xlu0 %1722
      %1724 = vrot.lane.b32.xlu0 %v1671, 126
      %v1725 = vpop.permute.xlu0 %1724
      %1726 = vrot.lane.b32.xlu0 %v1674, 126
      %v1727 = vpop.permute.xlu0 %1726
      %1728 = vrot.lane.b32.xlu0 %v1676, 126
      %v1729 = vpop.permute.xlu0 %1728
      %1730 = vrot.lane.b32.xlu0 %v1679, 126
      %v1731 = vpop.permute.xlu0 %1730
      %1732 = vrot.lane.b32.xlu0 %v1681, 126
      %v1733 = vpop.permute.xlu0 %1732
      %1734 = vrot.lane.b32.xlu0 %v1684, 126
      %v1735 = vpop.permute.xlu0 %1734
      %1736 = vrot.lane.b32.xlu0 %v1686, 126
      %v1737 = vpop.permute.xlu0 %1736
      %1738 = vrot.lane.b32.xlu0 %v1689, 126
      %v1739 = vpop.permute.xlu0 %1738
      %1740 = vrot.lane.b32.xlu0 %v1691, 126
      %v1741 = vpop.permute.xlu0 %1740
      %1742 = vrot.lane.b32.xlu0 %v1694, 126
      %v1743 = vpop.permute.xlu0 %1742
      %1744 = vrot.lane.b32.xlu0 %v1696, 126
      %v1745 = vpop.permute.xlu0 %1744
      %vm1762 = vcmask 64512
      %1763 = vst.msk [vmem:[#allocation4] sm:$0xff] %vm1762, %v1715
      %1764 = vst.msk [vmem:[#allocation4 + $0x8] sm:$0xff] %vm1762, %v1717
      %1765 = vst.msk [vmem:[#allocation4 + $0x10] sm:$0xff] %vm1762, %v1719
      %1766 = vst.msk [vmem:[#allocation4 + $0x18] sm:$0xff] %vm1762, %v1721
      %1767 = vst.msk [vmem:[#allocation4 + $0x20] sm:$0xff] %vm1762, %v1723
      %1768 = vst.msk [vmem:[#allocation4 + $0x28] sm:$0xff] %vm1762, %v1725
      %1769 = vst.msk [vmem:[#allocation4 + $0x30] sm:$0xff] %vm1762, %v1727
      %1770 = vst.msk [vmem:[#allocation4 + $0x38] sm:$0xff] %vm1762, %v1729
      %1771 = vst.msk [vmem:[#allocation4 + $0x40] sm:$0xff] %vm1762, %v1731
      %1772 = vst.msk [vmem:[#allocation4 + $0x48] sm:$0xff] %vm1762, %v1733
      %1773 = vst.msk [vmem:[#allocation4 + $0x50] sm:$0xff] %vm1762, %v1735
      %1774 = vst.msk [vmem:[#allocation4 + $0x58] sm:$0xff] %vm1762, %v1737
      %1775 = vst.msk [vmem:[#allocation4 + $0x60] sm:$0xff] %vm1762, %v1739
      %1776 = vst.msk [vmem:[#allocation4 + $0x68] sm:$0xff] %vm1762, %v1741
      %1777 = vst.msk [vmem:[#allocation4 + $0x70] sm:$0xff] %vm1762, %v1743
      %1778 = vst.msk [vmem:[#allocation4 + $0x78] sm:$0xff] %vm1762, %v1745
      %1779 = vrot.lane.b32.xlu0 %v1659, 118
      %v1780 = vpop.permute.xlu0 %1779
      %1781 = vrot.lane.b32.xlu0 %v1661, 118
      %v1782 = vpop.permute.xlu0 %1781
      %1783 = vrot.lane.b32.xlu0 %v1664, 118
      %v1784 = vpop.permute.xlu0 %1783
      %1785 = vrot.lane.b32.xlu0 %v1666, 118
      %v1786 = vpop.permute.xlu0 %1785
      %1787 = vrot.lane.b32.xlu0 %v1669, 118
      %v1788 = vpop.permute.xlu0 %1787
      %1789 = vrot.lane.b32.xlu0 %v1671, 118
      %v1790 = vpop.permute.xlu0 %1789
      %1791 = vrot.lane.b32.xlu0 %v1674, 118
      %v1792 = vpop.permute.xlu0 %1791
      %1793 = vrot.lane.b32.xlu0 %v1676, 118
      %v1794 = vpop.permute.xlu0 %1793
      %1795 = vrot.lane.b32.xlu0 %v1679, 118
      %v1796 = vpop.permute.xlu0 %1795
      %1797 = vrot.lane.b32.xlu0 %v1681, 118
      %v1798 = vpop.permute.xlu0 %1797
      %1799 = vrot.lane.b32.xlu0 %v1684, 118
      %v1800 = vpop.permute.xlu0 %1799
      %1801 = vrot.lane.b32.xlu0 %v1686, 118
      %v1802 = vpop.permute.xlu0 %1801
      %1803 = vrot.lane.b32.xlu0 %v1689, 118
      %v1804 = vpop.permute.xlu0 %1803
      %1805 = vrot.lane.b32.xlu0 %v1691, 118
      %v1806 = vpop.permute.xlu0 %1805
      %1807 = vrot.lane.b32.xlu0 %v1694, 118
      %v1808 = vpop.permute.xlu0 %1807
      %1809 = vrot.lane.b32.xlu0 %v1696, 118
      %v1810 = vpop.permute.xlu0 %1809
      %1827 = vst.msk [vmem:[#allocation5] sm:$0xff] %vm1762, %v1780
      %1828 = vst.msk [vmem:[#allocation5 + $0x8] sm:$0xff] %vm1762, %v1782
      %1829 = vst.msk [vmem:[#allocation5 + $0x10] sm:$0xff] %vm1762, %v1784
      %1830 = vst.msk [vmem:[#allocation5 + $0x18] sm:$0xff] %vm1762, %v1786
      %1831 = vst.msk [vmem:[#allocation5 + $0x20] sm:$0xff] %vm1762, %v1788
      %1832 = vst.msk [vmem:[#allocation5 + $0x28] sm:$0xff] %vm1762, %v1790
      %1833 = vst.msk [vmem:[#allocation5 + $0x30] sm:$0xff] %vm1762, %v1792
      %1834 = vst.msk [vmem:[#allocation5 + $0x38] sm:$0xff] %vm1762, %v1794
      %1835 = vst.msk [vmem:[#allocation5 + $0x40] sm:$0xff] %vm1762, %v1796
      %1836 = vst.msk [vmem:[#allocation5 + $0x48] sm:$0xff] %vm1762, %v1798
      %1837 = vst.msk [vmem:[#allocation5 + $0x50] sm:$0xff] %vm1762, %v1800
      %1838 = vst.msk [vmem:[#allocation5 + $0x58] sm:$0xff] %vm1762, %v1802
      %1839 = vst.msk [vmem:[#allocation5 + $0x60] sm:$0xff] %vm1762, %v1804
      %1840 = vst.msk [vmem:[#allocation5 + $0x68] sm:$0xff] %vm1762, %v1806
      %1841 = vst.msk [vmem:[#allocation5 + $0x70] sm:$0xff] %vm1762, %v1808
      %1842 = vst.msk [vmem:[#allocation5 + $0x78] sm:$0xff] %vm1762, %v1810
      %v1843 = vld [vmem:[%s6] sm:$0x3]
      %v1844 = vld [vmem:[%s7] sm:$0x1]
      %v1846 = vperm.slane %v1844, 0
      %1848 = vset.pattern.permute.xlu0 0
      %1849 = vperm.xlu0 %1848, %v1659
      %v1850 = vpop.permute.xlu0 %1849
      %1852 = vset.pattern.permute.xlu0 0
      %1853 = vperm.xlu0 %1852, %v1661
      %v1854 = vpop.permute.xlu0 %1853
      %1856 = vset.pattern.permute.xlu0 0
      %1857 = vperm.xlu0 %1856, %v1664
      %v1858 = vpop.permute.xlu0 %1857
      %1860 = vset.pattern.permute.xlu0 0
      %1861 = vperm.xlu0 %1860, %v1666
      %v1862 = vpop.permute.xlu0 %1861
      %1864 = vset.pattern.permute.xlu0 0
      %1865 = vperm.xlu0 %1864, %v1669
      %v1866 = vpop.permute.xlu0 %1865
      %1868 = vset.pattern.permute.xlu0 0
      %1869 = vperm.xlu0 %1868, %v1671
      %v1870 = vpop.permute.xlu0 %1869
      %1872 = vset.pattern.permute.xlu0 0
      %1873 = vperm.xlu0 %1872, %v1674
      %v1874 = vpop.permute.xlu0 %1873
      %1876 = vset.pattern.permute.xlu0 0
      %1877 = vperm.xlu0 %1876, %v1676
      %v1878 = vpop.permute.xlu0 %1877
      %1880 = vset.pattern.permute.xlu0 0
      %1881 = vperm.xlu0 %1880, %v1679
      %v1882 = vpop.permute.xlu0 %1881
      %1884 = vset.pattern.permute.xlu0 0
      %1885 = vperm.xlu0 %1884, %v1681
      %v1886 = vpop.permute.xlu0 %1885
      %1888 = vset.pattern.permute.xlu0 0
      %1889 = vperm.xlu0 %1888, %v1684
      %v1890 = vpop.permute.xlu0 %1889
      %1892 = vset.pattern.permute.xlu0 0
      %1893 = vperm.xlu0 %1892, %v1686
      %v1894 = vpop.permute.xlu0 %1893
      %1896 = vset.pattern.permute.xlu0 0
      %1897 = vperm.xlu0 %1896, %v1689
      %v1898 = vpop.permute.xlu0 %1897
      %1900 = vset.pattern.permute.xlu0 0
      %1901 = vperm.xlu0 %1900, %v1691
      %v1902 = vpop.permute.xlu0 %1901
      %1904 = vset.pattern.permute.xlu0 0
      %1905 = vperm.xlu0 %1904, %v1694
      %v1906 = vpop.permute.xlu0 %1905
      %1908 = vset.pattern.permute.xlu0 0
      %1909 = vperm.xlu0 %1908, %v1696
      %v1910 = vpop.permute.xlu0 %1909
      %v1912 = vperm.slane %v1843, 0
      %v1913 = vmul.f32 %v1850, %v1912
      %v1914 = vmul.f32 %v1854, %v1912
      %v1915 = vmul.f32 %v1858, %v1912
      %v1916 = vmul.f32 %v1862, %v1912
      %v1917 = vmul.f32 %v1866, %v1912
      %v1918 = vmul.f32 %v1870, %v1912
      %v1919 = vmul.f32 %v1874, %v1912
      %v1920 = vmul.f32 %v1878, %v1912
      %v1921 = vmul.f32 %v1882, %v1912
      %v1922 = vmul.f32 %v1886, %v1912
      %v1923 = vmul.f32 %v1890, %v1912
      %v1924 = vmul.f32 %v1894, %v1912
      %v1925 = vmul.f32 %v1898, %v1912
      %v1926 = vmul.f32 %v1902, %v1912
      %v1927 = vmul.f32 %v1906, %v1912
      %v1928 = vmul.f32 %v1910, %v1912
      %v1929 = vadd.f32 %v1846, %v1913
      %v1930 = vadd.f32 %v1846, %v1914
      %v1931 = vadd.f32 %v1846, %v1915
      %v1932 = vadd.f32 %v1846, %v1916
      %v1933 = vadd.f32 %v1846, %v1917
      %v1934 = vadd.f32 %v1846, %v1918
      %v1935 = vadd.f32 %v1846, %v1919
      %v1936 = vadd.f32 %v1846, %v1920
      %v1937 = vadd.f32 %v1846, %v1921
      %v1938 = vadd.f32 %v1846, %v1922
      %v1939 = vadd.f32 %v1846, %v1923
      %v1940 = vadd.f32 %v1846, %v1924
      %v1941 = vadd.f32 %v1846, %v1925
      %v1942 = vadd.f32 %v1846, %v1926
      %v1943 = vadd.f32 %v1846, %v1927
      %v1944 = vadd.f32 %v1846, %v1928
      %1945 = vset.pattern.permute.xlu0 1
      %1946 = vperm.xlu0 %1945, %v1659
      %v1947 = vpop.permute.xlu0 %1946
      %1949 = vset.pattern.permute.xlu0 1
      %1950 = vperm.xlu0 %1949, %v1661
      %v1951 = vpop.permute.xlu0 %1950
      %1953 = vset.pattern.permute.xlu0 1
      %1954 = vperm.xlu0 %1953, %v1664
      %v1955 = vpop.permute.xlu0 %1954
      %1957 = vset.pattern.permute.xlu0 1
      %1958 = vperm.xlu0 %1957, %v1666
      %v1959 = vpop.permute.xlu0 %1958
      %1961 = vset.pattern.permute.xlu0 1
      %1962 = vperm.xlu0 %1961, %v1669
      %v1963 = vpop.permute.xlu0 %1962
      %1965 = vset.pattern.permute.xlu0 1
      %1966 = vperm.xlu0 %1965, %v1671
      %v1967 = vpop.permute.xlu0 %1966
      %1969 = vset.pattern.permute.xlu0 1
      %1970 = vperm.xlu0 %1969, %v1674
      %v1971 = vpop.permute.xlu0 %1970
      %1973 = vset.pattern.permute.xlu0 1
      %1974 = vperm.xlu0 %1973, %v1676
      %v1975 = vpop.permute.xlu0 %1974
      %1977 = vset.pattern.permute.xlu0 1
      %1978 = vperm.xlu0 %1977, %v1679
      %v1979 = vpop.permute.xlu0 %1978
      %1981 = vset.pattern.permute.xlu0 1
      %1982 = vperm.xlu0 %1981, %v1681
      %v1983 = vpop.permute.xlu0 %1982
      %1985 = vset.pattern.permute.xlu0 1
      %1986 = vperm.xlu0 %1985, %v1684
      %v1987 = vpop.permute.xlu0 %1986
      %1989 = vset.pattern.permute.xlu0 1
      %1990 = vperm.xlu0 %1989, %v1686
      %v1991 = vpop.permute.xlu0 %1990
      %1993 = vset.pattern.permute.xlu0 1
      %1994 = vperm.xlu0 %1993, %v1689
      %v1995 = vpop.permute.xlu0 %1994
      %1997 = vset.pattern.permute.xlu0 1
      %1998 = vperm.xlu0 %1997, %v1691
      %v1999 = vpop.permute.xlu0 %1998
      %2001 = vset.pattern.permute.xlu0 1
      %2002 = vperm.xlu0 %2001, %v1694
      %v2003 = vpop.permute.xlu0 %2002
      %2005 = vset.pattern.permute.xlu0 1
      %2006 = vperm.xlu0 %2005, %v1696
      %v2007 = vpop.permute.xlu0 %2006
      %v2009 = vperm.slane %v1843, 1
      %v2010 = vmul.f32 %v1947, %v2009
      %v2011 = vmul.f32 %v1951, %v2009
      %v2012 = vmul.f32 %v1955, %v2009
      %v2013 = vmul.f32 %v1959, %v2009
      %v2014 = vmul.f32 %v1963, %v2009
      %v2015 = vmul.f32 %v1967, %v2009
      %v2016 = vmul.f32 %v1971, %v2009
      %v2017 = vmul.f32 %v1975, %v2009
      %v2018 = vmul.f32 %v1979, %v2009
      %v2019 = vmul.f32 %v1983, %v2009
      %v2020 = vmul.f32 %v1987, %v2009
      %v2021 = vmul.f32 %v1991, %v2009
      %v2022 = vmul.f32 %v1995, %v2009
      %v2023 = vmul.f32 %v1999, %v2009
      %v2024 = vmul.f32 %v2003, %v2009
      %v2025 = vmul.f32 %v2007, %v2009
      %v2026 = vadd.f32 %v1929, %v2010
      %v2027 = vadd.f32 %v1930, %v2011
      %v2028 = vadd.f32 %v1931, %v2012
      %v2029 = vadd.f32 %v1932, %v2013
      %v2030 = vadd.f32 %v1933, %v2014
      %v2031 = vadd.f32 %v1934, %v2015
      %v2032 = vadd.f32 %v1935, %v2016
      %v2033 = vadd.f32 %v1936, %v2017
      %v2034 = vadd.f32 %v1937, %v2018
      %v2035 = vadd.f32 %v1938, %v2019
      %v2036 = vadd.f32 %v1939, %v2020
      %v2037 = vadd.f32 %v1940, %v2021
      %v2038 = vadd.f32 %v1941, %v2022
      %v2039 = vadd.f32 %v1942, %v2023
      %v2040 = vadd.f32 %v1943, %v2024
      %v2041 = vadd.f32 %v1944, %v2025
      %v2042 = vmax.f32 %v2026, 0.0
      %v2043 = vmax.f32 %v2027, 0.0
      %v2044 = vmax.f32 %v2028, 0.0
      %v2045 = vmax.f32 %v2029, 0.0
      %v2046 = vmax.f32 %v2030, 0.0
      %v2047 = vmax.f32 %v2031, 0.0
      %v2048 = vmax.f32 %v2032, 0.0
      %v2049 = vmax.f32 %v2033, 0.0
      %v2050 = vmax.f32 %v2034, 0.0
      %v2051 = vmax.f32 %v2035, 0.0
      %v2052 = vmax.f32 %v2036, 0.0
      %v2053 = vmax.f32 %v2037, 0.0
      %v2054 = vmax.f32 %v2038, 0.0
      %v2055 = vmax.f32 %v2039, 0.0
      %v2056 = vmax.f32 %v2040, 0.0
      %v2057 = vmax.f32 %v2041, 0.0
      %vm2058 = vcmp.ne.f32.partialorder %v2026, %v2026
      %vm2059 = vcmp.ne.f32.partialorder %v2027, %v2027
      %vm2060 = vcmp.ne.f32.partialorder %v2028, %v2028
      %vm2061 = vcmp.ne.f32.partialorder %v2029, %v2029
      %vm2062 = vcmp.ne.f32.partialorder %v2030, %v2030
      %vm2063 = vcmp.ne.f32.partialorder %v2031, %v2031
      %vm2064 = vcmp.ne.f32.partialorder %v2032, %v2032
      %vm2065 = vcmp.ne.f32.partialorder %v2033, %v2033
      %vm2066 = vcmp.ne.f32.partialorder %v2034, %v2034
      %vm2067 = vcmp.ne.f32.partialorder %v2035, %v2035
      %vm2068 = vcmp.ne.f32.partialorder %v2036, %v2036
      %vm2069 = vcmp.ne.f32.partialorder %v2037, %v2037
      %vm2070 = vcmp.ne.f32.partialorder %v2038, %v2038
      %vm2071 = vcmp.ne.f32.partialorder %v2039, %v2039
      %vm2072 = vcmp.ne.f32.partialorder %v2040, %v2040
      %vm2073 = vcmp.ne.f32.partialorder %v2041, %v2041
      %v2074 = vadd.f32 %v2026, 0.0
      %v2075 = vadd.f32 %v2027, 0.0
      %v2076 = vadd.f32 %v2028, 0.0
      %v2077 = vadd.f32 %v2029, 0.0
      %v2078 = vadd.f32 %v2030, 0.0
      %v2079 = vadd.f32 %v2031, 0.0
      %v2080 = vadd.f32 %v2032, 0.0
      %v2081 = vadd.f32 %v2033, 0.0
      %v2082 = vadd.f32 %v2034, 0.0
      %v2083 = vadd.f32 %v2035, 0.0
      %v2084 = vadd.f32 %v2036, 0.0
      %v2085 = vadd.f32 %v2037, 0.0
      %v2086 = vadd.f32 %v2038, 0.0
      %v2087 = vadd.f32 %v2039, 0.0
      %v2088 = vadd.f32 %v2040, 0.0
      %v2089 = vadd.f32 %v2041, 0.0
      %v2090 = vand.u32 2147483647, %v2026
      %v2091 = vand.u32 2147483647, %v2027
      %v2092 = vand.u32 2147483647, %v2028
      %v2093 = vand.u32 2147483647, %v2029
      %v2094 = vand.u32 2147483647, %v2030
      %v2095 = vand.u32 2147483647, %v2031
      %v2096 = vand.u32 2147483647, %v2032
      %v2097 = vand.u32 2147483647, %v2033
      %v2098 = vand.u32 2147483647, %v2034
      %v2099 = vand.u32 2147483647, %v2035
      %v2100 = vand.u32 2147483647, %v2036
      %v2101 = vand.u32 2147483647, %v2037
      %v2102 = vand.u32 2147483647, %v2038
      %v2103 = vand.u32 2147483647, %v2039
      %v2104 = vand.u32 2147483647, %v2040
      %v2105 = vand.u32 2147483647, %v2041
      %v2106 = vsub.f32 0.0, %v2090
      %v2107 = vsub.f32 0.0, %v2091
      %v2108 = vsub.f32 0.0, %v2092
      %v2109 = vsub.f32 0.0, %v2093
      %v2110 = vsub.f32 0.0, %v2094
      %v2111 = vsub.f32 0.0, %v2095
      %v2112 = vsub.f32 0.0, %v2096
      %v2113 = vsub.f32 0.0, %v2097
      %v2114 = vsub.f32 0.0, %v2098
      %v2115 = vsub.f32 0.0, %v2099
      %v2116 = vsub.f32 0.0, %v2100
      %v2117 = vsub.f32 0.0, %v2101
      %v2118 = vsub.f32 0.0, %v2102
      %v2119 = vsub.f32 0.0, %v2103
      %v2120 = vsub.f32 0.0, %v2104
      %v2121 = vsub.f32 0.0, %v2105
      %v2122 = vmul.f32 %v2106, 1.442695
      %v2123 = vpow.pop %v2122
      %v2124 = vmul.f32 %v2107, 1.442695
      %v2125 = vpow.pop %v2124
      %v2126 = vmul.f32 %v2108, 1.442695
      %v2127 = vpow.pop %v2126
      %v2128 = vmul.f32 %v2109, 1.442695
      %v2129 = vpow.pop %v2128
      %v2130 = vmul.f32 %v2110, 1.442695
      %v2131 = vpow.pop %v2130
      %v2132 = vmul.f32 %v2111, 1.442695
      %v2133 = vpow.pop %v2132
      %v2134 = vmul.f32 %v2112, 1.442695
      %v2135 = vpow.pop %v2134
      %v2136 = vmul.f32 %v2113, 1.442695
      %v2137 = vpow.pop %v2136
      %v2138 = vmul.f32 %v2114, 1.442695
      %v2139 = vpow.pop %v2138
      %v2140 = vmul.f32 %v2115, 1.442695
      %v2141 = vpow.pop %v2140
      %v2142 = vmul.f32 %v2116, 1.442695
      %v2143 = vpow.pop %v2142
      %v2144 = vmul.f32 %v2117, 1.442695
      %v2145 = vpow.pop %v2144
      %v2146 = vmul.f32 %v2118, 1.442695
      %v2147 = vpow.pop %v2146
      %v2148 = vmul.f32 %v2119, 1.442695
      %v2149 = vpow.pop %v2148
      %v2150 = vmul.f32 %v2120, 1.442695
      %v2151 = vpow.pop %v2150
      %v2152 = vmul.f32 %v2121, 1.442695
      %v2153 = vpow.pop %v2152
      %v2154 = vadd.f32 %v2123, 1.0
      %v2155 = vlog2.pop %v2154
      %v2156 = vmul.f32 %v2155, 0.6931472
      %v2157 = vmul.f32 -0.5, %v2123
      %v2158 = vadd.f32 %v2157, 1.0
      %v2159 = vmul.f32 %v2158, %v2123
      %v2160 = vand.u32 2147483647, %v2123
      %vm2161 = vcmp.lt.f32.partialorder %v2160, 0.0004427343
      %v2162 = vsel %vm2161, %v2159, %v2156
      %v2163 = vadd.f32 %v2125, 1.0
      %v2164 = vlog2.pop %v2163
      %v2165 = vmul.f32 %v2164, 0.6931472
      %v2166 = vmul.f32 -0.5, %v2125
      %v2167 = vadd.f32 %v2166, 1.0
      %v2168 = vmul.f32 %v2167, %v2125
      %v2169 = vand.u32 2147483647, %v2125
      %vm2170 = vcmp.lt.f32.partialorder %v2169, 0.0004427343
      %v2171 = vsel %vm2170, %v2168, %v2165
      %v2172 = vadd.f32 %v2127, 1.0
      %v2173 = vlog2.pop %v2172
      %v2174 = vmul.f32 %v2173, 0.6931472
      %v2175 = vmul.f32 -0.5, %v2127
      %v2176 = vadd.f32 %v2175, 1.0
      %v2177 = vmul.f32 %v2176, %v2127
      %v2178 = vand.u32 2147483647, %v2127
      %vm2179 = vcmp.lt.f32.partialorder %v2178, 0.0004427343
      %v2180 = vsel %vm2179, %v2177, %v2174
      %v2181 = vadd.f32 %v2129, 1.0
      %v2182 = vlog2.pop %v2181
      %v2183 = vmul.f32 %v2182, 0.6931472
      %v2184 = vmul.f32 -0.5, %v2129
      %v2185 = vadd.f32 %v2184, 1.0
      %v2186 = vmul.f32 %v2185, %v2129
      %v2187 = vand.u32 2147483647, %v2129
      %vm2188 = vcmp.lt.f32.partialorder %v2187, 0.0004427343
      %v2189 = vsel %vm2188, %v2186, %v2183
      %v2190 = vadd.f32 %v2131, 1.0
      %v2191 = vlog2.pop %v2190
      %v2192 = vmul.f32 %v2191, 0.6931472
      %v2193 = vmul.f32 -0.5, %v2131
      %v2194 = vadd.f32 %v2193, 1.0
      %v2195 = vmul.f32 %v2194, %v2131
      %v2196 = vand.u32 2147483647, %v2131
      %vm2197 = vcmp.lt.f32.partialorder %v2196, 0.0004427343
      %v2198 = vsel %vm2197, %v2195, %v2192
      %v2199 = vadd.f32 %v2133, 1.0
      %v2200 = vlog2.pop %v2199
      %v2201 = vmul.f32 %v2200, 0.6931472
      %v2202 = vmul.f32 -0.5, %v2133
      %v2203 = vadd.f32 %v2202, 1.0
      %v2204 = vmul.f32 %v2203, %v2133
      %v2205 = vand.u32 2147483647, %v2133
      %vm2206 = vcmp.lt.f32.partialorder %v2205, 0.0004427343
      %v2207 = vsel %vm2206, %v2204, %v2201
      %v2208 = vadd.f32 %v2135, 1.0
      %v2209 = vlog2.pop %v2208
      %v2210 = vmul.f32 %v2209, 0.6931472
      %v2211 = vmul.f32 -0.5, %v2135
      %v2212 = vadd.f32 %v2211, 1.0
      %v2213 = vmul.f32 %v2212, %v2135
      %v2214 = vand.u32 2147483647, %v2135
      %vm2215 = vcmp.lt.f32.partialorder %v2214, 0.0004427343
      %v2216 = vsel %vm2215, %v2213, %v2210
      %v2217 = vadd.f32 %v2137, 1.0
      %v2218 = vlog2.pop %v2217
      %v2219 = vmul.f32 %v2218, 0.6931472
      %v2220 = vmul.f32 -0.5, %v2137
      %v2221 = vadd.f32 %v2220, 1.0
      %v2222 = vmul.f32 %v2221, %v2137
      %v2223 = vand.u32 2147483647, %v2137
      %vm2224 = vcmp.lt.f32.partialorder %v2223, 0.0004427343
      %v2225 = vsel %vm2224, %v2222, %v2219
      %v2226 = vadd.f32 %v2139, 1.0
      %v2227 = vlog2.pop %v2226
      %v2228 = vmul.f32 %v2227, 0.6931472
      %v2229 = vmul.f32 -0.5, %v2139
      %v2230 = vadd.f32 %v2229, 1.0
      %v2231 = vmul.f32 %v2230, %v2139
      %v2232 = vand.u32 2147483647, %v2139
      %vm2233 = vcmp.lt.f32.partialorder %v2232, 0.0004427343
      %v2234 = vsel %vm2233, %v2231, %v2228
      %v2235 = vadd.f32 %v2141, 1.0
      %v2236 = vlog2.pop %v2235
      %v2237 = vmul.f32 %v2236, 0.6931472
      %v2238 = vmul.f32 -0.5, %v2141
      %v2239 = vadd.f32 %v2238, 1.0
      %v2240 = vmul.f32 %v2239, %v2141
      %v2241 = vand.u32 2147483647, %v2141
      %vm2242 = vcmp.lt.f32.partialorder %v2241, 0.0004427343
      %v2243 = vsel %vm2242, %v2240, %v2237
      %v2244 = vadd.f32 %v2143, 1.0
      %v2245 = vlog2.pop %v2244
      %v2246 = vmul.f32 %v2245, 0.6931472
      %v2247 = vmul.f32 -0.5, %v2143
      %v2248 = vadd.f32 %v2247, 1.0
      %v2249 = vmul.f32 %v2248, %v2143
      %v2250 = vand.u32 2147483647, %v2143
      %vm2251 = vcmp.lt.f32.partialorder %v2250, 0.0004427343
      %v2252 = vsel %vm2251, %v2249, %v2246
      %v2253 = vadd.f32 %v2145, 1.0
      %v2254 = vlog2.pop %v2253
      %v2255 = vmul.f32 %v2254, 0.6931472
      %v2256 = vmul.f32 -0.5, %v2145
      %v2257 = vadd.f32 %v2256, 1.0
      %v2258 = vmul.f32 %v2257, %v2145
      %v2259 = vand.u32 2147483647, %v2145
      %vm2260 = vcmp.lt.f32.partialorder %v2259, 0.0004427343
      %v2261 = vsel %vm2260, %v2258, %v2255
      %v2262 = vadd.f32 %v2147, 1.0
      %v2263 = vlog2.pop %v2262
      %v2264 = vmul.f32 %v2263, 0.6931472
      %v2265 = vmul.f32 -0.5, %v2147
      %v2266 = vadd.f32 %v2265, 1.0
      %v2267 = vmul.f32 %v2266, %v2147
      %v2268 = vand.u32 2147483647, %v2147
      %vm2269 = vcmp.lt.f32.partialorder %v2268, 0.0004427343
      %v2270 = vsel %vm2269, %v2267, %v2264
      %v2271 = vadd.f32 %v2149, 1.0
      %v2272 = vlog2.pop %v2271
      %v2273 = vmul.f32 %v2272, 0.6931472
      %v2274 = vmul.f32 -0.5, %v2149
      %v2275 = vadd.f32 %v2274, 1.0
      %v2276 = vmul.f32 %v2275, %v2149
      %v2277 = vand.u32 2147483647, %v2149
      %vm2278 = vcmp.lt.f32.partialorder %v2277, 0.0004427343
      %v2279 = vsel %vm2278, %v2276, %v2273
      %v2280 = vadd.f32 %v2151, 1.0
      %v2281 = vlog2.pop %v2280
      %v2282 = vmul.f32 %v2281, 0.6931472
      %v2283 = vmul.f32 -0.5, %v2151
      %v2284 = vadd.f32 %v2283, 1.0
      %v2285 = vmul.f32 %v2284, %v2151
      %v2286 = vand.u32 2147483647, %v2151
      %vm2287 = vcmp.lt.f32.partialorder %v2286, 0.0004427343
      %v2288 = vsel %vm2287, %v2285, %v2282
      %v2289 = vadd.f32 %v2153, 1.0
      %v2290 = vlog2.pop %v2289
      %v2291 = vmul.f32 %v2290, 0.6931472
      %v2292 = vmul.f32 -0.5, %v2153
      %v2293 = vadd.f32 %v2292, 1.0
      %v2294 = vmul.f32 %v2293, %v2153
      %v2295 = vand.u32 2147483647, %v2153
      %vm2296 = vcmp.lt.f32.partialorder %v2295, 0.0004427343
      %v2297 = vsel %vm2296, %v2294, %v2291
      %v2298 = vadd.f32 %v2042, %v2162
      %v2299 = vadd.f32 %v2043, %v2171
      %v2300 = vadd.f32 %v2044, %v2180
      %v2301 = vadd.f32 %v2045, %v2189
      %v2302 = vadd.f32 %v2046, %v2198
      %v2303 = vadd.f32 %v2047, %v2207
      %v2304 = vadd.f32 %v2048, %v2216
      %v2305 = vadd.f32 %v2049, %v2225
      %v2306 = vadd.f32 %v2050, %v2234
      %v2307 = vadd.f32 %v2051, %v2243
      %v2308 = vadd.f32 %v2052, %v2252
      %v2309 = vadd.f32 %v2053, %v2261
      %v2310 = vadd.f32 %v2054, %v2270
      %v2311 = vadd.f32 %v2055, %v2279
      %v2312 = vadd.f32 %v2056, %v2288
      %v2313 = vadd.f32 %v2057, %v2297
      %v2314 = vsel %vm2058, %v2074, %v2298
      %v2315 = vsel %vm2059, %v2075, %v2299
      %v2316 = vsel %vm2060, %v2076, %v2300
      %v2317 = vsel %vm2061, %v2077, %v2301
      %v2318 = vsel %vm2062, %v2078, %v2302
      %v2319 = vsel %vm2063, %v2079, %v2303
      %v2320 = vsel %vm2064, %v2080, %v2304
      %v2321 = vsel %vm2065, %v2081, %v2305
      %v2322 = vsel %vm2066, %v2082, %v2306
      %v2323 = vsel %vm2067, %v2083, %v2307
      %v2324 = vsel %vm2068, %v2084, %v2308
      %v2325 = vsel %vm2069, %v2085, %v2309
      %v2326 = vsel %vm2070, %v2086, %v2310
      %v2327 = vsel %vm2071, %v2087, %v2311
      %v2328 = vsel %vm2072, %v2088, %v2312
      %v2329 = vsel %vm2073, %v2089, %v2313
      %2330 = vst.msk [vmem:[#allocation2] sm:$0xff] %vm895, %v2314
      %2331 = vst.msk [vmem:[#allocation2 + $0x8] sm:$0xff] %vm895, %v2315
      %2332 = vst.msk [vmem:[#allocation2 + $0x10] sm:$0xff] %vm895, %v2316
      %2333 = vst.msk [vmem:[#allocation2 + $0x18] sm:$0xff] %vm895, %v2317
      %2334 = vst.msk [vmem:[#allocation2 + $0x20] sm:$0xff] %vm895, %v2318
      %2335 = vst.msk [vmem:[#allocation2 + $0x28] sm:$0xff] %vm895, %v2319
      %2336 = vst.msk [vmem:[#allocation2 + $0x30] sm:$0xff] %vm895, %v2320
      %2337 = vst.msk [vmem:[#allocation2 + $0x38] sm:$0xff] %vm895, %v2321
      %2338 = vst.msk [vmem:[#allocation2 + $0x40] sm:$0xff] %vm895, %v2322
      %2339 = vst.msk [vmem:[#allocation2 + $0x48] sm:$0xff] %vm895, %v2323
      %2340 = vst.msk [vmem:[#allocation2 + $0x50] sm:$0xff] %vm895, %v2324
      %2341 = vst.msk [vmem:[#allocation2 + $0x58] sm:$0xff] %vm895, %v2325
      %2342 = vst.msk [vmem:[#allocation2 + $0x60] sm:$0xff] %vm895, %v2326
      %2343 = vst.msk [vmem:[#allocation2 + $0x68] sm:$0xff] %vm895, %v2327
      %2344 = vst.msk [vmem:[#allocation2 + $0x70] sm:$0xff] %vm895, %v2328
      %2345 = vst.msk [vmem:[#allocation2 + $0x78] sm:$0xff] %vm895, %v2329
      %v2346 = vmul.f32 %v2314, %v1533
      %v2347 = vmul.f32 %v2315, %v1534
      %v2348 = vmul.f32 %v2316, %v1535
      %v2349 = vmul.f32 %v2317, %v1536
      %v2350 = vmul.f32 %v2318, %v1537
      %v2351 = vmul.f32 %v2319, %v1538
      %v2352 = vmul.f32 %v2320, %v1539
      %v2353 = vmul.f32 %v2321, %v1540
      %v2354 = vmul.f32 %v2322, %v1541
      %v2355 = vmul.f32 %v2323, %v1542
      %v2356 = vmul.f32 %v2324, %v1543
      %v2357 = vmul.f32 %v2325, %v1544
      %v2358 = vmul.f32 %v2326, %v1545
      %v2359 = vmul.f32 %v2327, %v1546
      %v2360 = vmul.f32 %v2328, %v1547
      %v2361 = vmul.f32 %v2329, %v1548
      %2362 = vst.msk [vmem:[#allocation3] sm:$0xff] %vm895, %v2346
      %2363 = vst.msk [vmem:[#allocation3 + $0x8] sm:$0xff] %vm895, %v2347
      %2364 = vst.msk [vmem:[#allocation3 + $0x10] sm:$0xff] %vm895, %v2348
      %2365 = vst.msk [vmem:[#allocation3 + $0x18] sm:$0xff] %vm895, %v2349
      %2366 = vst.msk [vmem:[#allocation3 + $0x20] sm:$0xff] %vm895, %v2350
      %2367 = vst.msk [vmem:[#allocation3 + $0x28] sm:$0xff] %vm895, %v2351
      %2368 = vst.msk [vmem:[#allocation3 + $0x30] sm:$0xff] %vm895, %v2352
      %2369 = vst.msk [vmem:[#allocation3 + $0x38] sm:$0xff] %vm895, %v2353
      %2370 = vst.msk [vmem:[#allocation3 + $0x40] sm:$0xff] %vm895, %v2354
      %2371 = vst.msk [vmem:[#allocation3 + $0x48] sm:$0xff] %vm895, %v2355
      %2372 = vst.msk [vmem:[#allocation3 + $0x50] sm:$0xff] %vm895, %v2356
      %2373 = vst.msk [vmem:[#allocation3 + $0x58] sm:$0xff] %vm895, %v2357
      %2374 = vst.msk [vmem:[#allocation3 + $0x60] sm:$0xff] %vm895, %v2358
      %2375 = vst.msk [vmem:[#allocation3 + $0x68] sm:$0xff] %vm895, %v2359
      %2376 = vst.msk [vmem:[#allocation3 + $0x70] sm:$0xff] %vm895, %v2360
      %2377 = vst.msk [vmem:[#allocation3 + $0x78] sm:$0xff] %vm895, %v2361
      %v2378 = vld [vmem:[%s8] sm:$0xff]
      loop: start=0, step=1, limit=8
      $region65: #{tpu_custom_call.1} parent=63 // loop_pre_header
        _
      $region66: #{tpu_custom_call.1} parent=63 // loop_header
        %s2380 = sphi 0, %s2384
        %p2381 = scmp.ge.s32.totalorder %s2380, 8
        %v2385 = vphi 0.0, %v2659
        %v2386 = vphi 0.0, %v2956
      $region67: #{tpu_custom_call.1} parent=63 // loop_header_branch
        %2383 = sbr.rel (%p2381) target = $region71
      $region68: #{tpu_custom_call.1} parent=63 // loop_body
        %s2387 = smul.u32 %s2380, 8
        %s2388 = scalar_lea.vmem [#allocation2], %s2387
        %v2389 = vld [vmem:[%s2388] sm:$0xff]
        %s2390 = scalar_lea.vmem [#allocation3], %s2387
        %v2391 = vld [vmem:[%s2390] sm:$0xff]
        %s2392 = scalar_lea.vmem [#allocation4], %s2387
        %v2393 = vld [vmem:[%s2392] sm:$0xff]
        %s2394 = scalar_lea.vmem [#allocation5], %s2387
        %v2395 = vld [vmem:[%s2394] sm:$0xff]
        %v2397 = vrot.slane %v2389, 1
        %v2398 = vrot.slane %v2389, 2
        %v2399 = vrot.slane %v2389, 3
        %v2400 = vrot.slane %v2389, 4
        %v2401 = vrot.slane %v2389, 5
        %v2402 = vrot.slane %v2389, 6
        %v2403 = vrot.slane %v2389, 7
        %v2404 = vperm.slane %v2389, 0
        %v2405 = vperm.slane %v2397, 0
        %v2406 = vperm.slane %v2398, 0
        %v2407 = vperm.slane %v2399, 0
        %v2408 = vperm.slane %v2400, 0
        %v2409 = vperm.slane %v2401, 0
        %v2410 = vperm.slane %v2402, 0
        %v2411 = vperm.slane %v2403, 0
        %v2420 = vmul.f32 %v2404, %v2378
        %v2421 = vmul.f32 %v2405, %v2378
        %v2422 = vmul.f32 %v2406, %v2378
        %v2423 = vmul.f32 %v2407, %v2378
        %v2424 = vmul.f32 %v2408, %v2378
        %v2425 = vmul.f32 %v2409, %v2378
        %v2426 = vmul.f32 %v2410, %v2378
        %v2427 = vmul.f32 %v2411, %v2378
        %v2428 = vmul.f32 %v2420, 1.442695
        %v2429 = vpow.pop %v2428
        %v2430 = vmul.f32 %v2421, 1.442695
        %v2431 = vpow.pop %v2430
        %v2432 = vmul.f32 %v2422, 1.442695
        %v2433 = vpow.pop %v2432
        %v2434 = vmul.f32 %v2423, 1.442695
        %v2435 = vpow.pop %v2434
        %v2436 = vmul.f32 %v2424, 1.442695
        %v2437 = vpow.pop %v2436
        %v2438 = vmul.f32 %v2425, 1.442695
        %v2439 = vpow.pop %v2438
        %v2440 = vmul.f32 %v2426, 1.442695
        %v2441 = vpow.pop %v2440
        %v2442 = vmul.f32 %v2427, 1.442695
        %v2443 = vpow.pop %v2442
        %v2445 = vrot.slane %v2391, 1
        %v2446 = vrot.slane %v2391, 2
        %v2447 = vrot.slane %v2391, 3
        %v2448 = vrot.slane %v2391, 4
        %v2449 = vrot.slane %v2391, 5
        %v2450 = vrot.slane %v2391, 6
        %v2451 = vrot.slane %v2391, 7
        %v2452 = vperm.slane %v2393, 0
        %v2453 = vlaneseq
        %v2454 = vshrl.u32 %v2453, 7
        %2456 = vset.pattern.permute.xlu0 %v2454
        %2457 = vperm.xlu0 %2456, %v2452
        %v2458 = vpop.permute.xlu0 %2457
        %v2459 = vperm.slane %v2393, 1
        %v2460 = vlaneseq
        %v2461 = vshrl.u32 %v2460, 7
        %2463 = vset.pattern.permute.xlu0 %v2461
        %2464 = vperm.xlu0 %2463, %v2459
        %v2465 = vpop.permute.xlu0 %2464
        %v2466 = vperm.slane %v2393, 2
        %v2467 = vlaneseq
        %v2468 = vshrl.u32 %v2467, 7
        %2470 = vset.pattern.permute.xlu0 %v2468
        %2471 = vperm.xlu0 %2470, %v2466
        %v2472 = vpop.permute.xlu0 %2471
        %v2473 = vperm.slane %v2393, 3
        %v2474 = vlaneseq
        %v2475 = vshrl.u32 %v2474, 7
        %2477 = vset.pattern.permute.xlu0 %v2475
        %2478 = vperm.xlu0 %2477, %v2473
        %v2479 = vpop.permute.xlu0 %2478
        %v2480 = vperm.slane %v2393, 4
        %v2481 = vlaneseq
        %v2482 = vshrl.u32 %v2481, 7
        %2484 = vset.pattern.permute.xlu0 %v2482
        %2485 = vperm.xlu0 %2484, %v2480
        %v2486 = vpop.permute.xlu0 %2485
        %v2487 = vperm.slane %v2393, 5
        %v2488 = vlaneseq
        %v2489 = vshrl.u32 %v2488, 7
        %2491 = vset.pattern.permute.xlu0 %v2489
        %2492 = vperm.xlu0 %2491, %v2487
        %v2493 = vpop.permute.xlu0 %2492
        %v2494 = vperm.slane %v2393, 6
        %v2495 = vlaneseq
        %v2496 = vshrl.u32 %v2495, 7
        %2498 = vset.pattern.permute.xlu0 %v2496
        %2499 = vperm.xlu0 %2498, %v2494
        %v2500 = vpop.permute.xlu0 %2499
        %v2501 = vperm.slane %v2393, 7
        %v2502 = vlaneseq
        %v2503 = vshrl.u32 %v2502, 7
        %2505 = vset.pattern.permute.xlu0 %v2503
        %2506 = vperm.xlu0 %2505, %v2501
        %v2507 = vpop.permute.xlu0 %2506
        %v2508 = vperm.slane %v2391, 0
        %v2509 = vperm.slane %v2445, 0
        %v2510 = vperm.slane %v2446, 0
        %v2511 = vperm.slane %v2447, 0
        %v2512 = vperm.slane %v2448, 0
        %v2513 = vperm.slane %v2449, 0
        %v2514 = vperm.slane %v2450, 0
        %v2515 = vperm.slane %v2451, 0
        %v2524 = vmul.f32 %v2508, %v2458
        %v2525 = vmul.f32 %v2509, %v2465
        %v2526 = vmul.f32 %v2510, %v2472
        %v2527 = vmul.f32 %v2511, %v2479
        %v2528 = vmul.f32 %v2512, %v2486
        %v2529 = vmul.f32 %v2513, %v2493
        %v2530 = vmul.f32 %v2514, %v2500
        %v2531 = vmul.f32 %v2515, %v2507
        %v2532 = vperm.slane %v2395, 0
        %v2533 = vlaneseq
        %v2534 = vshrl.u32 %v2533, 7
        %2536 = vset.pattern.permute.xlu0 %v2534
        %2537 = vperm.xlu0 %2536, %v2532
        %v2538 = vpop.permute.xlu0 %2537
        %v2539 = vperm.slane %v2395, 1
        %v2540 = vlaneseq
        %v2541 = vshrl.u32 %v2540, 7
        %2543 = vset.pattern.permute.xlu0 %v2541
        %2544 = vperm.xlu0 %2543, %v2539
        %v2545 = vpop.permute.xlu0 %2544
        %v2546 = vperm.slane %v2395, 2
        %v2547 = vlaneseq
        %v2548 = vshrl.u32 %v2547, 7
        %2550 = vset.pattern.permute.xlu0 %v2548
        %2551 = vperm.xlu0 %2550, %v2546
        %v2552 = vpop.permute.xlu0 %2551
        %v2553 = vperm.slane %v2395, 3
        %v2554 = vlaneseq
        %v2555 = vshrl.u32 %v2554, 7
        %2557 = vset.pattern.permute.xlu0 %v2555
        %2558 = vperm.xlu0 %2557, %v2553
        %v2559 = vpop.permute.xlu0 %2558
        %v2560 = vperm.slane %v2395, 4
        %v2561 = vlaneseq
        %v2562 = vshrl.u32 %v2561, 7
        %2564 = vset.pattern.permute.xlu0 %v2562
        %2565 = vperm.xlu0 %2564, %v2560
        %v2566 = vpop.permute.xlu0 %2565
        %v2567 = vperm.slane %v2395, 5
        %v2568 = vlaneseq
        %v2569 = vshrl.u32 %v2568, 7
        %2571 = vset.pattern.permute.xlu0 %v2569
        %2572 = vperm.xlu0 %2571, %v2567
        %v2573 = vpop.permute.xlu0 %2572
        %v2574 = vperm.slane %v2395, 6
        %v2575 = vlaneseq
        %v2576 = vshrl.u32 %v2575, 7
        %2578 = vset.pattern.permute.xlu0 %v2576
        %2579 = vperm.xlu0 %2578, %v2574
        %v2580 = vpop.permute.xlu0 %2579
        %v2581 = vperm.slane %v2395, 7
        %v2582 = vlaneseq
        %v2583 = vshrl.u32 %v2582, 7
        %2585 = vset.pattern.permute.xlu0 %v2583
        %2586 = vperm.xlu0 %2585, %v2581
        %v2587 = vpop.permute.xlu0 %2586
        %v2588 = vmul.f32 %v2429, %v2385
        %v2589 = vadd.f32 %v2588, %v2524
        %v2590 = vmul.f32 %v2589, %v2538
        %v2591 = vsel %vm895, %v2590, 0.0
        %v2592 = vrot.slane %v2591, 4
        %v2593 = vadd.f32 %v2591, %v2592
        %v2594 = vrot.slane %v2593, 2
        %v2595 = vadd.f32 %v2593, %v2594
        %v2596 = vrot.slane %v2595, 1
        %v2597 = vadd.f32 %v2595, %v2596
        %v2598 = vmul.f32 %v2431, %v2589
        %v2599 = vadd.f32 %v2598, %v2525
        %v2600 = vmul.f32 %v2599, %v2545
        %v2601 = vsel %vm895, %v2600, 0.0
        %v2602 = vrot.slane %v2601, 4
        %v2603 = vadd.f32 %v2601, %v2602
        %v2604 = vrot.slane %v2603, 2
        %v2605 = vadd.f32 %v2603, %v2604
        %v2606 = vrot.slane %v2605, 1
        %v2607 = vadd.f32 %v2605, %v2606
        %v2608 = vmul.f32 %v2433, %v2599
        %v2609 = vadd.f32 %v2608, %v2526
        %v2610 = vmul.f32 %v2609, %v2552
        %v2611 = vsel %vm895, %v2610, 0.0
        %v2612 = vrot.slane %v2611, 4
        %v2613 = vadd.f32 %v2611, %v2612
        %v2614 = vrot.slane %v2613, 2
        %v2615 = vadd.f32 %v2613, %v2614
        %v2616 = vrot.slane %v2615, 1
        %v2617 = vadd.f32 %v2615, %v2616
        %v2618 = vmul.f32 %v2435, %v2609
        %v2619 = vadd.f32 %v2618, %v2527
        %v2620 = vmul.f32 %v2619, %v2559
        %v2621 = vsel %vm895, %v2620, 0.0
        %v2622 = vrot.slane %v2621, 4
        %v2623 = vadd.f32 %v2621, %v2622
        %v2624 = vrot.slane %v2623, 2
        %v2625 = vadd.f32 %v2623, %v2624
        %v2626 = vrot.slane %v2625, 1
        %v2627 = vadd.f32 %v2625, %v2626
        %v2628 = vmul.f32 %v2437, %v2619
        %v2629 = vadd.f32 %v2628, %v2528
        %v2630 = vmul.f32 %v2629, %v2566
        %v2631 = vsel %vm895, %v2630, 0.0
        %v2632 = vrot.slane %v2631, 4
        %v2633 = vadd.f32 %v2631, %v2632
        %v2634 = vrot.slane %v2633, 2
        %v2635 = vadd.f32 %v2633, %v2634
        %v2636 = vrot.slane %v2635, 1
        %v2637 = vadd.f32 %v2635, %v2636
        %v2638 = vmul.f32 %v2439, %v2629
        %v2639 = vadd.f32 %v2638, %v2529
        %v2640 = vmul.f32 %v2639, %v2573
        %v2641 = vsel %vm895, %v2640, 0.0
        %v2642 = vrot.slane %v2641, 4
        %v2643 = vadd.f32 %v2641, %v2642
        %v2644 = vrot.slane %v2643, 2
        %v2645 = vadd.f32 %v2643, %v2644
        %v2646 = vrot.slane %v2645, 1
        %v2647 = vadd.f32 %v2645, %v2646
        %v2648 = vmul.f32 %v2441, %v2639
        %v2649 = vadd.f32 %v2648, %v2530
        %v2650 = vmul.f32 %v2649, %v2580
        %v2651 = vsel %vm895, %v2650, 0.0
        %v2652 = vrot.slane %v2651, 4
        %v2653 = vadd.f32 %v2651, %v2652
        %v2654 = vrot.slane %v2653, 2
        %v2655 = vadd.f32 %v2653, %v2654
        %v2656 = vrot.slane %v2655, 1
        %v2657 = vadd.f32 %v2655, %v2656
        %v2658 = vmul.f32 %v2443, %v2649
        %v2659 = vadd.f32 %v2658, %v2531
        %v2660 = vmul.f32 %v2659, %v2587
        %v2661 = vsel %vm895, %v2660, 0.0
        %v2662 = vrot.slane %v2661, 4
        %v2663 = vadd.f32 %v2661, %v2662
        %v2664 = vrot.slane %v2663, 2
        %v2665 = vadd.f32 %v2663, %v2664
        %v2666 = vrot.slane %v2665, 1
        %v2667 = vadd.f32 %v2665, %v2666
        %vm2668 = vcmask 1040384
        %v2669 = vsel %vm2668, %v2597, %v2607
        %vm2670 = vcmask 1041408
        %v2671 = vsel %vm2670, %v2669, %v2617
        %vm2672 = vcmask 1042432
        %v2673 = vsel %vm2672, %v2671, %v2627
        %vm2674 = vcmask 1043456
        %v2675 = vsel %vm2674, %v2673, %v2637
        %vm2676 = vcmask 1044480
        %v2677 = vsel %vm2676, %v2675, %v2647
        %vm2678 = vcmask 1045504
        %v2679 = vsel %vm2678, %v2677, %v2657
        %vm2680 = vcmask 1046528
        %v2681 = vsel %vm2680, %v2679, %v2667
        %s2682 = scalar_lea.vmem [#allocation8], %s2387
        %2683 = vst.msk [vmem:[%s2682] sm:$0xff] %vm895, %v2681
        %s2684 = sadd.s32 %s2387, 64
        %s2685 = scalar_lea.vmem [#allocation2], %s2684
        %v2686 = vld [vmem:[%s2685] sm:$0xff]
        %s2687 = scalar_lea.vmem [#allocation3], %s2684
        %v2688 = vld [vmem:[%s2687] sm:$0xff]
        %s2689 = scalar_lea.vmem [#allocation4], %s2684
        %v2690 = vld [vmem:[%s2689] sm:$0xff]
        %s2691 = scalar_lea.vmem [#allocation5], %s2684
        %v2692 = vld [vmem:[%s2691] sm:$0xff]
        %v2694 = vrot.slane %v2686, 1
        %v2695 = vrot.slane %v2686, 2
        %v2696 = vrot.slane %v2686, 3
        %v2697 = vrot.slane %v2686, 4
        %v2698 = vrot.slane %v2686, 5
        %v2699 = vrot.slane %v2686, 6
        %v2700 = vrot.slane %v2686, 7
        %v2701 = vperm.slane %v2686, 0
        %v2702 = vperm.slane %v2694, 0
        %v2703 = vperm.slane %v2695, 0
        %v2704 = vperm.slane %v2696, 0
        %v2705 = vperm.slane %v2697, 0
        %v2706 = vperm.slane %v2698, 0
        %v2707 = vperm.slane %v2699, 0
        %v2708 = vperm.slane %v2700, 0
        %v2717 = vmul.f32 %v2701, %v2378
        %v2718 = vmul.f32 %v2702, %v2378
        %v2719 = vmul.f32 %v2703, %v2378
        %v2720 = vmul.f32 %v2704, %v2378
        %v2721 = vmul.f32 %v2705, %v2378
        %v2722 = vmul.f32 %v2706, %v2378
        %v2723 = vmul.f32 %v2707, %v2378
        %v2724 = vmul.f32 %v2708, %v2378
        %v2725 = vmul.f32 %v2717, 1.442695
        %v2726 = vpow.pop %v2725
        %v2727 = vmul.f32 %v2718, 1.442695
        %v2728 = vpow.pop %v2727
        %v2729 = vmul.f32 %v2719, 1.442695
        %v2730 = vpow.pop %v2729
        %v2731 = vmul.f32 %v2720, 1.442695
        %v2732 = vpow.pop %v2731
        %v2733 = vmul.f32 %v2721, 1.442695
        %v2734 = vpow.pop %v2733
        %v2735 = vmul.f32 %v2722, 1.442695
        %v2736 = vpow.pop %v2735
        %v2737 = vmul.f32 %v2723, 1.442695
        %v2738 = vpow.pop %v2737
        %v2739 = vmul.f32 %v2724, 1.442695
        %v2740 = vpow.pop %v2739
        %v2742 = vrot.slane %v2688, 1
        %v2743 = vrot.slane %v2688, 2
        %v2744 = vrot.slane %v2688, 3
        %v2745 = vrot.slane %v2688, 4
        %v2746 = vrot.slane %v2688, 5
        %v2747 = vrot.slane %v2688, 6
        %v2748 = vrot.slane %v2688, 7
        %v2749 = vperm.slane %v2690, 0
        %v2750 = vlaneseq
        %v2751 = vshrl.u32 %v2750, 7
        %2753 = vset.pattern.permute.xlu0 %v2751
        %2754 = vperm.xlu0 %2753, %v2749
        %v2755 = vpop.permute.xlu0 %2754
        %v2756 = vperm.slane %v2690, 1
        %v2757 = vlaneseq
        %v2758 = vshrl.u32 %v2757, 7
        %2760 = vset.pattern.permute.xlu0 %v2758
        %2761 = vperm.xlu0 %2760, %v2756
        %v2762 = vpop.permute.xlu0 %2761
        %v2763 = vperm.slane %v2690, 2
        %v2764 = vlaneseq
        %v2765 = vshrl.u32 %v2764, 7
        %2767 = vset.pattern.permute.xlu0 %v2765
        %2768 = vperm.xlu0 %2767, %v2763
        %v2769 = vpop.permute.xlu0 %2768
        %v2770 = vperm.slane %v2690, 3
        %v2771 = vlaneseq
        %v2772 = vshrl.u32 %v2771, 7
        %2774 = vset.pattern.permute.xlu0 %v2772
        %2775 = vperm.xlu0 %2774, %v2770
        %v2776 = vpop.permute.xlu0 %2775
        %v2777 = vperm.slane %v2690, 4
        %v2778 = vlaneseq
        %v2779 = vshrl.u32 %v2778, 7
        %2781 = vset.pattern.permute.xlu0 %v2779
        %2782 = vperm.xlu0 %2781, %v2777
        %v2783 = vpop.permute.xlu0 %2782
        %v2784 = vperm.slane %v2690, 5
        %v2785 = vlaneseq
        %v2786 = vshrl.u32 %v2785, 7
        %2788 = vset.pattern.permute.xlu0 %v2786
        %2789 = vperm.xlu0 %2788, %v2784
        %v2790 = vpop.permute.xlu0 %2789
        %v2791 = vperm.slane %v2690, 6
        %v2792 = vlaneseq
        %v2793 = vshrl.u32 %v2792, 7
        %2795 = vset.pattern.permute.xlu0 %v2793
        %2796 = vperm.xlu0 %2795, %v2791
        %v2797 = vpop.permute.xlu0 %2796
        %v2798 = vperm.slane %v2690, 7
        %v2799 = vlaneseq
        %v2800 = vshrl.u32 %v2799, 7
        %2802 = vset.pattern.permute.xlu0 %v2800
        %2803 = vperm.xlu0 %2802, %v2798
        %v2804 = vpop.permute.xlu0 %2803
        %v2805 = vperm.slane %v2688, 0
        %v2806 = vperm.slane %v2742, 0
        %v2807 = vperm.slane %v2743, 0
        %v2808 = vperm.slane %v2744, 0
        %v2809 = vperm.slane %v2745, 0
        %v2810 = vperm.slane %v2746, 0
        %v2811 = vperm.slane %v2747, 0
        %v2812 = vperm.slane %v2748, 0
        %v2821 = vmul.f32 %v2805, %v2755
        %v2822 = vmul.f32 %v2806, %v2762
        %v2823 = vmul.f32 %v2807, %v2769
        %v2824 = vmul.f32 %v2808, %v2776
        %v2825 = vmul.f32 %v2809, %v2783
        %v2826 = vmul.f32 %v2810, %v2790
        %v2827 = vmul.f32 %v2811, %v2797
        %v2828 = vmul.f32 %v2812, %v2804
        %v2829 = vperm.slane %v2692, 0
        %v2830 = vlaneseq
        %v2831 = vshrl.u32 %v2830, 7
        %2833 = vset.pattern.permute.xlu0 %v2831
        %2834 = vperm.xlu0 %2833, %v2829
        %v2835 = vpop.permute.xlu0 %2834
        %v2836 = vperm.slane %v2692, 1
        %v2837 = vlaneseq
        %v2838 = vshrl.u32 %v2837, 7
        %2840 = vset.pattern.permute.xlu0 %v2838
        %2841 = vperm.xlu0 %2840, %v2836
        %v2842 = vpop.permute.xlu0 %2841
        %v2843 = vperm.slane %v2692, 2
        %v2844 = vlaneseq
        %v2845 = vshrl.u32 %v2844, 7
        %2847 = vset.pattern.permute.xlu0 %v2845
        %2848 = vperm.xlu0 %2847, %v2843
        %v2849 = vpop.permute.xlu0 %2848
        %v2850 = vperm.slane %v2692, 3
        %v2851 = vlaneseq
        %v2852 = vshrl.u32 %v2851, 7
        %2854 = vset.pattern.permute.xlu0 %v2852
        %2855 = vperm.xlu0 %2854, %v2850
        %v2856 = vpop.permute.xlu0 %2855
        %v2857 = vperm.slane %v2692, 4
        %v2858 = vlaneseq
        %v2859 = vshrl.u32 %v2858, 7
        %2861 = vset.pattern.permute.xlu0 %v2859
        %2862 = vperm.xlu0 %2861, %v2857
        %v2863 = vpop.permute.xlu0 %2862
        %v2864 = vperm.slane %v2692, 5
        %v2865 = vlaneseq
        %v2866 = vshrl.u32 %v2865, 7
        %2868 = vset.pattern.permute.xlu0 %v2866
        %2869 = vperm.xlu0 %2868, %v2864
        %v2870 = vpop.permute.xlu0 %2869
        %v2871 = vperm.slane %v2692, 6
        %v2872 = vlaneseq
        %v2873 = vshrl.u32 %v2872, 7
        %2875 = vset.pattern.permute.xlu0 %v2873
        %2876 = vperm.xlu0 %2875, %v2871
        %v2877 = vpop.permute.xlu0 %2876
        %v2878 = vperm.slane %v2692, 7
        %v2879 = vlaneseq
        %v2880 = vshrl.u32 %v2879, 7
        %2882 = vset.pattern.permute.xlu0 %v2880
        %2883 = vperm.xlu0 %2882, %v2878
        %v2884 = vpop.permute.xlu0 %2883
        %v2885 = vmul.f32 %v2726, %v2386
        %v2886 = vadd.f32 %v2885, %v2821
        %v2887 = vmul.f32 %v2886, %v2835
        %v2888 = vsel %vm895, %v2887, 0.0
        %v2889 = vrot.slane %v2888, 4
        %v2890 = vadd.f32 %v2888, %v2889
        %v2891 = vrot.slane %v2890, 2
        %v2892 = vadd.f32 %v2890, %v2891
        %v2893 = vrot.slane %v2892, 1
        %v2894 = vadd.f32 %v2892, %v2893
        %v2895 = vmul.f32 %v2728, %v2886
        %v2896 = vadd.f32 %v2895, %v2822
        %v2897 = vmul.f32 %v2896, %v2842
        %v2898 = vsel %vm895, %v2897, 0.0
        %v2899 = vrot.slane %v2898, 4
        %v2900 = vadd.f32 %v2898, %v2899
        %v2901 = vrot.slane %v2900, 2
        %v2902 = vadd.f32 %v2900, %v2901
        %v2903 = vrot.slane %v2902, 1
        %v2904 = vadd.f32 %v2902, %v2903
        %v2905 = vmul.f32 %v2730, %v2896
        %v2906 = vadd.f32 %v2905, %v2823
        %v2907 = vmul.f32 %v2906, %v2849
        %v2908 = vsel %vm895, %v2907, 0.0
        %v2909 = vrot.slane %v2908, 4
        %v2910 = vadd.f32 %v2908, %v2909
        %v2911 = vrot.slane %v2910, 2
        %v2912 = vadd.f32 %v2910, %v2911
        %v2913 = vrot.slane %v2912, 1
        %v2914 = vadd.f32 %v2912, %v2913
        %v2915 = vmul.f32 %v2732, %v2906
        %v2916 = vadd.f32 %v2915, %v2824
        %v2917 = vmul.f32 %v2916, %v2856
        %v2918 = vsel %vm895, %v2917, 0.0
        %v2919 = vrot.slane %v2918, 4
        %v2920 = vadd.f32 %v2918, %v2919
        %v2921 = vrot.slane %v2920, 2
        %v2922 = vadd.f32 %v2920, %v2921
        %v2923 = vrot.slane %v2922, 1
        %v2924 = vadd.f32 %v2922, %v2923
        %v2925 = vmul.f32 %v2734, %v2916
        %v2926 = vadd.f32 %v2925, %v2825
        %v2927 = vmul.f32 %v2926, %v2863
        %v2928 = vsel %vm895, %v2927, 0.0
        %v2929 = vrot.slane %v2928, 4
        %v2930 = vadd.f32 %v2928, %v2929
        %v2931 = vrot.slane %v2930, 2
        %v2932 = vadd.f32 %v2930, %v2931
        %v2933 = vrot.slane %v2932, 1
        %v2934 = vadd.f32 %v2932, %v2933
        %v2935 = vmul.f32 %v2736, %v2926
        %v2936 = vadd.f32 %v2935, %v2826
        %v2937 = vmul.f32 %v2936, %v2870
        %v2938 = vsel %vm895, %v2937, 0.0
        %v2939 = vrot.slane %v2938, 4
        %v2940 = vadd.f32 %v2938, %v2939
        %v2941 = vrot.slane %v2940, 2
        %v2942 = vadd.f32 %v2940, %v2941
        %v2943 = vrot.slane %v2942, 1
        %v2944 = vadd.f32 %v2942, %v2943
        %v2945 = vmul.f32 %v2738, %v2936
        %v2946 = vadd.f32 %v2945, %v2827
        %v2947 = vmul.f32 %v2946, %v2877
        %v2948 = vsel %vm895, %v2947, 0.0
        %v2949 = vrot.slane %v2948, 4
        %v2950 = vadd.f32 %v2948, %v2949
        %v2951 = vrot.slane %v2950, 2
        %v2952 = vadd.f32 %v2950, %v2951
        %v2953 = vrot.slane %v2952, 1
        %v2954 = vadd.f32 %v2952, %v2953
        %v2955 = vmul.f32 %v2740, %v2946
        %v2956 = vadd.f32 %v2955, %v2828
        %v2957 = vmul.f32 %v2956, %v2884
        %v2958 = vsel %vm895, %v2957, 0.0
        %v2959 = vrot.slane %v2958, 4
        %v2960 = vadd.f32 %v2958, %v2959
        %v2961 = vrot.slane %v2960, 2
        %v2962 = vadd.f32 %v2960, %v2961
        %v2963 = vrot.slane %v2962, 1
        %v2964 = vadd.f32 %v2962, %v2963
        %v2965 = vsel %vm2668, %v2894, %v2904
        %v2966 = vsel %vm2670, %v2965, %v2914
        %v2967 = vsel %vm2672, %v2966, %v2924
        %v2968 = vsel %vm2674, %v2967, %v2934
        %v2969 = vsel %vm2676, %v2968, %v2944
        %v2970 = vsel %vm2678, %v2969, %v2954
        %v2971 = vsel %vm2680, %v2970, %v2964
        %s2972 = scalar_lea.vmem [#allocation8], %s2684
        %2973 = vst.msk [vmem:[%s2972] sm:$0xff] %vm895, %v2971
      $region69: #{tpu_custom_call.1} parent=63 // loop_footer
        %s2384 = sadd.s32 1, %s2380
      $region70: #{tpu_custom_call.1} parent=63 // loop_footer_branch
        %2379 = sbr.rel target = $region66
      $region71: #{tpu_custom_call.1} parent=63 // loop_exit
        _
      %v2974 = vld [vmem:[#allocation8] sm:$0xff]
      %v2975 = vld [vmem:[#allocation8 + $0x8] sm:$0xff]
      %v2976 = vld [vmem:[#allocation8 + $0x10] sm:$0xff]
      %v2977 = vld [vmem:[#allocation8 + $0x18] sm:$0xff]
      %v2978 = vld [vmem:[#allocation8 + $0x20] sm:$0xff]
      %v2979 = vld [vmem:[#allocation8 + $0x28] sm:$0xff]
      %v2980 = vld [vmem:[#allocation8 + $0x30] sm:$0xff]
      %v2981 = vld [vmem:[#allocation8 + $0x38] sm:$0xff]
      %v2982 = vld [vmem:[#allocation8 + $0x40] sm:$0xff]
      %v2983 = vld [vmem:[#allocation8 + $0x48] sm:$0xff]
      %v2984 = vld [vmem:[#allocation8 + $0x50] sm:$0xff]
      %v2985 = vld [vmem:[#allocation8 + $0x58] sm:$0xff]
      %v2986 = vld [vmem:[#allocation8 + $0x60] sm:$0xff]
      %v2987 = vld [vmem:[#allocation8 + $0x68] sm:$0xff]
      %v2988 = vld [vmem:[#allocation8 + $0x70] sm:$0xff]
      %v2989 = vld [vmem:[#allocation8 + $0x78] sm:$0xff]
      %v2990 = vld [vmem:[#allocation6] sm:$0xff]
      %v2991 = vld [vmem:[#allocation6 + $0x8] sm:$0xff]
      %v2992 = vld [vmem:[#allocation6 + $0x10] sm:$0xff]
      %v2993 = vld [vmem:[#allocation6 + $0x18] sm:$0xff]
      %v2994 = vld [vmem:[#allocation6 + $0x20] sm:$0xff]
      %v2995 = vld [vmem:[#allocation6 + $0x28] sm:$0xff]
      %v2996 = vld [vmem:[#allocation6 + $0x30] sm:$0xff]
      %v2997 = vld [vmem:[#allocation6 + $0x38] sm:$0xff]
      %v2998 = vld [vmem:[#allocation6 + $0x40] sm:$0xff]
      %v2999 = vld [vmem:[#allocation6 + $0x48] sm:$0xff]
      %v3000 = vld [vmem:[#allocation6 + $0x50] sm:$0xff]
      %v3001 = vld [vmem:[#allocation6 + $0x58] sm:$0xff]
      %v3002 = vld [vmem:[#allocation6 + $0x60] sm:$0xff]
      %v3003 = vld [vmem:[#allocation6 + $0x68] sm:$0xff]
      %v3004 = vld [vmem:[#allocation6 + $0x70] sm:$0xff]
      %v3005 = vld [vmem:[#allocation6 + $0x78] sm:$0xff]
      %v3006 = vadd.f32 %v2974, %v2990
      %v3007 = vadd.f32 %v2975, %v2991
      %v3008 = vadd.f32 %v2976, %v2992
      %v3009 = vadd.f32 %v2977, %v2993
      %v3010 = vadd.f32 %v2978, %v2994
      %v3011 = vadd.f32 %v2979, %v2995
      %v3012 = vadd.f32 %v2980, %v2996
      %v3013 = vadd.f32 %v2981, %v2997
      %v3014 = vadd.f32 %v2982, %v2998
      %v3015 = vadd.f32 %v2983, %v2999
      %v3016 = vadd.f32 %v2984, %v3000
      %v3017 = vadd.f32 %v2985, %v3001
      %v3018 = vadd.f32 %v2986, %v3002
      %v3019 = vadd.f32 %v2987, %v3003
      %v3020 = vadd.f32 %v2988, %v3004
      %v3021 = vadd.f32 %v2989, %v3005
      %v3022 = vld [vmem:[#allocation7] sm:$0xff]
      %v3023 = vld [vmem:[#allocation7 + $0x8] sm:$0xff]
      %v3024 = vld [vmem:[#allocation7 + $0x10] sm:$0xff]
      %v3025 = vld [vmem:[#allocation7 + $0x18] sm:$0xff]
      %v3026 = vld [vmem:[#allocation7 + $0x20] sm:$0xff]
      %v3027 = vld [vmem:[#allocation7 + $0x28] sm:$0xff]
      %v3028 = vld [vmem:[#allocation7 + $0x30] sm:$0xff]
      %v3029 = vld [vmem:[#allocation7 + $0x38] sm:$0xff]
      %v3030 = vld [vmem:[#allocation7 + $0x40] sm:$0xff]
      %v3031 = vld [vmem:[#allocation7 + $0x48] sm:$0xff]
      %v3032 = vld [vmem:[#allocation7 + $0x50] sm:$0xff]
      %v3033 = vld [vmem:[#allocation7 + $0x58] sm:$0xff]
      %v3034 = vld [vmem:[#allocation7 + $0x60] sm:$0xff]
      %v3035 = vld [vmem:[#allocation7 + $0x68] sm:$0xff]
      %v3036 = vld [vmem:[#allocation7 + $0x70] sm:$0xff]
      %v3037 = vld [vmem:[#allocation7 + $0x78] sm:$0xff]
      %v3038 = vmul.f32 %v3006, %v3022
      %v3039 = vmul.f32 %v3007, %v3023
      %v3040 = vmul.f32 %v3008, %v3024
      %v3041 = vmul.f32 %v3009, %v3025
      %v3042 = vmul.f32 %v3010, %v3026
      %v3043 = vmul.f32 %v3011, %v3027
      %v3044 = vmul.f32 %v3012, %v3028
      %v3045 = vmul.f32 %v3013, %v3029
      %v3046 = vmul.f32 %v3014, %v3030
      %v3047 = vmul.f32 %v3015, %v3031
      %v3048 = vmul.f32 %v3016, %v3032
      %v3049 = vmul.f32 %v3017, %v3033
      %v3050 = vmul.f32 %v3018, %v3034
      %v3051 = vmul.f32 %v3019, %v3035
      %v3052 = vmul.f32 %v3020, %v3036
      %v3053 = vmul.f32 %v3021, %v3037
      %v3054 = vpack.c.bf16 %v3039, %v3038
      %v3055 = vpack.c.bf16 %v3041, %v3040
      %v3056 = vpack.c.bf16 %v3043, %v3042
      %v3057 = vpack.c.bf16 %v3045, %v3044
      %v3058 = vpack.c.bf16 %v3047, %v3046
      %v3059 = vpack.c.bf16 %v3049, %v3048
      %v3060 = vpack.c.bf16 %v3051, %v3050
      %v3061 = vpack.c.bf16 %v3053, %v3052
      %v3062 = vld [vmem:[%s10] sm:$0xf]
      %v3063 = vld [vmem:[%s10 + $0x4] sm:$0xf]
      %v3064 = vld [vmem:[%s10 + $0x8] sm:$0xf]
      %v3065 = vld [vmem:[%s10 + $0xc] sm:$0xf]
      %v3066 = vld [vmem:[%s10 + $0x10] sm:$0xf]
      %v3067 = vld [vmem:[%s10 + $0x14] sm:$0xf]
      %v3068 = vld [vmem:[%s10 + $0x18] sm:$0xf]
      %v3069 = vld [vmem:[%s10 + $0x1c] sm:$0xf]
      %v3078 = vunpack.c.l.b16 %v3062
      %v3079 = vunpack.c.l.b16 %v3063
      %v3080 = vunpack.c.l.b16 %v3064
      %v3081 = vunpack.c.l.b16 %v3065
      %v3082 = vunpack.c.l.b16 %v3066
      %v3083 = vunpack.c.l.b16 %v3067
      %v3084 = vunpack.c.l.b16 %v3068
      %v3085 = vunpack.c.l.b16 %v3069
      %v3086 = vpack.c.b16 %v3079, %v3078
      %v3087 = vpack.c.b16 %v3081, %v3080
      %v3088 = vpack.c.b16 %v3083, %v3082
      %v3089 = vpack.c.b16 %v3085, %v3084
      %v3095 = vsel %vm895, %v3054, 0
      %v3098 = vsel %vm895, %v3055, 0
      %v3101 = vsel %vm895, %v3056, 0
      %v3104 = vsel %vm895, %v3057, 0
      %v3107 = vsel %vm895, %v3058, 0
      %v3110 = vsel %vm895, %v3059, 0
      %v3113 = vsel %vm895, %v3060, 0
      %v3116 = vsel %vm895, %v3061, 0
      %3118 = vmatpush.bf16.msra.mxu0 0
      %3119 = vmatpush.bf16.msra.mxu0 0
      %3120 = vmatpush.bf16.msra.mxu0 0
      %3121 = vmatpush.bf16.msra.mxu0 0
      %3122 = vmatpush.bf16.msra.mxu0 %v3089
      %3123 = vmatpush.bf16.msra.mxu0 %v3088
      %3124 = vmatpush.bf16.msra.mxu0 %v3087
      %3125 = vmatpush.bf16.msra.mxu0 %v3086
      %3126 = vmatmul.bf16.gmra.mxu0 %v3095
      %v3127 = vpop.f32.mrf.mxu0
      %v3128 = vadd.f32 0.0, %v3127
      %v3129 = vpop.f32.mrf.mxu0
      %v3130 = vadd.f32 0.0, %v3129
      %3131 = vmatmul.bf16.gmra.mxu0 %v3098
      %v3132 = vpop.f32.mrf.mxu0
      %v3133 = vadd.f32 0.0, %v3132
      %v3134 = vpop.f32.mrf.mxu0
      %v3135 = vadd.f32 0.0, %v3134
      %3136 = vmatmul.bf16.gmra.mxu0 %v3101
      %v3137 = vpop.f32.mrf.mxu0
      %v3138 = vadd.f32 0.0, %v3137
      %v3139 = vpop.f32.mrf.mxu0
      %v3140 = vadd.f32 0.0, %v3139
      %3141 = vmatmul.bf16.gmra.mxu0 %v3104
      %v3142 = vpop.f32.mrf.mxu0
      %v3143 = vadd.f32 0.0, %v3142
      %v3144 = vpop.f32.mrf.mxu0
      %v3145 = vadd.f32 0.0, %v3144
      %3146 = vmatmul.bf16.gmra.mxu0 %v3107
      %v3147 = vpop.f32.mrf.mxu0
      %v3148 = vadd.f32 0.0, %v3147
      %v3149 = vpop.f32.mrf.mxu0
      %v3150 = vadd.f32 0.0, %v3149
      %3151 = vmatmul.bf16.gmra.mxu0 %v3110
      %v3152 = vpop.f32.mrf.mxu0
      %v3153 = vadd.f32 0.0, %v3152
      %v3154 = vpop.f32.mrf.mxu0
      %v3155 = vadd.f32 0.0, %v3154
      %3156 = vmatmul.bf16.gmra.mxu0 %v3113
      %v3157 = vpop.f32.mrf.mxu0
      %v3158 = vadd.f32 0.0, %v3157
      %v3159 = vpop.f32.mrf.mxu0
      %v3160 = vadd.f32 0.0, %v3159
      %3161 = vmatmul.bf16.gmra.mxu0 %v3116
      %v3162 = vpop.f32.mrf.mxu0
      %v3163 = vadd.f32 0.0, %v3162
      %v3164 = vpop.f32.mrf.mxu0
      %v3165 = vadd.f32 0.0, %v3164
      %3166 = vdwg.mxu0
      %3167 = vst.msk [vmem:[%s393] sm:$0xff] %vm436, %v3128
      %3168 = vst.msk [vmem:[%s393 + $0x8] sm:$0xff] %vm436, %v3130
      %3169 = vst.msk [vmem:[%s393 + $0x10] sm:$0xff] %vm436, %v3133
      %3170 = vst.msk [vmem:[%s393 + $0x18] sm:$0xff] %vm436, %v3135
      %3171 = vst.msk [vmem:[%s393 + $0x20] sm:$0xff] %vm436, %v3138
      %3172 = vst.msk [vmem:[%s393 + $0x28] sm:$0xff] %vm436, %v3140
      %3173 = vst.msk [vmem:[%s393 + $0x30] sm:$0xff] %vm436, %v3143
      %3174 = vst.msk [vmem:[%s393 + $0x38] sm:$0xff] %vm436, %v3145
      %3175 = vst.msk [vmem:[%s393 + $0x40] sm:$0xff] %vm436, %v3148
      %3176 = vst.msk [vmem:[%s393 + $0x48] sm:$0xff] %vm436, %v3150
      %3177 = vst.msk [vmem:[%s393 + $0x50] sm:$0xff] %vm436, %v3153
      %3178 = vst.msk [vmem:[%s393 + $0x58] sm:$0xff] %vm436, %v3155
      %3179 = vst.msk [vmem:[%s393 + $0x60] sm:$0xff] %vm436, %v3158
      %3180 = vst.msk [vmem:[%s393 + $0x68] sm:$0xff] %vm436, %v3160
      %3181 = vst.msk [vmem:[%s393 + $0x70] sm:$0xff] %vm436, %v3163
      %3182 = vst.msk [vmem:[%s393 + $0x78] sm:$0xff] %vm436, %v3165
      %s3183 = smul.u32 2, %s22
      %p3184 = scmp.lt.s32.totalorder %s3183, 3
      %s3185 = scalar_select %p3184, %s3183, 3
      %s3186 = smul.addr %s3185, 8
      %s3187 = smul.addr %s3186, 8
      %s3188 = scalar_lea.vmem %s11, %s3187
      // Predicated region
      $region72: #{tpu_custom_call.1} parent=63 // pred_check
        %p3189 = pneg %p276
      $region73: #{tpu_custom_call.1} parent=63 // pred_check_branch
        %3191 = sbr.rel (%p3189) target = $region75
      $region74: #{tpu_custom_call.1} parent=63 // pred_region
        %s3192 = smul.u32 2, %s22
      $region75: #{tpu_custom_call.1} parent=63 // pred_fallthru
        _
    $region64: #{tpu_custom_call.1} parent=5 // pred_fallthru
      _
    %p3193 = scmp.le.s32.totalorder 2, %s17
    // Predicated region
    $region76: #{tpu_custom_call.1} parent=5 // pred_check
      %p3194 = pneg %p3193
    $region77: #{tpu_custom_call.1} parent=5 // pred_check_branch
      %3196 = sbr.rel (%p3194) target = $region79
    $region78: #{tpu_custom_call.1} parent=5 // pred_region
      %s3197 = ssub.s32 %s17, 2
      // Predicated region
      $region80: #{tpu_custom_call.1} parent=78 // pred_check
        %p3198 = pneg %p282
      $region81: #{tpu_custom_call.1} parent=78 // pred_check_branch
        %3200 = sbr.rel (%p3198) target = $region83
      $region82: #{tpu_custom_call.1} parent=78 // pred_region
        %s3201 = smul.u32 2, %s23
        %p3202 = scmp.lt.s32.totalorder %s3201, 3
        %s3203 = scalar_select %p3202, %s3201, 3
        %s3204 = smul.addr %s3203, 8
        %s3205 = smul.addr %s3204, 8
        %s3206 = scalar_lea.vmem %s11, %s3205
      $region83: #{tpu_custom_call.1} parent=78 // pred_fallthru
        _
    $region79: #{tpu_custom_call.1} parent=5 // pred_fallthru
      _
  $region6: #{tpu_custom_call.1} parent=0 // loop_footer
    %s21 = sadd.s32 1, %s17
  $region7: #{tpu_custom_call.1} parent=0 // loop_footer_branch
    %16 = sbr.rel target = $region3
  $region8: #{tpu_custom_call.1} parent=0 // loop_exit
    _

</llo_original>
